<compile_context>
chip_gen: v7x
topology: tpu7x:2x2x1
jax: 0.10.0
libtpu: 0.0.40
codegen_flags: <defaults>
</compile_context>

<pallas_src>
from functools import partial

import jax
import jax.numpy as jnp
from jax.experimental import pallas as pl
from jax.experimental.pallas import tpu as pltpu


def _gnni_attn_kernel(feat_ref, posn_ref, out_ref, *, k, n_real):
    """Per-(batch, query-tile) body: sim -> fused top-k/softmax -> out^T tile."""
    n = feat_ref.shape[2]
    tq = out_ref.shape[2]

    feat_t = feat_ref[0].astype(jnp.float32)        # (C, N)  key features
    posn_keys = posn_ref[0].astype(jnp.float32)     # (C, N)  normalized positions

    # Queries are just a column slice of the resident keys block (no duplicate
    # query input, no extra HBM read).
    qstart = pl.multiple_of(pl.program_id(1) * tq, tq)
    posn_q = posn_ref[0, :, pl.ds(qstart, tq)].astype(jnp.float32)   # (C, tq)

    # sim^T tile: rows = keys (sublanes), cols = queries (lanes); sim is
    # symmetric so this is sim restricted to this query tile.
    sim = jax.lax.dot_general(
        posn_keys, posn_q, (((0,), (0,)), ((), ())),
        preferred_element_type=jnp.float32)          # (N, tq)

    # Single hoisted (N, tq) iota -- JAX does not CSE broadcast_in_dim, so do
    # the broadcast exactly once instead of inside every loop iteration.
    key_ids = jax.lax.broadcasted_iota(jnp.int32, (n, tq), 0)

    if n_real < n:                                   # padded key rows never win
        sim = jnp.where(key_ids < n_real, sim, -jnp.inf)

    # Iterative top-k over keys (sublane axis), fused with the softmax and the
    # (attn - I) accumulation of W^T.
    work = sim
    w_acc = jnp.zeros((n, tq), jnp.float32)
    denom = jnp.zeros((1, tq), jnp.float32)
    val0 = None
    idx0 = None
    for j in range(k):
        vmax = jnp.max(work, axis=0, keepdims=True)           # (1, tq)
        cand = jnp.where(work == vmax, key_ids, n)            # lowest index wins ties
        idx = jnp.min(cand, axis=0, keepdims=True)            # (1, tq) int32
        mask = key_ids == idx                                 # one-hot per column
        if j == 0:
            val0, idx0 = vmax, idx
        e = jnp.exp(vmax - val0)                              # (1, tq); j==0 -> 1.0
        w_acc = jnp.where(mask, w_acc + e, w_acc)             # select-accumulate
        denom = denom + e
        if j + 1 < k:
            work = jnp.where(mask, -jnp.inf, work)

    # Softmax normalize: (1, tq) reciprocal on the EUP + one Newton refinement
    # step (keeps the value-level match with the exact-division reference).
    inv = pl.reciprocal(denom, approx=True)
    inv = inv * (2.0 - denom * inv)
    base = w_acc * inv
    # attn - I: subtract 1 at the top-1 key of every query; idx0 is only
    # (1, tq) so no (N, tq) one-hot stays live across the loop.
    w_t = jnp.where(key_ids == idx0, base - 1.0, base)        # (N, tq)

    # out^T tile = feat^T @ W^T  -> lane-dense (C, tq) store.
    out_t = jnp.dot(feat_t, w_t, preferred_element_type=jnp.float32)
    out_ref[0] = out_t.astype(out_ref.dtype)


def _vmem_capacity_bytes():
    try:
        cap = getattr(pltpu.get_tpu_info(), "vmem_capacity_bytes", None)
        if cap:
            return int(cap)
    except Exception:
        pass
    return 64 * 1024 * 1024      # conservative fallback: v7x per-TC VMEM


def _pick_tq(n, c, vmem_limit):
    """Generation-aware query-tile size."""
    if n <= 512:
        return n                 # single lane-dense tile; full-dim block is legal
    budget = int(0.6 * vmem_limit)
    for cand in (512, 256, 128):
        n_pad = -(-n // cand) * cand
        if cand != 128 and (n_pad - n) * 8 > n:
            continue             # too much padding waste
        need = (5 * n_pad * cand         # (N, tq) loop working set (f32 / int32)
                + 4 * c * n_pad          # resident feat + posn, double-buffered
                + 2 * c * cand) * 4
        if need <= budget:
            return cand
    return 128


def gnni_forward(x, w_fc, b_fc, k, tq=None):
    """Pallas implementation of GNNI.forward (the ODE right-hand side)."""
    assert x.ndim == 4
    b, c, h, w = x.shape
    n = h * w
    assert w_fc.shape == (2 * c, c) and b_fc.shape == (2 * c,)
    assert 1 <= k <= n

    vmem_cap = _vmem_capacity_bytes()
    # ~48 MiB on v7x (64 MiB/TC), ~96-100 MiB on v5e/v6e (128 MiB).
    vmem_limit = min(100 * 1024 * 1024, max(32 * 1024 * 1024, (3 * vmem_cap) // 4))
    if tq is None:
        tq = _pick_tq(n, c, vmem_limit)

    # fc + L2-normalize hoisted out of the per-tile kernel: done once per RHS
    # call, channel-major so neither side ever does an HBM transpose.
    x_cn = x.reshape(b, c, n)
    fp = jnp.einsum("oc,bcn->bon", w_fc, x_cn) + b_fc[None, :, None]   # (B, 2C, N)
    feat_t = fp[:, :c, :]                                              # (B, C, N)
    pos_t = fp[:, c:, :]
    nrm = jnp.sqrt(jnp.sum(pos_t * pos_t, axis=1, keepdims=True))
    posn_t = pos_t / jnp.maximum(nrm, 1e-12)                           # (B, C, N)

    # Pad N up to a multiple of tq so stores stay unmasked / lane-dense and the
    # (N, tq) intermediates stay bounded (padded keys masked in-kernel).
    n_pad = -(-n // tq) * tq
    if n_pad != n:
        pad = ((0, 0), (0, 0), (0, n_pad - n))
        feat_t = jnp.pad(feat_t, pad)
        posn_t = jnp.pad(posn_t, pad)
    num_q_tiles = n_pad // tq

    cost = pl.CostEstimate(
        flops=int(b * 4 * c * n_pad * n_pad),
        transcendentals=int(b * n_pad * k),
        bytes_accessed=int(4 * 3 * b * c * n_pad),
    )

    out_cn = pl.pallas_call(
        partial(_gnni_attn_kernel, k=k, n_real=n),
        out_shape=jax.ShapeDtypeStruct((b, c, n_pad), x.dtype),
        grid_spec=pltpu.PrefetchScalarGridSpec(
            num_scalar_prefetch=0,
            grid=(b, num_q_tiles),
            in_specs=[
                # Keys blocks: block index only changes with bi, so they stay
                # VMEM-resident across the whole qi sweep (no per-tile re-DMA).
                pl.BlockSpec((1, c, n_pad), lambda bi, qi: (bi, 0, 0)),   # feat^T
                pl.BlockSpec((1, c, n_pad), lambda bi, qi: (bi, 0, 0)),   # posn^T
            ],
            out_specs=pl.BlockSpec((1, c, tq), lambda bi, qi: (bi, 0, qi)),
        ),
        compiler_params=pltpu.CompilerParams(
            dimension_semantics=("parallel", "parallel"),   # both axes megacore-safe
            vmem_limit_bytes=vmem_limit),
        cost_estimate=cost,
    )(feat_t, posn_t)

    if n_pad != n:
        out_cn = out_cn[:, :, :n]
    return out_cn.reshape(b, c, h, w)


def beltrami_i_forward(x, w_fc, b_fc, k, num_steps=4, tq=None):
    """BeltramiI.forward: integrate dx/dt = GNNI(x) over t in [0, 1]."""
    dt = 1.0 / num_steps

    def rhs(y):
        return gnni_forward(y, w_fc, b_fc, k, tq=tq)

    def step(y, _):
        k1 = rhs(y)
        k2 = rhs(y + 0.5 * dt * k1)
        k3 = rhs(y + 0.5 * dt * k2)
        k4 = rhs(y + dt * k3)
        return y + (dt / 6.0) * (k1 + 2.0 * k2 + 2.0 * k3 + k4), None

    y, _ = jax.lax.scan(step, x, xs=None, length=num_steps)
    return y


# ----------------------- pure-JAX reference (for checking) -----------------------

def gnni_reference(x, w_fc, b_fc, k):
    b, c, h, w = x.shape
    n = h * w
    xt = jnp.transpose(x.reshape(b, c, n), (0, 2, 1))           # (b, n, c)
    feat_pos = xt @ w_fc.T + b_fc                                # (b, n, 2c)
    feat = feat_pos[:, :, :c]
    pos = feat_pos[:, :, c:]
    nrm = jnp.sqrt(jnp.sum(pos * pos, axis=-1, keepdims=True))
    posn = pos / jnp.maximum(nrm, 1e-12)
    sim = posn @ jnp.swapaxes(posn, -1, -2)                      # (b, n, n)
    vals, ids = jax.lax.top_k(sim, k)
    topkfeat = jax.vmap(lambda f, i: f[i])(feat, ids.reshape(b, n * k))
    topkfeat = topkfeat.reshape(b, n, k, c)
    attn = jax.nn.softmax(vals, axis=-1)
    attn = attn.at[:, :, 0].add(-1.0)                            # attn - I
    out = jnp.sum(attn[..., None] * topkfeat, axis=-2)           # (b, n, c)
    out = out.reshape(b, h, w, c)
    return jnp.transpose(out, (0, 3, 1, 2))


def beltrami_i_reference(x, w_fc, b_fc, k, num_steps=4):
    dt = 1.0 / num_steps

    def rhs(y):
        return gnni_reference(y, w_fc, b_fc, k)

    y = x
    for _ in range(num_steps):
        k1 = rhs(y)
        k2 = rhs(y + 0.5 * dt * k1)
        k3 = rhs(y + 0.5 * dt * k2)
        k4 = rhs(y + dt * k3)
        y = y + (dt / 6.0) * (k1 + 2.0 * k2 + 2.0 * k3 + k4)
    return y


if __name__ == "__main__":
    key = jax.random.PRNGKey(0)
    kx, kw, kb = jax.random.split(key, 3)
    b, c, h, w = 2, 4, 16, 16
    k = 4            # BeltramiI(dim=c, k=4)
    num_steps = 4

    x = jax.random.normal(kx, (b, c, h, w), dtype=jnp.float32)
    w_fc = 0.3 * jax.random.normal(kw, (2 * c, c), dtype=jnp.float32)
    b_fc = 0.05 * jax.random.normal(kb, (2 * c,), dtype=jnp.float32)

    fwd = jax.jit(beltrami_i_forward, static_argnames=("k", "num_steps", "tq"))
    out = fwd(x, w_fc, b_fc, k=k, num_steps=num_steps)
    out = jax.block_until_ready(out)

    ref = beltrami_i_reference(x, w_fc, b_fc, k, num_steps=num_steps)
    assert out.shape == (b, c, h, w), out.shape
    err = float(jnp.max(jnp.abs(out - ref)))
    assert jnp.allclose(out, ref, atol=1e-4, rtol=1e-4), f"mismatch vs reference: {err}"

    print("KERNEL_OK")
</pallas_src>

<mosaic_0001>
module attributes {stable_mosaic.version = 11 : i64} {
  func.func @_gnni_attn_kernel(%arg0: i32, %arg1: i32, %arg2: memref<1x4x256xf32, #tpu.memory_space<vmem>>, %arg3: memref<1x4x256xf32, #tpu.memory_space<vmem>>, %arg4: memref<1x4x256xf32, #tpu.memory_space<vmem>>) attributes {dimension_semantics = [#tpu.dimension_semantics<parallel>, #tpu.dimension_semantics<parallel>], iteration_bounds = array<i64: 2, 1>, scalar_prefetch = 0 : i64, scratch_operands = 0 : i64, tpu.core_type = #tpu.core_type<tc>, window_params = [{transform_indices = @transform_0, window_bounds = array<i64: 1, 4, 256>}, {transform_indices = @transform_1, window_bounds = array<i64: 1, 4, 256>}, {transform_indices = @transform_2, window_bounds = array<i64: 1, 4, 256>}]} {
    %c0 = arith.constant 0 : index
    %c0_0 = arith.constant 0 : index
    %c0_1 = arith.constant 0 : index
    %0 = vector.load %arg2[%c0, %c0_0, %c0_1] : memref<1x4x256xf32, #tpu.memory_space<vmem>>, vector<1x4x256xf32>
    %1 = vector.shape_cast %0 : vector<1x4x256xf32> to vector<4x256xf32>
    %c0_2 = arith.constant 0 : index
    %c0_3 = arith.constant 0 : index
    %c0_4 = arith.constant 0 : index
    %2 = vector.load %arg3[%c0_2, %c0_3, %c0_4] : memref<1x4x256xf32, #tpu.memory_space<vmem>>, vector<1x4x256xf32>
    %3 = vector.shape_cast %2 : vector<1x4x256xf32> to vector<4x256xf32>
    %c256_i32 = arith.constant 256 : i32
    %4 = arith.muli %arg1, %c256_i32 : i32
    %5 = tpu.assume_multiple %4, 256 : i32
    %c0_5 = arith.constant 0 : index
    %c0_6 = arith.constant 0 : index
    %6 = arith.index_cast %5 : i32 to index
    %7 = vector.load %arg3[%c0_5, %c0_6, %6] : memref<1x4x256xf32, #tpu.memory_space<vmem>>, vector<1x4x256xf32>
    %8 = vector.shape_cast %7 : vector<1x4x256xf32> to vector<4x256xf32>
    %cst = arith.constant dense<0.000000e+00> : vector<256x256xf32>
    %9 = tpu.matmul %3, %8, %cst {dimension_numbers = #tpu.dot_dimension_numbers<[0], [0], [1], [1], [0, 1, 1, 1], [], []>} : vector<4x256xf32>, vector<4x256xf32>, vector<256x256xf32> -> vector<256x256xf32>
    %10 = tpu.iota {dimensions = array<i32: 0>} : vector<256x256xi32>
    %cst_7 = arith.constant 0.000000e+00 : f32
    %11 = vector.broadcast %cst_7 : f32 to vector<256x256xf32>
    %cst_8 = arith.constant 0.000000e+00 : f32
    %12 = vector.broadcast %cst_8 : f32 to vector<1x256xf32>
    %cst_9 = arith.constant dense<0xFF800000> : vector<256xf32>
    %13 = vector.multi_reduction <maximumf>, %9, %cst_9 [0] : vector<256x256xf32> to vector<256xf32>
    %14 = vector.shape_cast %13 : vector<256xf32> to vector<1x256xf32>
    %15 = vector.broadcast %14 : vector<1x256xf32> to vector<256x256xf32>
    %16 = arith.cmpf oeq, %9, %15 : vector<256x256xf32>
    %c256_i32_10 = arith.constant 256 : i32
    %17 = vector.broadcast %c256_i32_10 : i32 to vector<256x256xi32>
    %18 = arith.select %16, %10, %17 : vector<256x256xi1>, vector<256x256xi32>
    %cst_11 = arith.constant dense<2147483647> : vector<256xi32>
    %19 = vector.multi_reduction <minsi>, %18, %cst_11 [0] : vector<256x256xi32> to vector<256xi32>
    %20 = vector.shape_cast %19 : vector<256xi32> to vector<1x256xi32>
    %21 = vector.broadcast %20 : vector<1x256xi32> to vector<256x256xi32>
    %22 = arith.cmpi eq, %10, %21 : vector<256x256xi32>
    %23 = arith.subf %14, %14 : vector<1x256xf32>
    %24 = math.exp %23 : vector<1x256xf32>
    %25 = vector.broadcast %24 : vector<1x256xf32> to vector<256x256xf32>
    %26 = arith.addf %11, %25 : vector<256x256xf32>
    %27 = arith.select %22, %26, %11 : vector<256x256xi1>, vector<256x256xf32>
    %28 = arith.addf %12, %24 : vector<1x256xf32>
    %cst_12 = arith.constant 0xFF800000 : f32
    %29 = vector.broadcast %cst_12 : f32 to vector<256x256xf32>
    %30 = arith.select %22, %29, %9 : vector<256x256xi1>, vector<256x256xf32>
    %cst_13 = arith.constant dense<0xFF800000> : vector<256xf32>
    %31 = vector.multi_reduction <maximumf>, %30, %cst_13 [0] : vector<256x256xf32> to vector<256xf32>
    %32 = vector.shape_cast %31 : vector<256xf32> to vector<1x256xf32>
    %33 = vector.broadcast %32 : vector<1x256xf32> to vector<256x256xf32>
    %34 = arith.cmpf oeq, %30, %33 : vector<256x256xf32>
    %c256_i32_14 = arith.constant 256 : i32
    %35 = vector.broadcast %c256_i32_14 : i32 to vector<256x256xi32>
    %36 = arith.select %34, %10, %35 : vector<256x256xi1>, vector<256x256xi32>
    %cst_15 = arith.constant dense<2147483647> : vector<256xi32>
    %37 = vector.multi_reduction <minsi>, %36, %cst_15 [0] : vector<256x256xi32> to vector<256xi32>
    %38 = vector.shape_cast %37 : vector<256xi32> to vector<1x256xi32>
    %39 = vector.broadcast %38 : vector<1x256xi32> to vector<256x256xi32>
    %40 = arith.cmpi eq, %10, %39 : vector<256x256xi32>
    %41 = arith.subf %32, %14 : vector<1x256xf32>
    %42 = math.exp %41 : vector<1x256xf32>
    %43 = vector.broadcast %42 : vector<1x256xf32> to vector<256x256xf32>
    %44 = arith.addf %27, %43 : vector<256x256xf32>
    %45 = arith.select %40, %44, %27 : vector<256x256xi1>, vector<256x256xf32>
    %46 = arith.addf %28, %42 : vector<1x256xf32>
    %cst_16 = arith.constant 0xFF800000 : f32
    %47 = vector.broadcast %cst_16 : f32 to vector<256x256xf32>
    %48 = arith.select %40, %47, %30 : vector<256x256xi1>, vector<256x256xf32>
    %cst_17 = arith.constant dense<0xFF800000> : vector<256xf32>
    %49 = vector.multi_reduction <maximumf>, %48, %cst_17 [0] : vector<256x256xf32> to vector<256xf32>
    %50 = vector.shape_cast %49 : vector<256xf32> to vector<1x256xf32>
    %51 = vector.broadcast %50 : vector<1x256xf32> to vector<256x256xf32>
    %52 = arith.cmpf oeq, %48, %51 : vector<256x256xf32>
    %c256_i32_18 = arith.constant 256 : i32
    %53 = vector.broadcast %c256_i32_18 : i32 to vector<256x256xi32>
    %54 = arith.select %52, %10, %53 : vector<256x256xi1>, vector<256x256xi32>
    %cst_19 = arith.constant dense<2147483647> : vector<256xi32>
    %55 = vector.multi_reduction <minsi>, %54, %cst_19 [0] : vector<256x256xi32> to vector<256xi32>
    %56 = vector.shape_cast %55 : vector<256xi32> to vector<1x256xi32>
    %57 = vector.broadcast %56 : vector<1x256xi32> to vector<256x256xi32>
    %58 = arith.cmpi eq, %10, %57 : vector<256x256xi32>
    %59 = arith.subf %50, %14 : vector<1x256xf32>
    %60 = math.exp %59 : vector<1x256xf32>
    %61 = vector.broadcast %60 : vector<1x256xf32> to vector<256x256xf32>
    %62 = arith.addf %45, %61 : vector<256x256xf32>
    %63 = arith.select %58, %62, %45 : vector<256x256xi1>, vector<256x256xf32>
    %64 = arith.addf %46, %60 : vector<1x256xf32>
    %cst_20 = arith.constant 0xFF800000 : f32
    %65 = vector.broadcast %cst_20 : f32 to vector<256x256xf32>
    %66 = arith.select %58, %65, %48 : vector<256x256xi1>, vector<256x256xf32>
    %cst_21 = arith.constant dense<0xFF800000> : vector<256xf32>
    %67 = vector.multi_reduction <maximumf>, %66, %cst_21 [0] : vector<256x256xf32> to vector<256xf32>
    %68 = vector.shape_cast %67 : vector<256xf32> to vector<1x256xf32>
    %69 = vector.broadcast %68 : vector<1x256xf32> to vector<256x256xf32>
    %70 = arith.cmpf oeq, %66, %69 : vector<256x256xf32>
    %c256_i32_22 = arith.constant 256 : i32
    %71 = vector.broadcast %c256_i32_22 : i32 to vector<256x256xi32>
    %72 = arith.select %70, %10, %71 : vector<256x256xi1>, vector<256x256xi32>
    %cst_23 = arith.constant dense<2147483647> : vector<256xi32>
    %73 = vector.multi_reduction <minsi>, %72, %cst_23 [0] : vector<256x256xi32> to vector<256xi32>
    %74 = vector.shape_cast %73 : vector<256xi32> to vector<1x256xi32>
    %75 = vector.broadcast %74 : vector<1x256xi32> to vector<256x256xi32>
    %76 = arith.cmpi eq, %10, %75 : vector<256x256xi32>
    %77 = arith.subf %68, %14 : vector<1x256xf32>
    %78 = math.exp %77 : vector<1x256xf32>
    %79 = vector.broadcast %78 : vector<1x256xf32> to vector<256x256xf32>
    %80 = arith.addf %63, %79 : vector<256x256xf32>
    %81 = arith.select %76, %80, %63 : vector<256x256xi1>, vector<256x256xf32>
    %82 = arith.addf %64, %78 : vector<1x256xf32>
    %83 = tpu.reciprocal %82 {approx = true} : vector<1x256xf32> -> vector<1x256xf32>
    %84 = arith.mulf %82, %83 : vector<1x256xf32>
    %cst_24 = arith.constant 2.000000e+00 : f32
    %85 = vector.broadcast %cst_24 : f32 to vector<1x256xf32>
    %86 = arith.subf %85, %84 : vector<1x256xf32>
    %87 = arith.mulf %83, %86 : vector<1x256xf32>
    %88 = vector.broadcast %87 : vector<1x256xf32> to vector<256x256xf32>
    %89 = arith.mulf %81, %88 : vector<256x256xf32>
    %90 = vector.broadcast %20 : vector<1x256xi32> to vector<256x256xi32>
    %91 = arith.cmpi eq, %10, %90 : vector<256x256xi32>
    %cst_25 = arith.constant 1.000000e+00 : f32
    %92 = vector.broadcast %cst_25 : f32 to vector<256x256xf32>
    %93 = arith.subf %89, %92 : vector<256x256xf32>
    %94 = arith.select %91, %93, %89 : vector<256x256xi1>, vector<256x256xf32>
    %cst_26 = arith.constant dense<0.000000e+00> : vector<4x256xf32>
    %95 = tpu.matmul %1, %94, %cst_26 {dimension_numbers = #tpu.dot_dimension_numbers<[1], [0], [0], [1], [0, 0, 1, 1], [], []>} : vector<4x256xf32>, vector<256x256xf32>, vector<4x256xf32> -> vector<4x256xf32>
    %c0_27 = arith.constant 0 : index
    %c0_28 = arith.constant 0 : index
    %c0_29 = arith.constant 0 : index
    %96 = vector.load %arg4[%c0_27, %c0_28, %c0_29] : memref<1x4x256xf32, #tpu.memory_space<vmem>>, vector<1x4x256xf32>
    %97 = vector.shape_cast %96 : vector<1x4x256xf32> to vector<4x256xf32>
    %98 = vector.shape_cast %95 : vector<4x256xf32> to vector<1x4x256xf32>
    tpu.vector_store %arg4[%c0_27, %c0_28, %c0_29], %98 {strides = array<i32>} : memref<1x4x256xf32, #tpu.memory_space<vmem>>, vector<1x4x256xf32>,
    return
  }
  func.func @transform_0(%arg0: i32, %arg1: i32) -> (i32, i32, i32) {
    %c0_i32 = arith.constant 0 : i32
    %c0_i32_0 = arith.constant 0 : i32
    %c0_i32_1 = arith.constant 0 : i32
    return %arg0, %c0_i32, %c0_i32_0 : i32, i32, i32
  }
  func.func @transform_1(%arg0: i32, %arg1: i32) -> (i32, i32, i32) {
    %c0_i32 = arith.constant 0 : i32
    %c0_i32_0 = arith.constant 0 : i32
    %c0_i32_1 = arith.constant 0 : i32
    return %arg0, %c0_i32, %c0_i32_0 : i32, i32, i32
  }
  func.func @transform_2(%arg0: i32, %arg1: i32) -> (i32, i32, i32) {
    %c0_i32 = arith.constant 0 : i32
    %c0_i32_0 = arith.constant 0 : i32
    return %arg0, %c0_i32, %arg1 : i32, i32, i32
  }
}

</mosaic_0001>

<llo_original>
// kernel: closed_call.13
$region0: #{closed_call.13}
  #allocation0 [shape = 'u32[]', space=smem, size = 0x4, offset = 0x4, fixed_abs, tag = 'smem constant byte address 0x4 - core index']
  #allocation1 [shape = 'u32[144,128]{1,0:T(1,128)}', space=vmem, size = 0x12000, scoped, tag = 'internal scratch']
  %s0 = inlined_call_operand.vmem [shape: f32[2,4,256], index: 0, kind: input, shape index: {}]
  %s1 = inlined_call_operand.vmem [shape: f32[2,4,256], index: 1, kind: input, shape index: {}]
  %s2 = inlined_call_operand.vmem [shape: f32[2,4,256], index: 2, kind: output, shape index: {}]
  %s3 = sld [smem:[#allocation0]]
  $region41: #{closed_call.13} parent=0
    _
  %s5 = ssub.s32 1, %s3
  %s6 = scalar_select 0, %s5, %s3
  loop: start=0, step=1, limit=4
  $region2: #{closed_call.13} parent=0 // loop_pre_header
    _
  $region3: #{closed_call.13} parent=0 // loop_header
    %s8 = sphi 0, %s12
    %p9 = scmp.ge.s32.totalorder %s8, 4
    %s15 = sphi 0, %s27
    %s16 = sphi 0, %s23
    %s17 = sphi 0, %s15
    %s18 = sphi 0, %s16
    %s19 = sphi 0, %s17
    %s20 = sphi 0, %s18
    %s30 = sphi 0, %s32
    %s33 = sphi 0, %s30
    %s34 = sphi 0, %s33
    %s50 = sphi 0, %s34
    %s56 = sphi 0, %s58
    %s59 = sphi 0, %s56
    %s60 = sphi 0, %s59
    %s76 = sphi 0, %s60
    %s84 = sphi 0, %s86
    %s87 = sphi 0, %s84
    %s88 = sphi 0, %s87
    %s104 = sphi 0, %s88
  $region4: #{closed_call.13} parent=0 // loop_header_branch
    %11 = sbr.rel (%p9) target = $region8
  $region5: #{closed_call.13} parent=0 // loop_body
    %s13 = ssub.s32 %s8, 1
    %s14 = ssub.s32 %s8, 2
    %s21 = sadd.s32 1, %s16
    %p22 = scmp.ge.s32.totalorder %s21, 1
    %s23 = scalar_select %p22, 0, %s21
    %s24 = sadd.s32 1, %s15
    %s25 = scalar_select %p22, %s24, %s15
    %p26 = scmp.ge.s32.totalorder %s25, 2
    %s27 = scalar_select %p26, 0, %s25
    %s28 = ssub.s32 %s15, %s27
    %p29 = scmp.eq.s32.totalorder %s28, 0
    %s31 = sadd.s32 %s30, 1
    %s32 = scalar_select %p29, %s30, %s31
    %p35 = pneg %p29
    %p36 = scmp.eq.s32.totalorder %s8, 1
    %p37 = por %p35, %p36
    %p38 = scmp.ne.s32.totalorder %s30, %s33
    %p39 = scmp.eq.s32.totalorder %s8, 0
    %p40 = por %p38, %p39
    %p41 = scmp.ne.s32.totalorder %s30, %s33
    %p42 = scmp.eq.s32.totalorder %s13, 1
    %p43 = por %p41, %p42
    %p44 = scmp.ne.s32.totalorder %s33, %s34
    %p45 = scmp.eq.s32.totalorder %s13, 0
    %p46 = por %p44, %p45
    %p47 = scmp.ne.s32.totalorder %s33, %s34
    %p48 = scmp.eq.s32.totalorder %s14, 1
    %p49 = por %p47, %p48
    %p51 = scmp.ne.s32.totalorder %s34, %s50
    %p52 = scmp.eq.s32.totalorder %s14, 0
    %p53 = por %p51, %p52
    %s54 = ssub.s32 %s15, %s27
    %p55 = scmp.eq.s32.totalorder %s54, 0
    %s57 = sadd.s32 %s56, 1
    %s58 = scalar_select %p55, %s56, %s57
    %p61 = pneg %p55
    %p62 = scmp.eq.s32.totalorder %s8, 1
    %p63 = por %p61, %p62
    %p64 = scmp.ne.s32.totalorder %s56, %s59
    %p65 = scmp.eq.s32.totalorder %s8, 0
    %p66 = por %p64, %p65
    %p67 = scmp.ne.s32.totalorder %s56, %s59
    %p68 = scmp.eq.s32.totalorder %s13, 1
    %p69 = por %p67, %p68
    %p70 = scmp.ne.s32.totalorder %s59, %s60
    %p71 = scmp.eq.s32.totalorder %s13, 0
    %p72 = por %p70, %p71
    %p73 = scmp.ne.s32.totalorder %s59, %s60
    %p74 = scmp.eq.s32.totalorder %s14, 1
    %p75 = por %p73, %p74
    %p77 = scmp.ne.s32.totalorder %s60, %s76
    %p78 = scmp.eq.s32.totalorder %s14, 0
    %p79 = por %p77, %p78
    %s80 = ssub.s32 %s15, %s27
    %s81 = ssub.s32 %s16, %s23
    %s82 = sor.u32 %s80, %s81
    %p83 = scmp.eq.s32.totalorder %s82, 0
    %s85 = sadd.s32 %s84, 1
    %s86 = scalar_select %p83, %s84, %s85
    %p89 = pneg %p83
    %p90 = scmp.eq.s32.totalorder %s8, 1
    %p91 = por %p89, %p90
    %p92 = scmp.ne.s32.totalorder %s84, %s87
    %p93 = scmp.eq.s32.totalorder %s8, 0
    %p94 = por %p92, %p93
    %p95 = scmp.ne.s32.totalorder %s84, %s87
    %p96 = scmp.eq.s32.totalorder %s13, 1
    %p97 = por %p95, %p96
    %p98 = scmp.ne.s32.totalorder %s87, %s88
    %p99 = scmp.eq.s32.totalorder %s13, 0
    %p100 = por %p98, %p99
    %p101 = scmp.ne.s32.totalorder %s87, %s88
    %p102 = scmp.eq.s32.totalorder %s14, 1
    %p103 = por %p101, %p102
    %p105 = scmp.ne.s32.totalorder %s88, %s104
    %p106 = scmp.eq.s32.totalorder %s14, 0
    %p107 = por %p105, %p106
    %p108 = scmp.le.s32.totalorder 1, %s8
    %p109 = scmp.lt.s32.totalorder %s8, 3
    %p110 = pnand %p108, %p109
    %p111 = pneg %p110
    // Predicated region
    $region9: #{closed_call.13} parent=5 // pred_check
      _
    $region10: #{closed_call.13} parent=5 // pred_check_branch
      %113 = sbr.rel (%p110) target = $region12
    $region11: #{closed_call.13} parent=5 // pred_region
      %s114 = ssub.s32 %s8, 1
    $region12: #{closed_call.13} parent=5 // pred_fallthru
      _
    %p115 = scmp.lt.s32.totalorder %s8, 2
    // Predicated region
    $region13: #{closed_call.13} parent=5 // pred_check
      %p116 = pneg %p115
    $region14: #{closed_call.13} parent=5 // pred_check_branch
      %118 = sbr.rel (%p116) target = $region16
    $region15: #{closed_call.13} parent=5 // pred_region
      // Predicated region
      $region17: #{closed_call.13} parent=15 // pred_check
        %p119 = pneg %p40
      $region18: #{closed_call.13} parent=15 // pred_check_branch
        %121 = sbr.rel (%p119) target = $region20
      $region19: #{closed_call.13} parent=15 // pred_region
        %p122 = scmp.lt.s32.totalorder %s15, 1
        %s123 = scalar_select %p122, %s15, 1
        %s124 = smul.addr %s123, 2
        %s125 = smul.addr %s124, 4
        %s126 = scalar_lea.vmem %s0, %s125
      $region20: #{closed_call.13} parent=15 // pred_fallthru
        _
      // Predicated region
      $region21: #{closed_call.13} parent=15 // pred_check
        %p127 = pneg %p66
      $region22: #{closed_call.13} parent=15 // pred_check_branch
        %129 = sbr.rel (%p127) target = $region24
      $region23: #{closed_call.13} parent=15 // pred_region
        %p130 = scmp.lt.s32.totalorder %s15, 1
        %s131 = scalar_select %p130, %s15, 1
        %s132 = smul.addr %s131, 2
        %s133 = smul.addr %s132, 4
        %s134 = scalar_lea.vmem %s1, %s133
      $region24: #{closed_call.13} parent=15 // pred_fallthru
        _
    $region16: #{closed_call.13} parent=5 // pred_fallthru
      _
    %p135 = scmp.le.s32.totalorder 1, %s8
    %p136 = scmp.lt.s32.totalorder %s8, 3
    %p137 = pnand %p135, %p136
    %p138 = pneg %p137
    // Predicated region
    $region25: #{closed_call.13} parent=5 // pred_check
      _
    $region26: #{closed_call.13} parent=5 // pred_check_branch
      %140 = sbr.rel (%p137) target = $region28
    $region27: #{closed_call.13} parent=5 // pred_region
      %s141 = ssub.s32 %s8, 1
      %p142 = scmp.lt.s32.totalorder %s17, 1
      %s143 = scalar_select %p142, %s17, 1
      %s144 = smul.addr %s143, 2
      %s145 = smul.addr %s144, 4
      %s146 = scalar_lea.vmem %s0, %s145
      %p147 = pneg %p46
      %p148 = pneg %p43
      %p149 = scmp.lt.s32.totalorder %s17, 1
      %s150 = scalar_select %p149, %s17, 1
      %s151 = smul.addr %s150, 2
      %s152 = smul.addr %s151, 4
      %s153 = scalar_lea.vmem %s1, %s152
      %p154 = pneg %p72
      %p155 = pneg %p69
      %p156 = pneg %p100
      %p157 = pneg %p97
      %s158 = smul.u32 2, %s18
      %p159 = scmp.lt.s32.totalorder %s17, 1
      %s160 = scalar_select %p159, %s17, 1
      %p161 = scmp.lt.s32.totalorder %s158, 1
      %s162 = scalar_select %p161, %s158, 1
      %s163 = smul.addr %s160, 2
      %s164 = sadd.s32 %s162, %s163
      %s165 = smul.addr %s164, 4
      %s166 = scalar_lea.vmem %s2, %s165
      %p167 = scmp.lt.s32.totalorder %s17, 1
      %s168 = scalar_select %p167, %s17, 1
      %s169 = smul.addr %s168, 2
      %s170 = smul.addr %s169, 4
      %s171 = scalar_lea.vmem %s0, %s170
      %p172 = scmp.lt.s32.totalorder %s17, 1
      %s173 = scalar_select %p172, %s17, 1
      %s174 = smul.addr %s173, 2
      %s175 = smul.addr %s174, 4
      %s176 = scalar_lea.vmem %s1, %s175
      %s177 = smul.u32 2, %s18
      %p178 = scmp.lt.s32.totalorder %s17, 1
      %s179 = scalar_select %p178, %s17, 1
      %p180 = scmp.lt.s32.totalorder %s177, 1
      %s181 = scalar_select %p180, %s177, 1
      %s182 = smul.addr %s179, 2
      %s183 = sadd.s32 %s181, %s182
      %s184 = smul.addr %s183, 4
      %s185 = scalar_lea.vmem %s2, %s184
      %s186 = smul.u32 2, %s18
      %v187 = vld [vmem:[%s171] sm:$0xff]
      %v188 = vld [vmem:[%s176] sm:$0xff]
      %s189 = smul.u32 %s18, 256
      %s190 = sshra.s32 %s189, 7
      %s191 = sand.u32 %s189, 127
      %s192 = smul.addr %s190, 4
      %s193 = scalar_lea.vmem %s176, %s192
      %v194 = vld [vmem:[%s193] sm:$0xff]
      %v196 = vcombine.high %v188, %v188
      %198 = vxpose.xlu0.b32.start [1/16] %v188, 128
      %199 = vxpose.xlu0.b32.cont [2/16] 0.0, 128
      %200 = vxpose.xlu0.b32.cont [3/16] 0.0, 128
      %201 = vxpose.xlu0.b32.cont [4/16] 0.0, 128
      %202 = vxpose.xlu0.b32.cont [5/16] 0.0, 128
      %203 = vxpose.xlu0.b32.cont [6/16] 0.0, 128
      %204 = vxpose.xlu0.b32.cont [7/16] 0.0, 128
      %205 = vxpose.xlu0.b32.cont [8/16] 0.0, 128
      %206 = vxpose.xlu0.b32.cont [9/16] 0.0, 128
      %207 = vxpose.xlu0.b32.cont [10/16] 0.0, 128
      %208 = vxpose.xlu0.b32.cont [11/16] 0.0, 128
      %209 = vxpose.xlu0.b32.cont [12/16] 0.0, 128
      %210 = vxpose.xlu0.b32.cont [13/16] 0.0, 128
      %211 = vxpose.xlu0.b32.cont [14/16] 0.0, 128
      %212 = vxpose.xlu0.b32.cont [15/16] 0.0, 128
      %213 = vxpose.xlu0.b32.end [16/16] 0.0, 128
      %v214 = vpop.trf.xlu0
      %v215 = vpop.trf.xlu0
      %v216 = vpop.trf.xlu0
      %v217 = vpop.trf.xlu0
      %v218 = vpop.trf.xlu0
      %v219 = vpop.trf.xlu0
      %v220 = vpop.trf.xlu0
      %v221 = vpop.trf.xlu0
      %v222 = vpop.trf.xlu0
      %v223 = vpop.trf.xlu0
      %v224 = vpop.trf.xlu0
      %v225 = vpop.trf.xlu0
      %v226 = vpop.trf.xlu0
      %v227 = vpop.trf.xlu0
      %v228 = vpop.trf.xlu0
      %v229 = vpop.trf.xlu0
      %230 = vxpose.xlu0.b32.start [1/16] %v196, 128
      %231 = vxpose.xlu0.b32.cont [2/16] 0.0, 128
      %232 = vxpose.xlu0.b32.cont [3/16] 0.0, 128
      %233 = vxpose.xlu0.b32.cont [4/16] 0.0, 128
      %234 = vxpose.xlu0.b32.cont [5/16] 0.0, 128
      %235 = vxpose.xlu0.b32.cont [6/16] 0.0, 128
      %236 = vxpose.xlu0.b32.cont [7/16] 0.0, 128
      %237 = vxpose.xlu0.b32.cont [8/16] 0.0, 128
      %238 = vxpose.xlu0.b32.cont [9/16] 0.0, 128
      %239 = vxpose.xlu0.b32.cont [10/16] 0.0, 128
      %240 = vxpose.xlu0.b32.cont [11/16] 0.0, 128
      %241 = vxpose.xlu0.b32.cont [12/16] 0.0, 128
      %242 = vxpose.xlu0.b32.cont [13/16] 0.0, 128
      %243 = vxpose.xlu0.b32.cont [14/16] 0.0, 128
      %244 = vxpose.xlu0.b32.cont [15/16] 0.0, 128
      %245 = vxpose.xlu0.b32.end [16/16] 0.0, 128
      %v246 = vpop.trf.xlu0
      %v247 = vpop.trf.xlu0
      %v248 = vpop.trf.xlu0
      %v249 = vpop.trf.xlu0
      %v250 = vpop.trf.xlu0
      %v251 = vpop.trf.xlu0
      %v252 = vpop.trf.xlu0
      %v253 = vpop.trf.xlu0
      %v254 = vpop.trf.xlu0
      %v255 = vpop.trf.xlu0
      %v256 = vpop.trf.xlu0
      %v257 = vpop.trf.xlu0
      %v258 = vpop.trf.xlu0
      %v259 = vpop.trf.xlu0
      %v260 = vpop.trf.xlu0
      %v261 = vpop.trf.xlu0
      %v263 = vcombine.high %v194, %v194
      %vm264 = vcmask 31744
      %v266 = vsel %vm264, %v214, 0
      %v269 = vsel %vm264, %v215, 0
      %v272 = vsel %vm264, %v216, 0
      %v275 = vsel %vm264, %v217, 0
      %v278 = vsel %vm264, %v218, 0
      %v281 = vsel %vm264, %v219, 0
      %v284 = vsel %vm264, %v220, 0
      %v287 = vsel %vm264, %v221, 0
      %v290 = vsel %vm264, %v222, 0
      %v293 = vsel %vm264, %v223, 0
      %v296 = vsel %vm264, %v224, 0
      %v299 = vsel %vm264, %v225, 0
      %v302 = vsel %vm264, %v226, 0
      %v305 = vsel %vm264, %v227, 0
      %v308 = vsel %vm264, %v228, 0
      %v311 = vsel %vm264, %v229, 0
      %v314 = vsel %vm264, %v246, 0
      %v317 = vsel %vm264, %v247, 0
      %v320 = vsel %vm264, %v248, 0
      %v323 = vsel %vm264, %v249, 0
      %v326 = vsel %vm264, %v250, 0
      %v329 = vsel %vm264, %v251, 0
      %v332 = vsel %vm264, %v252, 0
      %v335 = vsel %vm264, %v253, 0
      %v338 = vsel %vm264, %v254, 0
      %v341 = vsel %vm264, %v255, 0
      %v344 = vsel %vm264, %v256, 0
      %v347 = vsel %vm264, %v257, 0
      %v350 = vsel %vm264, %v258, 0
      %v353 = vsel %vm264, %v259, 0
      %v356 = vsel %vm264, %v260, 0
      %v359 = vsel %vm264, %v261, 0
      %vm361 = vcmask 1043456
      %v362 = vsel %vm361, %v194, 0
      %v364 = vsel %vm361, %v263, 0
      %366 = vmatprep.subr.mxu0 %v364
      %367 = vmatpush1.msra.mxu0 %v362
      %368 = vmatprep.subr.mxu0 0.0
      %369 = vmatpush1.msra.mxu0 0.0
      %370 = vmatprep.subr.mxu0 0.0
      %371 = vmatpush1.msra.mxu0 0.0
      %372 = vmatprep.subr.mxu0 0.0
      %373 = vmatpush1.msra.mxu0 0.0
      %374 = vmatprep.subr.mxu0 0.0
      %375 = vmatpush1.msra.mxu0 0.0
      %376 = vmatprep.subr.mxu0 0.0
      %377 = vmatpush1.msra.mxu0 0.0
      %378 = vmatprep.subr.mxu0 0.0
      %379 = vmatpush1.msra.mxu0 0.0
      %380 = vmatprep.subr.mxu0 0.0
      %381 = vmatpush1.msra.mxu0 0.0
      %382 = vmatprep.subr.mxu0 0.0
      %383 = vmatpush1.msra.mxu0 0.0
      %384 = vmatprep.subr.mxu0 0.0
      %385 = vmatpush1.msra.mxu0 0.0
      %386 = vmatprep.subr.mxu0 0.0
      %387 = vmatpush1.msra.mxu0 0.0
      %388 = vmatprep.subr.mxu0 0.0
      %389 = vmatpush1.msra.mxu0 0.0
      %390 = vmatprep.subr.mxu0 0.0
      %391 = vmatpush1.msra.mxu0 0.0
      %392 = vmatprep.subr.mxu0 0.0
      %393 = vmatpush1.msra.mxu0 0.0
      %394 = vmatprep.subr.mxu0 0.0
      %395 = vmatpush1.msra.mxu0 0.0
      %396 = vmatprep.subr.mxu0 0.0
      %397 = vmatpush1.msra.mxu0 0.0
      %398 = vmatprep.subr.mxu0 0.0
      %399 = vmatpush1.msra.mxu0 0.0
      %400 = vmatprep.subr.mxu0 0.0
      %401 = vmatpush1.msra.mxu0 0.0
      %402 = vmatprep.subr.mxu0 0.0
      %403 = vmatpush1.msra.mxu0 0.0
      %404 = vmatprep.subr.mxu0 0.0
      %405 = vmatpush1.msra.mxu0 0.0
      %406 = vmatprep.subr.mxu0 0.0
      %407 = vmatpush1.msra.mxu0 0.0
      %408 = vmatprep.subr.mxu0 0.0
      %409 = vmatpush1.msra.mxu0 0.0
      %410 = vmatprep.subr.mxu0 0.0
      %411 = vmatpush1.msra.mxu0 0.0
      %412 = vmatprep.subr.mxu0 0.0
      %413 = vmatpush1.msra.mxu0 0.0
      %414 = vmatprep.subr.mxu0 0.0
      %415 = vmatpush1.msra.mxu0 0.0
      %416 = vmatprep.subr.mxu0 0.0
      %417 = vmatpush1.msra.mxu0 0.0
      %418 = vmatprep.subr.mxu0 0.0
      %419 = vmatpush1.msra.mxu0 0.0
      %420 = vmatprep.subr.mxu0 0.0
      %421 = vmatpush1.msra.mxu0 0.0
      %422 = vmatprep.subr.mxu0 0.0
      %423 = vmatpush1.msra.mxu0 0.0
      %424 = vmatprep.subr.mxu0 0.0
      %425 = vmatpush1.msra.mxu0 0.0
      %426 = vmatprep.subr.mxu0 0.0
      %427 = vmatpush1.msra.mxu0 0.0
      %428 = vmatprep.subr.mxu0 0.0
      %429 = vmatpush1.msra.mxu0 0.0
      %430 = vmatprep.mubr.f32.mxu0 0.0
      %431 = vmatmul.mubr.f32.gmra.mrb[0].mxu0 %v266
      %v432 = vpop.f32.mrb[0].mxu0
      %v433 = vadd.f32 0.0, %v432
      %v434 = vpop.f32.mrb[0].mxu0
      %v435 = vadd.f32 0.0, %v434
      %436 = vmatprep.mubr.f32.mxu0 0.0
      %437 = vmatmul.mubr.f32.gmra.mrb[0].mxu0 %v269
      %v438 = vpop.f32.mrb[0].mxu0
      %v439 = vadd.f32 0.0, %v438
      %v440 = vpop.f32.mrb[0].mxu0
      %v441 = vadd.f32 0.0, %v440
      %442 = vmatprep.mubr.f32.mxu0 0.0
      %443 = vmatmul.mubr.f32.gmra.mrb[0].mxu0 %v272
      %v444 = vpop.f32.mrb[0].mxu0
      %v445 = vadd.f32 0.0, %v444
      %v446 = vpop.f32.mrb[0].mxu0
      %v447 = vadd.f32 0.0, %v446
      %448 = vmatprep.mubr.f32.mxu0 0.0
      %449 = vmatmul.mubr.f32.gmra.mrb[0].mxu0 %v275
      %v450 = vpop.f32.mrb[0].mxu0
      %v451 = vadd.f32 0.0, %v450
      %v452 = vpop.f32.mrb[0].mxu0
      %v453 = vadd.f32 0.0, %v452
      %454 = vmatprep.mubr.f32.mxu0 0.0
      %455 = vmatmul.mubr.f32.gmra.mrb[0].mxu0 %v278
      %v456 = vpop.f32.mrb[0].mxu0
      %v457 = vadd.f32 0.0, %v456
      %v458 = vpop.f32.mrb[0].mxu0
      %v459 = vadd.f32 0.0, %v458
      %460 = vmatprep.mubr.f32.mxu0 0.0
      %461 = vmatmul.mubr.f32.gmra.mrb[0].mxu0 %v281
      %v462 = vpop.f32.mrb[0].mxu0
      %v463 = vadd.f32 0.0, %v462
      %v464 = vpop.f32.mrb[0].mxu0
      %v465 = vadd.f32 0.0, %v464
      %466 = vmatprep.mubr.f32.mxu0 0.0
      %467 = vmatmul.mubr.f32.gmra.mrb[0].mxu0 %v284
      %v468 = vpop.f32.mrb[0].mxu0
      %v469 = vadd.f32 0.0, %v468
      %v470 = vpop.f32.mrb[0].mxu0
      %v471 = vadd.f32 0.0, %v470
      %472 = vmatprep.mubr.f32.mxu0 0.0
      %473 = vmatmul.mubr.f32.gmra.mrb[0].mxu0 %v287
      %v474 = vpop.f32.mrb[0].mxu0
      %v475 = vadd.f32 0.0, %v474
      %v476 = vpop.f32.mrb[0].mxu0
      %v477 = vadd.f32 0.0, %v476
      %478 = vmatprep.mubr.f32.mxu0 0.0
      %479 = vmatmul.mubr.f32.gmra.mrb[0].mxu0 %v290
      %v480 = vpop.f32.mrb[0].mxu0
      %v481 = vadd.f32 0.0, %v480
      %v482 = vpop.f32.mrb[0].mxu0
      %v483 = vadd.f32 0.0, %v482
      %484 = vmatprep.mubr.f32.mxu0 0.0
      %485 = vmatmul.mubr.f32.gmra.mrb[0].mxu0 %v293
      %v486 = vpop.f32.mrb[0].mxu0
      %v487 = vadd.f32 0.0, %v486
      %v488 = vpop.f32.mrb[0].mxu0
      %v489 = vadd.f32 0.0, %v488
      %490 = vmatprep.mubr.f32.mxu0 0.0
      %491 = vmatmul.mubr.f32.gmra.mrb[0].mxu0 %v296
      %v492 = vpop.f32.mrb[0].mxu0
      %v493 = vadd.f32 0.0, %v492
      %v494 = vpop.f32.mrb[0].mxu0
      %v495 = vadd.f32 0.0, %v494
      %496 = vmatprep.mubr.f32.mxu0 0.0
      %497 = vmatmul.mubr.f32.gmra.mrb[0].mxu0 %v299
      %v498 = vpop.f32.mrb[0].mxu0
      %v499 = vadd.f32 0.0, %v498
      %v500 = vpop.f32.mrb[0].mxu0
      %v501 = vadd.f32 0.0, %v500
      %502 = vmatprep.mubr.f32.mxu0 0.0
      %503 = vmatmul.mubr.f32.gmra.mrb[0].mxu0 %v302
      %v504 = vpop.f32.mrb[0].mxu0
      %v505 = vadd.f32 0.0, %v504
      %v506 = vpop.f32.mrb[0].mxu0
      %v507 = vadd.f32 0.0, %v506
      %508 = vmatprep.mubr.f32.mxu0 0.0
      %509 = vmatmul.mubr.f32.gmra.mrb[0].mxu0 %v305
      %v510 = vpop.f32.mrb[0].mxu0
      %v511 = vadd.f32 0.0, %v510
      %v512 = vpop.f32.mrb[0].mxu0
      %v513 = vadd.f32 0.0, %v512
      %514 = vmatprep.mubr.f32.mxu0 0.0
      %515 = vmatmul.mubr.f32.gmra.mrb[0].mxu0 %v308
      %v516 = vpop.f32.mrb[0].mxu0
      %v517 = vadd.f32 0.0, %v516
      %v518 = vpop.f32.mrb[0].mxu0
      %v519 = vadd.f32 0.0, %v518
      %520 = vmatprep.mubr.f32.mxu0 0.0
      %521 = vmatmul.mubr.f32.gmra.mrb[0].mxu0 %v311
      %v522 = vpop.f32.mrb[0].mxu0
      %v523 = vadd.f32 0.0, %v522
      %v524 = vpop.f32.mrb[0].mxu0
      %v525 = vadd.f32 0.0, %v524
      %526 = vmatprep.mubr.f32.mxu0 0.0
      %527 = vmatmul.mubr.f32.gmra.mrb[0].mxu0 %v314
      %v528 = vpop.f32.mrb[0].mxu0
      %v529 = vadd.f32 0.0, %v528
      %v530 = vpop.f32.mrb[0].mxu0
      %v531 = vadd.f32 0.0, %v530
      %532 = vmatprep.mubr.f32.mxu0 0.0
      %533 = vmatmul.mubr.f32.gmra.mrb[0].mxu0 %v317
      %v534 = vpop.f32.mrb[0].mxu0
      %v535 = vadd.f32 0.0, %v534
      %v536 = vpop.f32.mrb[0].mxu0
      %v537 = vadd.f32 0.0, %v536
      %538 = vmatprep.mubr.f32.mxu0 0.0
      %539 = vmatmul.mubr.f32.gmra.mrb[0].mxu0 %v320
      %v540 = vpop.f32.mrb[0].mxu0
      %v541 = vadd.f32 0.0, %v540
      %v542 = vpop.f32.mrb[0].mxu0
      %v543 = vadd.f32 0.0, %v542
      %544 = vmatprep.mubr.f32.mxu0 0.0
      %545 = vmatmul.mubr.f32.gmra.mrb[0].mxu0 %v323
      %v546 = vpop.f32.mrb[0].mxu0
      %v547 = vadd.f32 0.0, %v546
      %v548 = vpop.f32.mrb[0].mxu0
      %v549 = vadd.f32 0.0, %v548
      %550 = vmatprep.mubr.f32.mxu0 0.0
      %551 = vmatmul.mubr.f32.gmra.mrb[0].mxu0 %v326
      %v552 = vpop.f32.mrb[0].mxu0
      %v553 = vadd.f32 0.0, %v552
      %v554 = vpop.f32.mrb[0].mxu0
      %v555 = vadd.f32 0.0, %v554
      %556 = vmatprep.mubr.f32.mxu0 0.0
      %557 = vmatmul.mubr.f32.gmra.mrb[0].mxu0 %v329
      %v558 = vpop.f32.mrb[0].mxu0
      %v559 = vadd.f32 0.0, %v558
      %v560 = vpop.f32.mrb[0].mxu0
      %v561 = vadd.f32 0.0, %v560
      %562 = vmatprep.mubr.f32.mxu0 0.0
      %563 = vmatmul.mubr.f32.gmra.mrb[0].mxu0 %v332
      %v564 = vpop.f32.mrb[0].mxu0
      %v565 = vadd.f32 0.0, %v564
      %v566 = vpop.f32.mrb[0].mxu0
      %v567 = vadd.f32 0.0, %v566
      %568 = vmatprep.mubr.f32.mxu0 0.0
      %569 = vmatmul.mubr.f32.gmra.mrb[0].mxu0 %v335
      %v570 = vpop.f32.mrb[0].mxu0
      %v571 = vadd.f32 0.0, %v570
      %v572 = vpop.f32.mrb[0].mxu0
      %v573 = vadd.f32 0.0, %v572
      %574 = vmatprep.mubr.f32.mxu0 0.0
      %575 = vmatmul.mubr.f32.gmra.mrb[0].mxu0 %v338
      %v576 = vpop.f32.mrb[0].mxu0
      %v577 = vadd.f32 0.0, %v576
      %v578 = vpop.f32.mrb[0].mxu0
      %v579 = vadd.f32 0.0, %v578
      %580 = vmatprep.mubr.f32.mxu0 0.0
      %581 = vmatmul.mubr.f32.gmra.mrb[0].mxu0 %v341
      %v582 = vpop.f32.mrb[0].mxu0
      %v583 = vadd.f32 0.0, %v582
      %v584 = vpop.f32.mrb[0].mxu0
      %v585 = vadd.f32 0.0, %v584
      %586 = vmatprep.mubr.f32.mxu0 0.0
      %587 = vmatmul.mubr.f32.gmra.mrb[0].mxu0 %v344
      %v588 = vpop.f32.mrb[0].mxu0
      %v589 = vadd.f32 0.0, %v588
      %v590 = vpop.f32.mrb[0].mxu0
      %v591 = vadd.f32 0.0, %v590
      %592 = vmatprep.mubr.f32.mxu0 0.0
      %593 = vmatmul.mubr.f32.gmra.mrb[0].mxu0 %v347
      %v594 = vpop.f32.mrb[0].mxu0
      %v595 = vadd.f32 0.0, %v594
      %v596 = vpop.f32.mrb[0].mxu0
      %v597 = vadd.f32 0.0, %v596
      %598 = vmatprep.mubr.f32.mxu0 0.0
      %599 = vmatmul.mubr.f32.gmra.mrb[0].mxu0 %v350
      %v600 = vpop.f32.mrb[0].mxu0
      %v601 = vadd.f32 0.0, %v600
      %v602 = vpop.f32.mrb[0].mxu0
      %v603 = vadd.f32 0.0, %v602
      %604 = vmatprep.mubr.f32.mxu0 0.0
      %605 = vmatmul.mubr.f32.gmra.mrb[0].mxu0 %v353
      %v606 = vpop.f32.mrb[0].mxu0
      %v607 = vadd.f32 0.0, %v606
      %v608 = vpop.f32.mrb[0].mxu0
      %v609 = vadd.f32 0.0, %v608
      %610 = vmatprep.mubr.f32.mxu0 0.0
      %611 = vmatmul.mubr.f32.gmra.mrb[0].mxu0 %v356
      %v612 = vpop.f32.mrb[0].mxu0
      %v613 = vadd.f32 0.0, %v612
      %v614 = vpop.f32.mrb[0].mxu0
      %v615 = vadd.f32 0.0, %v614
      %616 = vmatprep.mubr.f32.mxu0 0.0
      %617 = vmatmul.mubr.f32.gmra.mrb[0].mxu0 %v359
      %v618 = vpop.f32.mrb[0].mxu0
      %v619 = vadd.f32 0.0, %v618
      %v620 = vpop.f32.mrb[0].mxu0
      %v621 = vadd.f32 0.0, %v620
      %622 = vdwg.mxu0
      %v623 = vlaneseq
      %v624 = vshrl.u32 %v623, 7
      %v625 = vadd.s32 %v624, 8
      %v626 = vadd.s32 %v624, 16
      %v627 = vadd.s32 %v624, 24
      %v628 = vadd.s32 %v624, 32
      %v629 = vadd.s32 %v624, 40
      %v630 = vadd.s32 %v624, 48
      %v631 = vadd.s32 %v624, 56
      %v632 = vadd.s32 %v624, 64
      %v633 = vadd.s32 %v624, 72
      %v634 = vadd.s32 %v624, 80
      %v635 = vadd.s32 %v624, 88
      %v636 = vadd.s32 %v624, 96
      %v637 = vadd.s32 %v624, 104
      %v638 = vadd.s32 %v624, 112
      %v639 = vadd.s32 %v624, 120
      %v640 = vadd.s32 %v624, 128
      %v641 = vadd.s32 %v624, 136
      %v642 = vadd.s32 %v624, 144
      %v643 = vadd.s32 %v624, 152
      %v644 = vadd.s32 %v624, 160
      %v645 = vadd.s32 %v624, 168
      %v646 = vadd.s32 %v624, 176
      %v647 = vadd.s32 %v624, 184
      %v648 = vadd.s32 %v624, 192
      %v649 = vadd.s32 %v624, 200
      %v650 = vadd.s32 %v624, 208
      %v651 = vadd.s32 %v624, 216
      %v652 = vadd.s32 %v624, 224
      %v653 = vadd.s32 %v624, 232
      %v654 = vadd.s32 %v624, 240
      %v655 = vadd.s32 %v624, 248
      %v656 = vmax.f32 %v433, %v445
      %v657 = vmax.f32 %v439, %v451
      %v658 = vmax.f32 %v656, %v457
      %v659 = vmax.f32 %v657, %v463
      %v660 = vmax.f32 %v658, %v469
      %v661 = vmax.f32 %v659, %v475
      %v662 = vmax.f32 %v660, %v481
      %v663 = vmax.f32 %v661, %v487
      %v664 = vmax.f32 %v662, %v493
      %v665 = vmax.f32 %v663, %v499
      %v666 = vmax.f32 %v664, %v505
      %v667 = vmax.f32 %v665, %v511
      %v668 = vmax.f32 %v666, %v517
      %v669 = vmax.f32 %v667, %v523
      %v670 = vmax.f32 %v668, %v529
      %v671 = vmax.f32 %v669, %v535
      %v672 = vmax.f32 %v670, %v541
      %v673 = vmax.f32 %v671, %v547
      %v674 = vmax.f32 %v672, %v553
      %v675 = vmax.f32 %v673, %v559
      %v676 = vmax.f32 %v674, %v565
      %v677 = vmax.f32 %v675, %v571
      %v678 = vmax.f32 %v676, %v577
      %v679 = vmax.f32 %v677, %v583
      %v680 = vmax.f32 %v678, %v589
      %v681 = vmax.f32 %v679, %v595
      %v682 = vmax.f32 %v680, %v601
      %v683 = vmax.f32 %v681, %v607
      %v684 = vmax.f32 %v682, %v613
      %v685 = vmax.f32 %v683, %v619
      %v686 = vmax.f32 %v684, %v685
      %v687 = vrot.slane %v686, 4
      %v688 = vmax.f32 %v686, %v687
      %v689 = vrot.slane %v688, 2
      %v690 = vmax.f32 %v688, %v689
      %v691 = vrot.slane %v690, 1
      %v692 = vmax.f32 %v690, %v691
      %v693 = vmax.f32 %v435, %v447
      %v694 = vmax.f32 %v441, %v453
      %v695 = vmax.f32 %v693, %v459
      %v696 = vmax.f32 %v694, %v465
      %v697 = vmax.f32 %v695, %v471
      %v698 = vmax.f32 %v696, %v477
      %v699 = vmax.f32 %v697, %v483
      %v700 = vmax.f32 %v698, %v489
      %v701 = vmax.f32 %v699, %v495
      %v702 = vmax.f32 %v700, %v501
      %v703 = vmax.f32 %v701, %v507
      %v704 = vmax.f32 %v702, %v513
      %v705 = vmax.f32 %v703, %v519
      %v706 = vmax.f32 %v704, %v525
      %v707 = vmax.f32 %v705, %v531
      %v708 = vmax.f32 %v706, %v537
      %v709 = vmax.f32 %v707, %v543
      %v710 = vmax.f32 %v708, %v549
      %v711 = vmax.f32 %v709, %v555
      %v712 = vmax.f32 %v710, %v561
      %v713 = vmax.f32 %v711, %v567
      %v714 = vmax.f32 %v712, %v573
      %v715 = vmax.f32 %v713, %v579
      %v716 = vmax.f32 %v714, %v585
      %v717 = vmax.f32 %v715, %v591
      %v718 = vmax.f32 %v716, %v597
      %v719 = vmax.f32 %v717, %v603
      %v720 = vmax.f32 %v718, %v609
      %v721 = vmax.f32 %v719, %v615
      %v722 = vmax.f32 %v720, %v621
      %v723 = vmax.f32 %v721, %v722
      %v724 = vrot.slane %v723, 4
      %v725 = vmax.f32 %v723, %v724
      %v726 = vrot.slane %v725, 2
      %v727 = vmax.f32 %v725, %v726
      %v728 = vrot.slane %v727, 1
      %v729 = vmax.f32 %v727, %v728
      %vm730 = vcmp.eq.f32.partialorder %v433, %v692
      %vm731 = vcmp.eq.f32.partialorder %v435, %v729
      %vm732 = vcmp.eq.f32.partialorder %v439, %v692
      %vm733 = vcmp.eq.f32.partialorder %v441, %v729
      %vm734 = vcmp.eq.f32.partialorder %v445, %v692
      %vm735 = vcmp.eq.f32.partialorder %v447, %v729
      %vm736 = vcmp.eq.f32.partialorder %v451, %v692
      %vm737 = vcmp.eq.f32.partialorder %v453, %v729
      %vm738 = vcmp.eq.f32.partialorder %v457, %v692
      %vm739 = vcmp.eq.f32.partialorder %v459, %v729
      %vm740 = vcmp.eq.f32.partialorder %v463, %v692
      %vm741 = vcmp.eq.f32.partialorder %v465, %v729
      %vm742 = vcmp.eq.f32.partialorder %v469, %v692
      %vm743 = vcmp.eq.f32.partialorder %v471, %v729
      %vm744 = vcmp.eq.f32.partialorder %v475, %v692
      %vm745 = vcmp.eq.f32.partialorder %v477, %v729
      %vm746 = vcmp.eq.f32.partialorder %v481, %v692
      %vm747 = vcmp.eq.f32.partialorder %v483, %v729
      %vm748 = vcmp.eq.f32.partialorder %v487, %v692
      %vm749 = vcmp.eq.f32.partialorder %v489, %v729
      %vm750 = vcmp.eq.f32.partialorder %v493, %v692
      %vm751 = vcmp.eq.f32.partialorder %v495, %v729
      %vm752 = vcmp.eq.f32.partialorder %v499, %v692
      %vm753 = vcmp.eq.f32.partialorder %v501, %v729
      %vm754 = vcmp.eq.f32.partialorder %v505, %v692
      %vm755 = vcmp.eq.f32.partialorder %v507, %v729
      %vm756 = vcmp.eq.f32.partialorder %v511, %v692
      %vm757 = vcmp.eq.f32.partialorder %v513, %v729
      %vm758 = vcmp.eq.f32.partialorder %v517, %v692
      %vm759 = vcmp.eq.f32.partialorder %v519, %v729
      %vm760 = vcmp.eq.f32.partialorder %v523, %v692
      %vm761 = vcmp.eq.f32.partialorder %v525, %v729
      %vm762 = vcmp.eq.f32.partialorder %v529, %v692
      %vm763 = vcmp.eq.f32.partialorder %v531, %v729
      %vm764 = vcmp.eq.f32.partialorder %v535, %v692
      %vm765 = vcmp.eq.f32.partialorder %v537, %v729
      %vm766 = vcmp.eq.f32.partialorder %v541, %v692
      %vm767 = vcmp.eq.f32.partialorder %v543, %v729
      %vm768 = vcmp.eq.f32.partialorder %v547, %v692
      %vm769 = vcmp.eq.f32.partialorder %v549, %v729
      %vm770 = vcmp.eq.f32.partialorder %v553, %v692
      %vm771 = vcmp.eq.f32.partialorder %v555, %v729
      %vm772 = vcmp.eq.f32.partialorder %v559, %v692
      %vm773 = vcmp.eq.f32.partialorder %v561, %v729
      %vm774 = vcmp.eq.f32.partialorder %v565, %v692
      %vm775 = vcmp.eq.f32.partialorder %v567, %v729
      %vm776 = vcmp.eq.f32.partialorder %v571, %v692
      %vm777 = vcmp.eq.f32.partialorder %v573, %v729
      %vm778 = vcmp.eq.f32.partialorder %v577, %v692
      %vm779 = vcmp.eq.f32.partialorder %v579, %v729
      %vm780 = vcmp.eq.f32.partialorder %v583, %v692
      %vm781 = vcmp.eq.f32.partialorder %v585, %v729
      %vm782 = vcmp.eq.f32.partialorder %v589, %v692
      %vm783 = vcmp.eq.f32.partialorder %v591, %v729
      %vm784 = vcmp.eq.f32.partialorder %v595, %v692
      %vm785 = vcmp.eq.f32.partialorder %v597, %v729
      %vm786 = vcmp.eq.f32.partialorder %v601, %v692
      %vm787 = vcmp.eq.f32.partialorder %v603, %v729
      %vm788 = vcmp.eq.f32.partialorder %v607, %v692
      %vm789 = vcmp.eq.f32.partialorder %v609, %v729
      %vm790 = vcmp.eq.f32.partialorder %v613, %v692
      %vm791 = vcmp.eq.f32.partialorder %v615, %v729
      %vm792 = vcmp.eq.f32.partialorder %v619, %v692
      %vm793 = vcmp.eq.f32.partialorder %v621, %v729
      %v794 = vsel %vm730, %v624, 256
      %v795 = vsel %vm731, %v624, 256
      %v796 = vsel %vm732, %v625, 256
      %v797 = vsel %vm733, %v625, 256
      %v798 = vsel %vm734, %v626, 256
      %v799 = vsel %vm735, %v626, 256
      %v800 = vsel %vm736, %v627, 256
      %v801 = vsel %vm737, %v627, 256
      %v802 = vsel %vm738, %v628, 256
      %v803 = vsel %vm739, %v628, 256
      %v804 = vsel %vm740, %v629, 256
      %v805 = vsel %vm741, %v629, 256
      %v806 = vsel %vm742, %v630, 256
      %v807 = vsel %vm743, %v630, 256
      %v808 = vsel %vm744, %v631, 256
      %v809 = vsel %vm745, %v631, 256
      %v810 = vsel %vm746, %v632, 256
      %v811 = vsel %vm747, %v632, 256
      %v812 = vsel %vm748, %v633, 256
      %v813 = vsel %vm749, %v633, 256
      %v814 = vsel %vm750, %v634, 256
      %v815 = vsel %vm751, %v634, 256
      %v816 = vsel %vm752, %v635, 256
      %v817 = vsel %vm753, %v635, 256
      %v818 = vsel %vm754, %v636, 256
      %v819 = vsel %vm755, %v636, 256
      %v820 = vsel %vm756, %v637, 256
      %v821 = vsel %vm757, %v637, 256
      %v822 = vsel %vm758, %v638, 256
      %v823 = vsel %vm759, %v638, 256
      %v824 = vsel %vm760, %v639, 256
      %v825 = vsel %vm761, %v639, 256
      %v826 = vsel %vm762, %v640, 256
      %v827 = vsel %vm763, %v640, 256
      %v828 = vsel %vm764, %v641, 256
      %v829 = vsel %vm765, %v641, 256
      %v830 = vsel %vm766, %v642, 256
      %v831 = vsel %vm767, %v642, 256
      %v832 = vsel %vm768, %v643, 256
      %v833 = vsel %vm769, %v643, 256
      %v834 = vsel %vm770, %v644, 256
      %v835 = vsel %vm771, %v644, 256
      %v836 = vsel %vm772, %v645, 256
      %v837 = vsel %vm773, %v645, 256
      %v838 = vsel %vm774, %v646, 256
      %v839 = vsel %vm775, %v646, 256
      %v840 = vsel %vm776, %v647, 256
      %v841 = vsel %vm777, %v647, 256
      %v842 = vsel %vm778, %v648, 256
      %v843 = vsel %vm779, %v648, 256
      %v844 = vsel %vm780, %v649, 256
      %v845 = vsel %vm781, %v649, 256
      %v846 = vsel %vm782, %v650, 256
      %v847 = vsel %vm783, %v650, 256
      %v848 = vsel %vm784, %v651, 256
      %v849 = vsel %vm785, %v651, 256
      %v850 = vsel %vm786, %v652, 256
      %v851 = vsel %vm787, %v652, 256
      %v852 = vsel %vm788, %v653, 256
      %v853 = vsel %vm789, %v653, 256
      %v854 = vsel %vm790, %v654, 256
      %v855 = vsel %vm791, %v654, 256
      %v856 = vsel %vm792, %v655, 256
      %v857 = vsel %vm793, %v655, 256
      %vm858 = vcmp.lt.s32.totalorder %v794, %v798
      %v859 = vsel %vm858, %v794, %v798
      %vm860 = vcmp.lt.s32.totalorder %v796, %v800
      %v861 = vsel %vm860, %v796, %v800
      %vm862 = vcmp.lt.s32.totalorder %v859, %v802
      %v863 = vsel %vm862, %v859, %v802
      %vm864 = vcmp.lt.s32.totalorder %v861, %v804
      %v865 = vsel %vm864, %v861, %v804
      %vm866 = vcmp.lt.s32.totalorder %v863, %v806
      %v867 = vsel %vm866, %v863, %v806
      %vm868 = vcmp.lt.s32.totalorder %v865, %v808
      %v869 = vsel %vm868, %v865, %v808
      %vm870 = vcmp.lt.s32.totalorder %v867, %v810
      %v871 = vsel %vm870, %v867, %v810
      %vm872 = vcmp.lt.s32.totalorder %v869, %v812
      %v873 = vsel %vm872, %v869, %v812
      %vm874 = vcmp.lt.s32.totalorder %v871, %v814
      %v875 = vsel %vm874, %v871, %v814
      %vm876 = vcmp.lt.s32.totalorder %v873, %v816
      %v877 = vsel %vm876, %v873, %v816
      %vm878 = vcmp.lt.s32.totalorder %v875, %v818
      %v879 = vsel %vm878, %v875, %v818
      %vm880 = vcmp.lt.s32.totalorder %v877, %v820
      %v881 = vsel %vm880, %v877, %v820
      %vm882 = vcmp.lt.s32.totalorder %v879, %v822
      %v883 = vsel %vm882, %v879, %v822
      %vm884 = vcmp.lt.s32.totalorder %v881, %v824
      %v885 = vsel %vm884, %v881, %v824
      %vm886 = vcmp.lt.s32.totalorder %v883, %v826
      %v887 = vsel %vm886, %v883, %v826
      %vm888 = vcmp.lt.s32.totalorder %v885, %v828
      %v889 = vsel %vm888, %v885, %v828
      %vm890 = vcmp.lt.s32.totalorder %v887, %v830
      %v891 = vsel %vm890, %v887, %v830
      %vm892 = vcmp.lt.s32.totalorder %v889, %v832
      %v893 = vsel %vm892, %v889, %v832
      %vm894 = vcmp.lt.s32.totalorder %v891, %v834
      %v895 = vsel %vm894, %v891, %v834
      %vm896 = vcmp.lt.s32.totalorder %v893, %v836
      %v897 = vsel %vm896, %v893, %v836
      %vm898 = vcmp.lt.s32.totalorder %v895, %v838
      %v899 = vsel %vm898, %v895, %v838
      %vm900 = vcmp.lt.s32.totalorder %v897, %v840
      %v901 = vsel %vm900, %v897, %v840
      %vm902 = vcmp.lt.s32.totalorder %v899, %v842
      %v903 = vsel %vm902, %v899, %v842
      %vm904 = vcmp.lt.s32.totalorder %v901, %v844
      %v905 = vsel %vm904, %v901, %v844
      %vm906 = vcmp.lt.s32.totalorder %v903, %v846
      %v907 = vsel %vm906, %v903, %v846
      %vm908 = vcmp.lt.s32.totalorder %v905, %v848
      %v909 = vsel %vm908, %v905, %v848
      %vm910 = vcmp.lt.s32.totalorder %v907, %v850
      %v911 = vsel %vm910, %v907, %v850
      %vm912 = vcmp.lt.s32.totalorder %v909, %v852
      %v913 = vsel %vm912, %v909, %v852
      %vm914 = vcmp.lt.s32.totalorder %v911, %v854
      %v915 = vsel %vm914, %v911, %v854
      %vm916 = vcmp.lt.s32.totalorder %v913, %v856
      %v917 = vsel %vm916, %v913, %v856
      %vm918 = vcmp.lt.s32.totalorder %v915, %v917
      %v919 = vsel %vm918, %v915, %v917
      %v920 = vrot.slane %v919, 4
      %vm921 = vcmp.lt.s32.totalorder %v919, %v920
      %v922 = vsel %vm921, %v919, %v920
      %v923 = vrot.slane %v922, 2
      %vm924 = vcmp.lt.s32.totalorder %v922, %v923
      %v925 = vsel %vm924, %v922, %v923
      %v926 = vrot.slane %v925, 1
      %vm927 = vcmp.lt.s32.totalorder %v925, %v926
      %v928 = vsel %vm927, %v925, %v926
      %vm929 = vcmp.lt.s32.totalorder %v795, %v799
      %v930 = vsel %vm929, %v795, %v799
      %vm931 = vcmp.lt.s32.totalorder %v797, %v801
      %v932 = vsel %vm931, %v797, %v801
      %vm933 = vcmp.lt.s32.totalorder %v930, %v803
      %v934 = vsel %vm933, %v930, %v803
      %vm935 = vcmp.lt.s32.totalorder %v932, %v805
      %v936 = vsel %vm935, %v932, %v805
      %vm937 = vcmp.lt.s32.totalorder %v934, %v807
      %v938 = vsel %vm937, %v934, %v807
      %vm939 = vcmp.lt.s32.totalorder %v936, %v809
      %v940 = vsel %vm939, %v936, %v809
      %vm941 = vcmp.lt.s32.totalorder %v938, %v811
      %v942 = vsel %vm941, %v938, %v811
      %vm943 = vcmp.lt.s32.totalorder %v940, %v813
      %v944 = vsel %vm943, %v940, %v813
      %vm945 = vcmp.lt.s32.totalorder %v942, %v815
      %v946 = vsel %vm945, %v942, %v815
      %vm947 = vcmp.lt.s32.totalorder %v944, %v817
      %v948 = vsel %vm947, %v944, %v817
      %vm949 = vcmp.lt.s32.totalorder %v946, %v819
      %v950 = vsel %vm949, %v946, %v819
      %vm951 = vcmp.lt.s32.totalorder %v948, %v821
      %v952 = vsel %vm951, %v948, %v821
      %vm953 = vcmp.lt.s32.totalorder %v950, %v823
      %v954 = vsel %vm953, %v950, %v823
      %vm955 = vcmp.lt.s32.totalorder %v952, %v825
      %v956 = vsel %vm955, %v952, %v825
      %vm957 = vcmp.lt.s32.totalorder %v954, %v827
      %v958 = vsel %vm957, %v954, %v827
      %vm959 = vcmp.lt.s32.totalorder %v956, %v829
      %v960 = vsel %vm959, %v956, %v829
      %vm961 = vcmp.lt.s32.totalorder %v958, %v831
      %v962 = vsel %vm961, %v958, %v831
      %vm963 = vcmp.lt.s32.totalorder %v960, %v833
      %v964 = vsel %vm963, %v960, %v833
      %vm965 = vcmp.lt.s32.totalorder %v962, %v835
      %v966 = vsel %vm965, %v962, %v835
      %vm967 = vcmp.lt.s32.totalorder %v964, %v837
      %v968 = vsel %vm967, %v964, %v837
      %vm969 = vcmp.lt.s32.totalorder %v966, %v839
      %v970 = vsel %vm969, %v966, %v839
      %vm971 = vcmp.lt.s32.totalorder %v968, %v841
      %v972 = vsel %vm971, %v968, %v841
      %vm973 = vcmp.lt.s32.totalorder %v970, %v843
      %v974 = vsel %vm973, %v970, %v843
      %vm975 = vcmp.lt.s32.totalorder %v972, %v845
      %v976 = vsel %vm975, %v972, %v845
      %vm977 = vcmp.lt.s32.totalorder %v974, %v847
      %v978 = vsel %vm977, %v974, %v847
      %vm979 = vcmp.lt.s32.totalorder %v976, %v849
      %v980 = vsel %vm979, %v976, %v849
      %vm981 = vcmp.lt.s32.totalorder %v978, %v851
      %v982 = vsel %vm981, %v978, %v851
      %vm983 = vcmp.lt.s32.totalorder %v980, %v853
      %v984 = vsel %vm983, %v980, %v853
      %vm985 = vcmp.lt.s32.totalorder %v982, %v855
      %v986 = vsel %vm985, %v982, %v855
      %vm987 = vcmp.lt.s32.totalorder %v984, %v857
      %v988 = vsel %vm987, %v984, %v857
      %vm989 = vcmp.lt.s32.totalorder %v986, %v988
      %v990 = vsel %vm989, %v986, %v988
      %v991 = vrot.slane %v990, 4
      %vm992 = vcmp.lt.s32.totalorder %v990, %v991
      %v993 = vsel %vm992, %v990, %v991
      %v994 = vrot.slane %v993, 2
      %vm995 = vcmp.lt.s32.totalorder %v993, %v994
      %v996 = vsel %vm995, %v993, %v994
      %v997 = vrot.slane %v996, 1
      %vm998 = vcmp.lt.s32.totalorder %v996, %v997
      %v999 = vsel %vm998, %v996, %v997
      %vm1000 = vcmp.eq.s32.totalorder %v624, %v928
      %vm1001 = vcmp.eq.s32.totalorder %v624, %v999
      %vm1002 = vcmp.eq.s32.totalorder %v625, %v928
      %vm1003 = vcmp.eq.s32.totalorder %v625, %v999
      %vm1004 = vcmp.eq.s32.totalorder %v626, %v928
      %vm1005 = vcmp.eq.s32.totalorder %v626, %v999
      %vm1006 = vcmp.eq.s32.totalorder %v627, %v928
      %vm1007 = vcmp.eq.s32.totalorder %v627, %v999
      %vm1008 = vcmp.eq.s32.totalorder %v628, %v928
      %vm1009 = vcmp.eq.s32.totalorder %v628, %v999
      %vm1010 = vcmp.eq.s32.totalorder %v629, %v928
      %vm1011 = vcmp.eq.s32.totalorder %v629, %v999
      %vm1012 = vcmp.eq.s32.totalorder %v630, %v928
      %vm1013 = vcmp.eq.s32.totalorder %v630, %v999
      %vm1014 = vcmp.eq.s32.totalorder %v631, %v928
      %vm1015 = vcmp.eq.s32.totalorder %v631, %v999
      %vm1016 = vcmp.eq.s32.totalorder %v632, %v928
      %vm1017 = vcmp.eq.s32.totalorder %v632, %v999
      %vm1018 = vcmp.eq.s32.totalorder %v633, %v928
      %vm1019 = vcmp.eq.s32.totalorder %v633, %v999
      %vm1020 = vcmp.eq.s32.totalorder %v634, %v928
      %vm1021 = vcmp.eq.s32.totalorder %v634, %v999
      %vm1022 = vcmp.eq.s32.totalorder %v635, %v928
      %vm1023 = vcmp.eq.s32.totalorder %v635, %v999
      %vm1024 = vcmp.eq.s32.totalorder %v636, %v928
      %vm1025 = vcmp.eq.s32.totalorder %v636, %v999
      %vm1026 = vcmp.eq.s32.totalorder %v637, %v928
      %vm1027 = vcmp.eq.s32.totalorder %v637, %v999
      %vm1028 = vcmp.eq.s32.totalorder %v638, %v928
      %vm1029 = vcmp.eq.s32.totalorder %v638, %v999
      %vm1030 = vcmp.eq.s32.totalorder %v639, %v928
      %vm1031 = vcmp.eq.s32.totalorder %v639, %v999
      %vm1032 = vcmp.eq.s32.totalorder %v640, %v928
      %vm1033 = vcmp.eq.s32.totalorder %v640, %v999
      %vm1034 = vcmp.eq.s32.totalorder %v641, %v928
      %vm1035 = vcmp.eq.s32.totalorder %v641, %v999
      %vm1036 = vcmp.eq.s32.totalorder %v642, %v928
      %vm1037 = vcmp.eq.s32.totalorder %v642, %v999
      %vm1038 = vcmp.eq.s32.totalorder %v643, %v928
      %vm1039 = vcmp.eq.s32.totalorder %v643, %v999
      %vm1040 = vcmp.eq.s32.totalorder %v644, %v928
      %vm1041 = vcmp.eq.s32.totalorder %v644, %v999
      %vm1042 = vcmp.eq.s32.totalorder %v645, %v928
      %vm1043 = vcmp.eq.s32.totalorder %v645, %v999
      %vm1044 = vcmp.eq.s32.totalorder %v646, %v928
      %vm1045 = vcmp.eq.s32.totalorder %v646, %v999
      %vm1046 = vcmp.eq.s32.totalorder %v647, %v928
      %vm1047 = vcmp.eq.s32.totalorder %v647, %v999
      %vm1048 = vcmp.eq.s32.totalorder %v648, %v928
      %vm1049 = vcmp.eq.s32.totalorder %v648, %v999
      %vm1050 = vcmp.eq.s32.totalorder %v649, %v928
      %vm1051 = vcmp.eq.s32.totalorder %v649, %v999
      %vm1052 = vcmp.eq.s32.totalorder %v650, %v928
      %vm1053 = vcmp.eq.s32.totalorder %v650, %v999
      %vm1054 = vcmp.eq.s32.totalorder %v651, %v928
      %vm1055 = vcmp.eq.s32.totalorder %v651, %v999
      %vm1056 = vcmp.eq.s32.totalorder %v652, %v928
      %vm1057 = vcmp.eq.s32.totalorder %v652, %v999
      %vm1058 = vcmp.eq.s32.totalorder %v653, %v928
      %vm1059 = vcmp.eq.s32.totalorder %v653, %v999
      %vm1060 = vcmp.eq.s32.totalorder %v654, %v928
      %vm1061 = vcmp.eq.s32.totalorder %v654, %v999
      %vm1062 = vcmp.eq.s32.totalorder %v655, %v928
      %vm1063 = vcmp.eq.s32.totalorder %v655, %v999
      %v1064 = vsub.f32 %v692, %v692
      %v1065 = vsub.f32 %v729, %v729
      %v1066 = vmul.f32 %v1064, 1.442695
      %v1067 = vpow.pop %v1066
      %v1068 = vmul.f32 %v1065, 1.442695
      %v1069 = vpow.pop %v1068
      %v1070 = vadd.f32 %v1067, 0.0
      %v1071 = vadd.f32 %v1069, 0.0
      %v1072 = vsel %vm1000, %v1070, 0.0
      %v1073 = vsel %vm1001, %v1071, 0.0
      %v1074 = vsel %vm1002, %v1070, 0.0
      %v1075 = vsel %vm1003, %v1071, 0.0
      %v1076 = vsel %vm1004, %v1070, 0.0
      %v1077 = vsel %vm1005, %v1071, 0.0
      %v1078 = vsel %vm1006, %v1070, 0.0
      %v1079 = vsel %vm1007, %v1071, 0.0
      %v1080 = vsel %vm1008, %v1070, 0.0
      %v1081 = vsel %vm1009, %v1071, 0.0
      %v1082 = vsel %vm1010, %v1070, 0.0
      %v1083 = vsel %vm1011, %v1071, 0.0
      %v1084 = vsel %vm1012, %v1070, 0.0
      %v1085 = vsel %vm1013, %v1071, 0.0
      %v1086 = vsel %vm1014, %v1070, 0.0
      %v1087 = vsel %vm1015, %v1071, 0.0
      %v1088 = vsel %vm1016, %v1070, 0.0
      %v1089 = vsel %vm1017, %v1071, 0.0
      %v1090 = vsel %vm1018, %v1070, 0.0
      %v1091 = vsel %vm1019, %v1071, 0.0
      %v1092 = vsel %vm1020, %v1070, 0.0
      %v1093 = vsel %vm1021, %v1071, 0.0
      %v1094 = vsel %vm1022, %v1070, 0.0
      %v1095 = vsel %vm1023, %v1071, 0.0
      %v1096 = vsel %vm1024, %v1070, 0.0
      %v1097 = vsel %vm1025, %v1071, 0.0
      %v1098 = vsel %vm1026, %v1070, 0.0
      %v1099 = vsel %vm1027, %v1071, 0.0
      %v1100 = vsel %vm1028, %v1070, 0.0
      %v1101 = vsel %vm1029, %v1071, 0.0
      %v1102 = vsel %vm1030, %v1070, 0.0
      %v1103 = vsel %vm1031, %v1071, 0.0
      %v1104 = vsel %vm1032, %v1070, 0.0
      %v1105 = vsel %vm1033, %v1071, 0.0
      %v1106 = vsel %vm1034, %v1070, 0.0
      %v1107 = vsel %vm1035, %v1071, 0.0
      %v1108 = vsel %vm1036, %v1070, 0.0
      %v1109 = vsel %vm1037, %v1071, 0.0
      %v1110 = vsel %vm1038, %v1070, 0.0
      %v1111 = vsel %vm1039, %v1071, 0.0
      %v1112 = vsel %vm1040, %v1070, 0.0
      %v1113 = vsel %vm1041, %v1071, 0.0
      %v1114 = vsel %vm1042, %v1070, 0.0
      %v1115 = vsel %vm1043, %v1071, 0.0
      %v1116 = vsel %vm1044, %v1070, 0.0
      %v1117 = vsel %vm1045, %v1071, 0.0
      %v1118 = vsel %vm1046, %v1070, 0.0
      %v1119 = vsel %vm1047, %v1071, 0.0
      %v1120 = vsel %vm1048, %v1070, 0.0
      %v1121 = vsel %vm1049, %v1071, 0.0
      %v1122 = vsel %vm1050, %v1070, 0.0
      %v1123 = vsel %vm1051, %v1071, 0.0
      %v1124 = vsel %vm1052, %v1070, 0.0
      %v1125 = vsel %vm1053, %v1071, 0.0
      %v1126 = vsel %vm1054, %v1070, 0.0
      %v1127 = vsel %vm1055, %v1071, 0.0
      %v1128 = vsel %vm1056, %v1070, 0.0
      %v1129 = vsel %vm1057, %v1071, 0.0
      %v1130 = vsel %vm1058, %v1070, 0.0
      %v1131 = vsel %vm1059, %v1071, 0.0
      %v1132 = vsel %vm1060, %v1070, 0.0
      %v1133 = vsel %vm1061, %v1071, 0.0
      %v1134 = vsel %vm1062, %v1070, 0.0
      %v1135 = vsel %vm1063, %v1071, 0.0
      %v1136 = vsel %vm1000, -inf, %v433
      %v1137 = vsel %vm1001, -inf, %v435
      %v1138 = vsel %vm1002, -inf, %v439
      %v1139 = vsel %vm1003, -inf, %v441
      %v1140 = vsel %vm1004, -inf, %v445
      %v1141 = vsel %vm1005, -inf, %v447
      %v1142 = vsel %vm1006, -inf, %v451
      %v1143 = vsel %vm1007, -inf, %v453
      %v1144 = vsel %vm1008, -inf, %v457
      %v1145 = vsel %vm1009, -inf, %v459
      %v1146 = vsel %vm1010, -inf, %v463
      %v1147 = vsel %vm1011, -inf, %v465
      %v1148 = vsel %vm1012, -inf, %v469
      %v1149 = vsel %vm1013, -inf, %v471
      %v1150 = vsel %vm1014, -inf, %v475
      %v1151 = vsel %vm1015, -inf, %v477
      %v1152 = vsel %vm1016, -inf, %v481
      %v1153 = vsel %vm1017, -inf, %v483
      %v1154 = vsel %vm1018, -inf, %v487
      %v1155 = vsel %vm1019, -inf, %v489
      %v1156 = vsel %vm1020, -inf, %v493
      %v1157 = vsel %vm1021, -inf, %v495
      %v1158 = vsel %vm1022, -inf, %v499
      %v1159 = vsel %vm1023, -inf, %v501
      %v1160 = vsel %vm1024, -inf, %v505
      %v1161 = vsel %vm1025, -inf, %v507
      %v1162 = vsel %vm1026, -inf, %v511
      %v1163 = vsel %vm1027, -inf, %v513
      %v1164 = vsel %vm1028, -inf, %v517
      %v1165 = vsel %vm1029, -inf, %v519
      %v1166 = vsel %vm1030, -inf, %v523
      %v1167 = vsel %vm1031, -inf, %v525
      %v1168 = vsel %vm1032, -inf, %v529
      %v1169 = vsel %vm1033, -inf, %v531
      %v1170 = vsel %vm1034, -inf, %v535
      %v1171 = vsel %vm1035, -inf, %v537
      %v1172 = vsel %vm1036, -inf, %v541
      %v1173 = vsel %vm1037, -inf, %v543
      %v1174 = vsel %vm1038, -inf, %v547
      %v1175 = vsel %vm1039, -inf, %v549
      %v1176 = vsel %vm1040, -inf, %v553
      %v1177 = vsel %vm1041, -inf, %v555
      %v1178 = vsel %vm1042, -inf, %v559
      %v1179 = vsel %vm1043, -inf, %v561
      %v1180 = vsel %vm1044, -inf, %v565
      %v1181 = vsel %vm1045, -inf, %v567
      %v1182 = vsel %vm1046, -inf, %v571
      %v1183 = vsel %vm1047, -inf, %v573
      %v1184 = vsel %vm1048, -inf, %v577
      %v1185 = vsel %vm1049, -inf, %v579
      %v1186 = vsel %vm1050, -inf, %v583
      %v1187 = vsel %vm1051, -inf, %v585
      %v1188 = vsel %vm1052, -inf, %v589
      %v1189 = vsel %vm1053, -inf, %v591
      %v1190 = vsel %vm1054, -inf, %v595
      %v1191 = vsel %vm1055, -inf, %v597
      %v1192 = vsel %vm1056, -inf, %v601
      %v1193 = vsel %vm1057, -inf, %v603
      %v1194 = vsel %vm1058, -inf, %v607
      %v1195 = vsel %vm1059, -inf, %v609
      %v1196 = vsel %vm1060, -inf, %v613
      %v1197 = vsel %vm1061, -inf, %v615
      %v1198 = vsel %vm1062, -inf, %v619
      %v1199 = vsel %vm1063, -inf, %v621
      %v1200 = vmax.f32 %v1136, %v1140
      %v1201 = vmax.f32 %v1138, %v1142
      %v1202 = vmax.f32 %v1200, %v1144
      %v1203 = vmax.f32 %v1201, %v1146
      %v1204 = vmax.f32 %v1202, %v1148
      %v1205 = vmax.f32 %v1203, %v1150
      %v1206 = vmax.f32 %v1204, %v1152
      %v1207 = vmax.f32 %v1205, %v1154
      %v1208 = vmax.f32 %v1206, %v1156
      %v1209 = vmax.f32 %v1207, %v1158
      %v1210 = vmax.f32 %v1208, %v1160
      %v1211 = vmax.f32 %v1209, %v1162
      %v1212 = vmax.f32 %v1210, %v1164
      %v1213 = vmax.f32 %v1211, %v1166
      %v1214 = vmax.f32 %v1212, %v1168
      %v1215 = vmax.f32 %v1213, %v1170
      %v1216 = vmax.f32 %v1214, %v1172
      %v1217 = vmax.f32 %v1215, %v1174
      %v1218 = vmax.f32 %v1216, %v1176
      %v1219 = vmax.f32 %v1217, %v1178
      %v1220 = vmax.f32 %v1218, %v1180
      %v1221 = vmax.f32 %v1219, %v1182
      %v1222 = vmax.f32 %v1220, %v1184
      %v1223 = vmax.f32 %v1221, %v1186
      %v1224 = vmax.f32 %v1222, %v1188
      %v1225 = vmax.f32 %v1223, %v1190
      %v1226 = vmax.f32 %v1224, %v1192
      %v1227 = vmax.f32 %v1225, %v1194
      %v1228 = vmax.f32 %v1226, %v1196
      %v1229 = vmax.f32 %v1227, %v1198
      %v1230 = vmax.f32 %v1228, %v1229
      %v1231 = vrot.slane %v1230, 4
      %v1232 = vmax.f32 %v1230, %v1231
      %v1233 = vrot.slane %v1232, 2
      %v1234 = vmax.f32 %v1232, %v1233
      %v1235 = vrot.slane %v1234, 1
      %v1236 = vmax.f32 %v1234, %v1235
      %v1237 = vmax.f32 %v1137, %v1141
      %v1238 = vmax.f32 %v1139, %v1143
      %v1239 = vmax.f32 %v1237, %v1145
      %v1240 = vmax.f32 %v1238, %v1147
      %v1241 = vmax.f32 %v1239, %v1149
      %v1242 = vmax.f32 %v1240, %v1151
      %v1243 = vmax.f32 %v1241, %v1153
      %v1244 = vmax.f32 %v1242, %v1155
      %v1245 = vmax.f32 %v1243, %v1157
      %v1246 = vmax.f32 %v1244, %v1159
      %v1247 = vmax.f32 %v1245, %v1161
      %v1248 = vmax.f32 %v1246, %v1163
      %v1249 = vmax.f32 %v1247, %v1165
      %v1250 = vmax.f32 %v1248, %v1167
      %v1251 = vmax.f32 %v1249, %v1169
      %v1252 = vmax.f32 %v1250, %v1171
      %v1253 = vmax.f32 %v1251, %v1173
      %v1254 = vmax.f32 %v1252, %v1175
      %v1255 = vmax.f32 %v1253, %v1177
      %v1256 = vmax.f32 %v1254, %v1179
      %v1257 = vmax.f32 %v1255, %v1181
      %v1258 = vmax.f32 %v1256, %v1183
      %v1259 = vmax.f32 %v1257, %v1185
      %v1260 = vmax.f32 %v1258, %v1187
      %v1261 = vmax.f32 %v1259, %v1189
      %v1262 = vmax.f32 %v1260, %v1191
      %v1263 = vmax.f32 %v1261, %v1193
      %v1264 = vmax.f32 %v1262, %v1195
      %v1265 = vmax.f32 %v1263, %v1197
      %v1266 = vmax.f32 %v1264, %v1199
      %v1267 = vmax.f32 %v1265, %v1266
      %v1268 = vrot.slane %v1267, 4
      %v1269 = vmax.f32 %v1267, %v1268
      %v1270 = vrot.slane %v1269, 2
      %v1271 = vmax.f32 %v1269, %v1270
      %v1272 = vrot.slane %v1271, 1
      %v1273 = vmax.f32 %v1271, %v1272
      %vm1274 = vcmp.eq.f32.partialorder %v1136, %v1236
      %vm1275 = vcmp.eq.f32.partialorder %v1137, %v1273
      %vm1276 = vcmp.eq.f32.partialorder %v1138, %v1236
      %vm1277 = vcmp.eq.f32.partialorder %v1139, %v1273
      %vm1278 = vcmp.eq.f32.partialorder %v1140, %v1236
      %vm1279 = vcmp.eq.f32.partialorder %v1141, %v1273
      %vm1280 = vcmp.eq.f32.partialorder %v1142, %v1236
      %vm1281 = vcmp.eq.f32.partialorder %v1143, %v1273
      %vm1282 = vcmp.eq.f32.partialorder %v1144, %v1236
      %vm1283 = vcmp.eq.f32.partialorder %v1145, %v1273
      %vm1284 = vcmp.eq.f32.partialorder %v1146, %v1236
      %vm1285 = vcmp.eq.f32.partialorder %v1147, %v1273
      %vm1286 = vcmp.eq.f32.partialorder %v1148, %v1236
      %vm1287 = vcmp.eq.f32.partialorder %v1149, %v1273
      %vm1288 = vcmp.eq.f32.partialorder %v1150, %v1236
      %vm1289 = vcmp.eq.f32.partialorder %v1151, %v1273
      %vm1290 = vcmp.eq.f32.partialorder %v1152, %v1236
      %vm1291 = vcmp.eq.f32.partialorder %v1153, %v1273
      %vm1292 = vcmp.eq.f32.partialorder %v1154, %v1236
      %vm1293 = vcmp.eq.f32.partialorder %v1155, %v1273
      %vm1294 = vcmp.eq.f32.partialorder %v1156, %v1236
      %vm1295 = vcmp.eq.f32.partialorder %v1157, %v1273
      %vm1296 = vcmp.eq.f32.partialorder %v1158, %v1236
      %vm1297 = vcmp.eq.f32.partialorder %v1159, %v1273
      %vm1298 = vcmp.eq.f32.partialorder %v1160, %v1236
      %vm1299 = vcmp.eq.f32.partialorder %v1161, %v1273
      %vm1300 = vcmp.eq.f32.partialorder %v1162, %v1236
      %vm1301 = vcmp.eq.f32.partialorder %v1163, %v1273
      %vm1302 = vcmp.eq.f32.partialorder %v1164, %v1236
      %vm1303 = vcmp.eq.f32.partialorder %v1165, %v1273
      %vm1304 = vcmp.eq.f32.partialorder %v1166, %v1236
      %vm1305 = vcmp.eq.f32.partialorder %v1167, %v1273
      %vm1306 = vcmp.eq.f32.partialorder %v1168, %v1236
      %vm1307 = vcmp.eq.f32.partialorder %v1169, %v1273
      %vm1308 = vcmp.eq.f32.partialorder %v1170, %v1236
      %vm1309 = vcmp.eq.f32.partialorder %v1171, %v1273
      %vm1310 = vcmp.eq.f32.partialorder %v1172, %v1236
      %vm1311 = vcmp.eq.f32.partialorder %v1173, %v1273
      %vm1312 = vcmp.eq.f32.partialorder %v1174, %v1236
      %vm1313 = vcmp.eq.f32.partialorder %v1175, %v1273
      %vm1314 = vcmp.eq.f32.partialorder %v1176, %v1236
      %vm1315 = vcmp.eq.f32.partialorder %v1177, %v1273
      %vm1316 = vcmp.eq.f32.partialorder %v1178, %v1236
      %vm1317 = vcmp.eq.f32.partialorder %v1179, %v1273
      %vm1318 = vcmp.eq.f32.partialorder %v1180, %v1236
      %vm1319 = vcmp.eq.f32.partialorder %v1181, %v1273
      %vm1320 = vcmp.eq.f32.partialorder %v1182, %v1236
      %vm1321 = vcmp.eq.f32.partialorder %v1183, %v1273
      %vm1322 = vcmp.eq.f32.partialorder %v1184, %v1236
      %vm1323 = vcmp.eq.f32.partialorder %v1185, %v1273
      %vm1324 = vcmp.eq.f32.partialorder %v1186, %v1236
      %vm1325 = vcmp.eq.f32.partialorder %v1187, %v1273
      %vm1326 = vcmp.eq.f32.partialorder %v1188, %v1236
      %vm1327 = vcmp.eq.f32.partialorder %v1189, %v1273
      %vm1328 = vcmp.eq.f32.partialorder %v1190, %v1236
      %vm1329 = vcmp.eq.f32.partialorder %v1191, %v1273
      %vm1330 = vcmp.eq.f32.partialorder %v1192, %v1236
      %vm1331 = vcmp.eq.f32.partialorder %v1193, %v1273
      %vm1332 = vcmp.eq.f32.partialorder %v1194, %v1236
      %vm1333 = vcmp.eq.f32.partialorder %v1195, %v1273
      %vm1334 = vcmp.eq.f32.partialorder %v1196, %v1236
      %vm1335 = vcmp.eq.f32.partialorder %v1197, %v1273
      %vm1336 = vcmp.eq.f32.partialorder %v1198, %v1236
      %vm1337 = vcmp.eq.f32.partialorder %v1199, %v1273
      %v1338 = vsel %vm1274, %v624, 256
      %v1339 = vsel %vm1275, %v624, 256
      %v1340 = vsel %vm1276, %v625, 256
      %v1341 = vsel %vm1277, %v625, 256
      %v1342 = vsel %vm1278, %v626, 256
      %v1343 = vsel %vm1279, %v626, 256
      %v1344 = vsel %vm1280, %v627, 256
      %v1345 = vsel %vm1281, %v627, 256
      %v1346 = vsel %vm1282, %v628, 256
      %v1347 = vsel %vm1283, %v628, 256
      %v1348 = vsel %vm1284, %v629, 256
      %v1349 = vsel %vm1285, %v629, 256
      %v1350 = vsel %vm1286, %v630, 256
      %v1351 = vsel %vm1287, %v630, 256
      %v1352 = vsel %vm1288, %v631, 256
      %v1353 = vsel %vm1289, %v631, 256
      %v1354 = vsel %vm1290, %v632, 256
      %v1355 = vsel %vm1291, %v632, 256
      %v1356 = vsel %vm1292, %v633, 256
      %v1357 = vsel %vm1293, %v633, 256
      %v1358 = vsel %vm1294, %v634, 256
      %v1359 = vsel %vm1295, %v634, 256
      %v1360 = vsel %vm1296, %v635, 256
      %v1361 = vsel %vm1297, %v635, 256
      %v1362 = vsel %vm1298, %v636, 256
      %v1363 = vsel %vm1299, %v636, 256
      %v1364 = vsel %vm1300, %v637, 256
      %v1365 = vsel %vm1301, %v637, 256
      %v1366 = vsel %vm1302, %v638, 256
      %v1367 = vsel %vm1303, %v638, 256
      %v1368 = vsel %vm1304, %v639, 256
      %v1369 = vsel %vm1305, %v639, 256
      %v1370 = vsel %vm1306, %v640, 256
      %v1371 = vsel %vm1307, %v640, 256
      %v1372 = vsel %vm1308, %v641, 256
      %v1373 = vsel %vm1309, %v641, 256
      %v1374 = vsel %vm1310, %v642, 256
      %v1375 = vsel %vm1311, %v642, 256
      %v1376 = vsel %vm1312, %v643, 256
      %v1377 = vsel %vm1313, %v643, 256
      %v1378 = vsel %vm1314, %v644, 256
      %v1379 = vsel %vm1315, %v644, 256
      %v1380 = vsel %vm1316, %v645, 256
      %v1381 = vsel %vm1317, %v645, 256
      %v1382 = vsel %vm1318, %v646, 256
      %v1383 = vsel %vm1319, %v646, 256
      %v1384 = vsel %vm1320, %v647, 256
      %v1385 = vsel %vm1321, %v647, 256
      %v1386 = vsel %vm1322, %v648, 256
      %v1387 = vsel %vm1323, %v648, 256
      %v1388 = vsel %vm1324, %v649, 256
      %v1389 = vsel %vm1325, %v649, 256
      %v1390 = vsel %vm1326, %v650, 256
      %v1391 = vsel %vm1327, %v650, 256
      %v1392 = vsel %vm1328, %v651, 256
      %v1393 = vsel %vm1329, %v651, 256
      %v1394 = vsel %vm1330, %v652, 256
      %v1395 = vsel %vm1331, %v652, 256
      %v1396 = vsel %vm1332, %v653, 256
      %v1397 = vsel %vm1333, %v653, 256
      %v1398 = vsel %vm1334, %v654, 256
      %v1399 = vsel %vm1335, %v654, 256
      %v1400 = vsel %vm1336, %v655, 256
      %v1401 = vsel %vm1337, %v655, 256
      %vm1402 = vcmp.lt.s32.totalorder %v1338, %v1342
      %v1403 = vsel %vm1402, %v1338, %v1342
      %vm1404 = vcmp.lt.s32.totalorder %v1340, %v1344
      %v1405 = vsel %vm1404, %v1340, %v1344
      %vm1406 = vcmp.lt.s32.totalorder %v1403, %v1346
      %v1407 = vsel %vm1406, %v1403, %v1346
      %vm1408 = vcmp.lt.s32.totalorder %v1405, %v1348
      %v1409 = vsel %vm1408, %v1405, %v1348
      %vm1410 = vcmp.lt.s32.totalorder %v1407, %v1350
      %v1411 = vsel %vm1410, %v1407, %v1350
      %vm1412 = vcmp.lt.s32.totalorder %v1409, %v1352
      %v1413 = vsel %vm1412, %v1409, %v1352
      %vm1414 = vcmp.lt.s32.totalorder %v1411, %v1354
      %v1415 = vsel %vm1414, %v1411, %v1354
      %vm1416 = vcmp.lt.s32.totalorder %v1413, %v1356
      %v1417 = vsel %vm1416, %v1413, %v1356
      %vm1418 = vcmp.lt.s32.totalorder %v1415, %v1358
      %v1419 = vsel %vm1418, %v1415, %v1358
      %vm1420 = vcmp.lt.s32.totalorder %v1417, %v1360
      %v1421 = vsel %vm1420, %v1417, %v1360
      %vm1422 = vcmp.lt.s32.totalorder %v1419, %v1362
      %v1423 = vsel %vm1422, %v1419, %v1362
      %vm1424 = vcmp.lt.s32.totalorder %v1421, %v1364
      %v1425 = vsel %vm1424, %v1421, %v1364
      %vm1426 = vcmp.lt.s32.totalorder %v1423, %v1366
      %v1427 = vsel %vm1426, %v1423, %v1366
      %vm1428 = vcmp.lt.s32.totalorder %v1425, %v1368
      %v1429 = vsel %vm1428, %v1425, %v1368
      %vm1430 = vcmp.lt.s32.totalorder %v1427, %v1370
      %v1431 = vsel %vm1430, %v1427, %v1370
      %vm1432 = vcmp.lt.s32.totalorder %v1429, %v1372
      %v1433 = vsel %vm1432, %v1429, %v1372
      %vm1434 = vcmp.lt.s32.totalorder %v1431, %v1374
      %v1435 = vsel %vm1434, %v1431, %v1374
      %vm1436 = vcmp.lt.s32.totalorder %v1433, %v1376
      %v1437 = vsel %vm1436, %v1433, %v1376
      %vm1438 = vcmp.lt.s32.totalorder %v1435, %v1378
      %v1439 = vsel %vm1438, %v1435, %v1378
      %vm1440 = vcmp.lt.s32.totalorder %v1437, %v1380
      %v1441 = vsel %vm1440, %v1437, %v1380
      %vm1442 = vcmp.lt.s32.totalorder %v1439, %v1382
      %v1443 = vsel %vm1442, %v1439, %v1382
      %vm1444 = vcmp.lt.s32.totalorder %v1441, %v1384
      %v1445 = vsel %vm1444, %v1441, %v1384
      %vm1446 = vcmp.lt.s32.totalorder %v1443, %v1386
      %v1447 = vsel %vm1446, %v1443, %v1386
      %vm1448 = vcmp.lt.s32.totalorder %v1445, %v1388
      %v1449 = vsel %vm1448, %v1445, %v1388
      %vm1450 = vcmp.lt.s32.totalorder %v1447, %v1390
      %v1451 = vsel %vm1450, %v1447, %v1390
      %vm1452 = vcmp.lt.s32.totalorder %v1449, %v1392
      %v1453 = vsel %vm1452, %v1449, %v1392
      %vm1454 = vcmp.lt.s32.totalorder %v1451, %v1394
      %v1455 = vsel %vm1454, %v1451, %v1394
      %vm1456 = vcmp.lt.s32.totalorder %v1453, %v1396
      %v1457 = vsel %vm1456, %v1453, %v1396
      %vm1458 = vcmp.lt.s32.totalorder %v1455, %v1398
      %v1459 = vsel %vm1458, %v1455, %v1398
      %vm1460 = vcmp.lt.s32.totalorder %v1457, %v1400
      %v1461 = vsel %vm1460, %v1457, %v1400
      %vm1462 = vcmp.lt.s32.totalorder %v1459, %v1461
      %v1463 = vsel %vm1462, %v1459, %v1461
      %v1464 = vrot.slane %v1463, 4
      %vm1465 = vcmp.lt.s32.totalorder %v1463, %v1464
      %v1466 = vsel %vm1465, %v1463, %v1464
      %v1467 = vrot.slane %v1466, 2
      %vm1468 = vcmp.lt.s32.totalorder %v1466, %v1467
      %v1469 = vsel %vm1468, %v1466, %v1467
      %v1470 = vrot.slane %v1469, 1
      %vm1471 = vcmp.lt.s32.totalorder %v1469, %v1470
      %v1472 = vsel %vm1471, %v1469, %v1470
      %vm1473 = vcmp.lt.s32.totalorder %v1339, %v1343
      %v1474 = vsel %vm1473, %v1339, %v1343
      %vm1475 = vcmp.lt.s32.totalorder %v1341, %v1345
      %v1476 = vsel %vm1475, %v1341, %v1345
      %vm1477 = vcmp.lt.s32.totalorder %v1474, %v1347
      %v1478 = vsel %vm1477, %v1474, %v1347
      %vm1479 = vcmp.lt.s32.totalorder %v1476, %v1349
      %v1480 = vsel %vm1479, %v1476, %v1349
      %vm1481 = vcmp.lt.s32.totalorder %v1478, %v1351
      %v1482 = vsel %vm1481, %v1478, %v1351
      %vm1483 = vcmp.lt.s32.totalorder %v1480, %v1353
      %v1484 = vsel %vm1483, %v1480, %v1353
      %vm1485 = vcmp.lt.s32.totalorder %v1482, %v1355
      %v1486 = vsel %vm1485, %v1482, %v1355
      %vm1487 = vcmp.lt.s32.totalorder %v1484, %v1357
      %v1488 = vsel %vm1487, %v1484, %v1357
      %vm1489 = vcmp.lt.s32.totalorder %v1486, %v1359
      %v1490 = vsel %vm1489, %v1486, %v1359
      %vm1491 = vcmp.lt.s32.totalorder %v1488, %v1361
      %v1492 = vsel %vm1491, %v1488, %v1361
      %vm1493 = vcmp.lt.s32.totalorder %v1490, %v1363
      %v1494 = vsel %vm1493, %v1490, %v1363
      %vm1495 = vcmp.lt.s32.totalorder %v1492, %v1365
      %v1496 = vsel %vm1495, %v1492, %v1365
      %vm1497 = vcmp.lt.s32.totalorder %v1494, %v1367
      %v1498 = vsel %vm1497, %v1494, %v1367
      %vm1499 = vcmp.lt.s32.totalorder %v1496, %v1369
      %v1500 = vsel %vm1499, %v1496, %v1369
      %vm1501 = vcmp.lt.s32.totalorder %v1498, %v1371
      %v1502 = vsel %vm1501, %v1498, %v1371
      %vm1503 = vcmp.lt.s32.totalorder %v1500, %v1373
      %v1504 = vsel %vm1503, %v1500, %v1373
      %vm1505 = vcmp.lt.s32.totalorder %v1502, %v1375
      %v1506 = vsel %vm1505, %v1502, %v1375
      %vm1507 = vcmp.lt.s32.totalorder %v1504, %v1377
      %v1508 = vsel %vm1507, %v1504, %v1377
      %vm1509 = vcmp.lt.s32.totalorder %v1506, %v1379
      %v1510 = vsel %vm1509, %v1506, %v1379
      %vm1511 = vcmp.lt.s32.totalorder %v1508, %v1381
      %v1512 = vsel %vm1511, %v1508, %v1381
      %vm1513 = vcmp.lt.s32.totalorder %v1510, %v1383
      %v1514 = vsel %vm1513, %v1510, %v1383
      %vm1515 = vcmp.lt.s32.totalorder %v1512, %v1385
      %v1516 = vsel %vm1515, %v1512, %v1385
      %vm1517 = vcmp.lt.s32.totalorder %v1514, %v1387
      %v1518 = vsel %vm1517, %v1514, %v1387
      %vm1519 = vcmp.lt.s32.totalorder %v1516, %v1389
      %v1520 = vsel %vm1519, %v1516, %v1389
      %vm1521 = vcmp.lt.s32.totalorder %v1518, %v1391
      %v1522 = vsel %vm1521, %v1518, %v1391
      %vm1523 = vcmp.lt.s32.totalorder %v1520, %v1393
      %v1524 = vsel %vm1523, %v1520, %v1393
      %vm1525 = vcmp.lt.s32.totalorder %v1522, %v1395
      %v1526 = vsel %vm1525, %v1522, %v1395
      %vm1527 = vcmp.lt.s32.totalorder %v1524, %v1397
      %v1528 = vsel %vm1527, %v1524, %v1397
      %vm1529 = vcmp.lt.s32.totalorder %v1526, %v1399
      %v1530 = vsel %vm1529, %v1526, %v1399
      %vm1531 = vcmp.lt.s32.totalorder %v1528, %v1401
      %v1532 = vsel %vm1531, %v1528, %v1401
      %vm1533 = vcmp.lt.s32.totalorder %v1530, %v1532
      %v1534 = vsel %vm1533, %v1530, %v1532
      %v1535 = vrot.slane %v1534, 4
      %vm1536 = vcmp.lt.s32.totalorder %v1534, %v1535
      %v1537 = vsel %vm1536, %v1534, %v1535
      %v1538 = vrot.slane %v1537, 2
      %vm1539 = vcmp.lt.s32.totalorder %v1537, %v1538
      %v1540 = vsel %vm1539, %v1537, %v1538
      %v1541 = vrot.slane %v1540, 1
      %vm1542 = vcmp.lt.s32.totalorder %v1540, %v1541
      %v1543 = vsel %vm1542, %v1540, %v1541
      %vm1544 = vcmp.eq.s32.totalorder %v624, %v1472
      %vm1545 = vcmp.eq.s32.totalorder %v624, %v1543
      %vm1546 = vcmp.eq.s32.totalorder %v625, %v1472
      %vm1547 = vcmp.eq.s32.totalorder %v625, %v1543
      %vm1548 = vcmp.eq.s32.totalorder %v626, %v1472
      %vm1549 = vcmp.eq.s32.totalorder %v626, %v1543
      %vm1550 = vcmp.eq.s32.totalorder %v627, %v1472
      %vm1551 = vcmp.eq.s32.totalorder %v627, %v1543
      %vm1552 = vcmp.eq.s32.totalorder %v628, %v1472
      %vm1553 = vcmp.eq.s32.totalorder %v628, %v1543
      %vm1554 = vcmp.eq.s32.totalorder %v629, %v1472
      %vm1555 = vcmp.eq.s32.totalorder %v629, %v1543
      %vm1556 = vcmp.eq.s32.totalorder %v630, %v1472
      %vm1557 = vcmp.eq.s32.totalorder %v630, %v1543
      %vm1558 = vcmp.eq.s32.totalorder %v631, %v1472
      %vm1559 = vcmp.eq.s32.totalorder %v631, %v1543
      %vm1560 = vcmp.eq.s32.totalorder %v632, %v1472
      %vm1561 = vcmp.eq.s32.totalorder %v632, %v1543
      %vm1562 = vcmp.eq.s32.totalorder %v633, %v1472
      %vm1563 = vcmp.eq.s32.totalorder %v633, %v1543
      %vm1564 = vcmp.eq.s32.totalorder %v634, %v1472
      %vm1565 = vcmp.eq.s32.totalorder %v634, %v1543
      %vm1566 = vcmp.eq.s32.totalorder %v635, %v1472
      %vm1567 = vcmp.eq.s32.totalorder %v635, %v1543
      %vm1568 = vcmp.eq.s32.totalorder %v636, %v1472
      %vm1569 = vcmp.eq.s32.totalorder %v636, %v1543
      %vm1570 = vcmp.eq.s32.totalorder %v637, %v1472
      %vm1571 = vcmp.eq.s32.totalorder %v637, %v1543
      %vm1572 = vcmp.eq.s32.totalorder %v638, %v1472
      %vm1573 = vcmp.eq.s32.totalorder %v638, %v1543
      %vm1574 = vcmp.eq.s32.totalorder %v639, %v1472
      %vm1575 = vcmp.eq.s32.totalorder %v639, %v1543
      %vm1576 = vcmp.eq.s32.totalorder %v640, %v1472
      %vm1577 = vcmp.eq.s32.totalorder %v640, %v1543
      %vm1578 = vcmp.eq.s32.totalorder %v641, %v1472
      %vm1579 = vcmp.eq.s32.totalorder %v641, %v1543
      %vm1580 = vcmp.eq.s32.totalorder %v642, %v1472
      %vm1581 = vcmp.eq.s32.totalorder %v642, %v1543
      %vm1582 = vcmp.eq.s32.totalorder %v643, %v1472
      %vm1583 = vcmp.eq.s32.totalorder %v643, %v1543
      %vm1584 = vcmp.eq.s32.totalorder %v644, %v1472
      %vm1585 = vcmp.eq.s32.totalorder %v644, %v1543
      %vm1586 = vcmp.eq.s32.totalorder %v645, %v1472
      %vm1587 = vcmp.eq.s32.totalorder %v645, %v1543
      %vm1588 = vcmp.eq.s32.totalorder %v646, %v1472
      %vm1589 = vcmp.eq.s32.totalorder %v646, %v1543
      %vm1590 = vcmp.eq.s32.totalorder %v647, %v1472
      %vm1591 = vcmp.eq.s32.totalorder %v647, %v1543
      %vm1592 = vcmp.eq.s32.totalorder %v648, %v1472
      %vm1593 = vcmp.eq.s32.totalorder %v648, %v1543
      %vm1594 = vcmp.eq.s32.totalorder %v649, %v1472
      %vm1595 = vcmp.eq.s32.totalorder %v649, %v1543
      %vm1596 = vcmp.eq.s32.totalorder %v650, %v1472
      %vm1597 = vcmp.eq.s32.totalorder %v650, %v1543
      %vm1598 = vcmp.eq.s32.totalorder %v651, %v1472
      %vm1599 = vcmp.eq.s32.totalorder %v651, %v1543
      %vm1600 = vcmp.eq.s32.totalorder %v652, %v1472
      %vm1601 = vcmp.eq.s32.totalorder %v652, %v1543
      %vm1602 = vcmp.eq.s32.totalorder %v653, %v1472
      %vm1603 = vcmp.eq.s32.totalorder %v653, %v1543
      %vm1604 = vcmp.eq.s32.totalorder %v654, %v1472
      %vm1605 = vcmp.eq.s32.totalorder %v654, %v1543
      %vm1606 = vcmp.eq.s32.totalorder %v655, %v1472
      %vm1607 = vcmp.eq.s32.totalorder %v655, %v1543
      %v1608 = vsub.f32 %v1236, %v692
      %v1609 = vsub.f32 %v1273, %v729
      %v1610 = vmul.f32 %v1608, 1.442695
      %v1611 = vpow.pop %v1610
      %v1612 = vmul.f32 %v1609, 1.442695
      %v1613 = vpow.pop %v1612
      %v1614 = vadd.f32 %v1072, %v1611
      %v1615 = vadd.f32 %v1073, %v1613
      %v1616 = vadd.f32 %v1074, %v1611
      %v1617 = vadd.f32 %v1075, %v1613
      %v1618 = vadd.f32 %v1076, %v1611
      %v1619 = vadd.f32 %v1077, %v1613
      %v1620 = vadd.f32 %v1078, %v1611
      %v1621 = vadd.f32 %v1079, %v1613
      %v1622 = vadd.f32 %v1080, %v1611
      %v1623 = vadd.f32 %v1081, %v1613
      %v1624 = vadd.f32 %v1082, %v1611
      %v1625 = vadd.f32 %v1083, %v1613
      %v1626 = vadd.f32 %v1084, %v1611
      %v1627 = vadd.f32 %v1085, %v1613
      %v1628 = vadd.f32 %v1086, %v1611
      %v1629 = vadd.f32 %v1087, %v1613
      %v1630 = vadd.f32 %v1088, %v1611
      %v1631 = vadd.f32 %v1089, %v1613
      %v1632 = vadd.f32 %v1090, %v1611
      %v1633 = vadd.f32 %v1091, %v1613
      %v1634 = vadd.f32 %v1092, %v1611
      %v1635 = vadd.f32 %v1093, %v1613
      %v1636 = vadd.f32 %v1094, %v1611
      %v1637 = vadd.f32 %v1095, %v1613
      %v1638 = vadd.f32 %v1096, %v1611
      %v1639 = vadd.f32 %v1097, %v1613
      %v1640 = vadd.f32 %v1098, %v1611
      %v1641 = vadd.f32 %v1099, %v1613
      %v1642 = vadd.f32 %v1100, %v1611
      %v1643 = vadd.f32 %v1101, %v1613
      %v1644 = vadd.f32 %v1102, %v1611
      %v1645 = vadd.f32 %v1103, %v1613
      %v1646 = vadd.f32 %v1104, %v1611
      %v1647 = vadd.f32 %v1105, %v1613
      %v1648 = vadd.f32 %v1106, %v1611
      %v1649 = vadd.f32 %v1107, %v1613
      %v1650 = vadd.f32 %v1108, %v1611
      %v1651 = vadd.f32 %v1109, %v1613
      %v1652 = vadd.f32 %v1110, %v1611
      %v1653 = vadd.f32 %v1111, %v1613
      %v1654 = vadd.f32 %v1112, %v1611
      %v1655 = vadd.f32 %v1113, %v1613
      %v1656 = vadd.f32 %v1114, %v1611
      %v1657 = vadd.f32 %v1115, %v1613
      %v1658 = vadd.f32 %v1116, %v1611
      %v1659 = vadd.f32 %v1117, %v1613
      %v1660 = vadd.f32 %v1118, %v1611
      %v1661 = vadd.f32 %v1119, %v1613
      %v1662 = vadd.f32 %v1120, %v1611
      %v1663 = vadd.f32 %v1121, %v1613
      %v1664 = vadd.f32 %v1122, %v1611
      %v1665 = vadd.f32 %v1123, %v1613
      %v1666 = vadd.f32 %v1124, %v1611
      %v1667 = vadd.f32 %v1125, %v1613
      %v1668 = vadd.f32 %v1126, %v1611
      %v1669 = vadd.f32 %v1127, %v1613
      %v1670 = vadd.f32 %v1128, %v1611
      %v1671 = vadd.f32 %v1129, %v1613
      %v1672 = vadd.f32 %v1130, %v1611
      %v1673 = vadd.f32 %v1131, %v1613
      %v1674 = vadd.f32 %v1132, %v1611
      %v1675 = vadd.f32 %v1133, %v1613
      %v1676 = vadd.f32 %v1134, %v1611
      %v1677 = vadd.f32 %v1135, %v1613
      %v1678 = vsel %vm1544, %v1614, %v1072
      %v1679 = vsel %vm1545, %v1615, %v1073
      %v1680 = vsel %vm1546, %v1616, %v1074
      %v1681 = vsel %vm1547, %v1617, %v1075
      %v1682 = vsel %vm1548, %v1618, %v1076
      %v1683 = vsel %vm1549, %v1619, %v1077
      %v1684 = vsel %vm1550, %v1620, %v1078
      %v1685 = vsel %vm1551, %v1621, %v1079
      %v1686 = vsel %vm1552, %v1622, %v1080
      %v1687 = vsel %vm1553, %v1623, %v1081
      %v1688 = vsel %vm1554, %v1624, %v1082
      %v1689 = vsel %vm1555, %v1625, %v1083
      %v1690 = vsel %vm1556, %v1626, %v1084
      %v1691 = vsel %vm1557, %v1627, %v1085
      %v1692 = vsel %vm1558, %v1628, %v1086
      %v1693 = vsel %vm1559, %v1629, %v1087
      %v1694 = vsel %vm1560, %v1630, %v1088
      %v1695 = vsel %vm1561, %v1631, %v1089
      %v1696 = vsel %vm1562, %v1632, %v1090
      %v1697 = vsel %vm1563, %v1633, %v1091
      %v1698 = vsel %vm1564, %v1634, %v1092
      %v1699 = vsel %vm1565, %v1635, %v1093
      %v1700 = vsel %vm1566, %v1636, %v1094
      %v1701 = vsel %vm1567, %v1637, %v1095
      %v1702 = vsel %vm1568, %v1638, %v1096
      %v1703 = vsel %vm1569, %v1639, %v1097
      %v1704 = vsel %vm1570, %v1640, %v1098
      %v1705 = vsel %vm1571, %v1641, %v1099
      %v1706 = vsel %vm1572, %v1642, %v1100
      %v1707 = vsel %vm1573, %v1643, %v1101
      %v1708 = vsel %vm1574, %v1644, %v1102
      %v1709 = vsel %vm1575, %v1645, %v1103
      %v1710 = vsel %vm1576, %v1646, %v1104
      %v1711 = vsel %vm1577, %v1647, %v1105
      %v1712 = vsel %vm1578, %v1648, %v1106
      %v1713 = vsel %vm1579, %v1649, %v1107
      %v1714 = vsel %vm1580, %v1650, %v1108
      %v1715 = vsel %vm1581, %v1651, %v1109
      %v1716 = vsel %vm1582, %v1652, %v1110
      %v1717 = vsel %vm1583, %v1653, %v1111
      %v1718 = vsel %vm1584, %v1654, %v1112
      %v1719 = vsel %vm1585, %v1655, %v1113
      %v1720 = vsel %vm1586, %v1656, %v1114
      %v1721 = vsel %vm1587, %v1657, %v1115
      %v1722 = vsel %vm1588, %v1658, %v1116
      %v1723 = vsel %vm1589, %v1659, %v1117
      %v1724 = vsel %vm1590, %v1660, %v1118
      %v1725 = vsel %vm1591, %v1661, %v1119
      %v1726 = vsel %vm1592, %v1662, %v1120
      %v1727 = vsel %vm1593, %v1663, %v1121
      %v1728 = vsel %vm1594, %v1664, %v1122
      %v1729 = vsel %vm1595, %v1665, %v1123
      %v1730 = vsel %vm1596, %v1666, %v1124
      %v1731 = vsel %vm1597, %v1667, %v1125
      %v1732 = vsel %vm1598, %v1668, %v1126
      %v1733 = vsel %vm1599, %v1669, %v1127
      %v1734 = vsel %vm1600, %v1670, %v1128
      %v1735 = vsel %vm1601, %v1671, %v1129
      %v1736 = vsel %vm1602, %v1672, %v1130
      %v1737 = vsel %vm1603, %v1673, %v1131
      %v1738 = vsel %vm1604, %v1674, %v1132
      %v1739 = vsel %vm1605, %v1675, %v1133
      %v1740 = vsel %vm1606, %v1676, %v1134
      %v1741 = vsel %vm1607, %v1677, %v1135
      %v1742 = vadd.f32 %v1070, %v1611
      %v1743 = vadd.f32 %v1071, %v1613
      %v1744 = vsel %vm1544, -inf, %v1136
      %v1745 = vsel %vm1545, -inf, %v1137
      %v1746 = vsel %vm1546, -inf, %v1138
      %v1747 = vsel %vm1547, -inf, %v1139
      %v1748 = vsel %vm1548, -inf, %v1140
      %v1749 = vsel %vm1549, -inf, %v1141
      %v1750 = vsel %vm1550, -inf, %v1142
      %v1751 = vsel %vm1551, -inf, %v1143
      %v1752 = vsel %vm1552, -inf, %v1144
      %v1753 = vsel %vm1553, -inf, %v1145
      %v1754 = vsel %vm1554, -inf, %v1146
      %v1755 = vsel %vm1555, -inf, %v1147
      %v1756 = vsel %vm1556, -inf, %v1148
      %v1757 = vsel %vm1557, -inf, %v1149
      %v1758 = vsel %vm1558, -inf, %v1150
      %v1759 = vsel %vm1559, -inf, %v1151
      %v1760 = vsel %vm1560, -inf, %v1152
      %v1761 = vsel %vm1561, -inf, %v1153
      %v1762 = vsel %vm1562, -inf, %v1154
      %v1763 = vsel %vm1563, -inf, %v1155
      %v1764 = vsel %vm1564, -inf, %v1156
      %v1765 = vsel %vm1565, -inf, %v1157
      %v1766 = vsel %vm1566, -inf, %v1158
      %v1767 = vsel %vm1567, -inf, %v1159
      %v1768 = vsel %vm1568, -inf, %v1160
      %v1769 = vsel %vm1569, -inf, %v1161
      %v1770 = vsel %vm1570, -inf, %v1162
      %v1771 = vsel %vm1571, -inf, %v1163
      %v1772 = vsel %vm1572, -inf, %v1164
      %v1773 = vsel %vm1573, -inf, %v1165
      %v1774 = vsel %vm1574, -inf, %v1166
      %v1775 = vsel %vm1575, -inf, %v1167
      %v1776 = vsel %vm1576, -inf, %v1168
      %v1777 = vsel %vm1577, -inf, %v1169
      %v1778 = vsel %vm1578, -inf, %v1170
      %v1779 = vsel %vm1579, -inf, %v1171
      %v1780 = vsel %vm1580, -inf, %v1172
      %v1781 = vsel %vm1581, -inf, %v1173
      %v1782 = vsel %vm1582, -inf, %v1174
      %v1783 = vsel %vm1583, -inf, %v1175
      %v1784 = vsel %vm1584, -inf, %v1176
      %v1785 = vsel %vm1585, -inf, %v1177
      %v1786 = vsel %vm1586, -inf, %v1178
      %v1787 = vsel %vm1587, -inf, %v1179
      %v1788 = vsel %vm1588, -inf, %v1180
      %v1789 = vsel %vm1589, -inf, %v1181
      %v1790 = vsel %vm1590, -inf, %v1182
      %v1791 = vsel %vm1591, -inf, %v1183
      %v1792 = vsel %vm1592, -inf, %v1184
      %v1793 = vsel %vm1593, -inf, %v1185
      %v1794 = vsel %vm1594, -inf, %v1186
      %v1795 = vsel %vm1595, -inf, %v1187
      %v1796 = vsel %vm1596, -inf, %v1188
      %v1797 = vsel %vm1597, -inf, %v1189
      %v1798 = vsel %vm1598, -inf, %v1190
      %v1799 = vsel %vm1599, -inf, %v1191
      %v1800 = vsel %vm1600, -inf, %v1192
      %v1801 = vsel %vm1601, -inf, %v1193
      %v1802 = vsel %vm1602, -inf, %v1194
      %v1803 = vsel %vm1603, -inf, %v1195
      %v1804 = vsel %vm1604, -inf, %v1196
      %v1805 = vsel %vm1605, -inf, %v1197
      %v1806 = vsel %vm1606, -inf, %v1198
      %v1807 = vsel %vm1607, -inf, %v1199
      %v1808 = vmax.f32 %v1744, %v1748
      %v1809 = vmax.f32 %v1746, %v1750
      %v1810 = vmax.f32 %v1808, %v1752
      %v1811 = vmax.f32 %v1809, %v1754
      %v1812 = vmax.f32 %v1810, %v1756
      %v1813 = vmax.f32 %v1811, %v1758
      %v1814 = vmax.f32 %v1812, %v1760
      %v1815 = vmax.f32 %v1813, %v1762
      %v1816 = vmax.f32 %v1814, %v1764
      %v1817 = vmax.f32 %v1815, %v1766
      %v1818 = vmax.f32 %v1816, %v1768
      %v1819 = vmax.f32 %v1817, %v1770
      %v1820 = vmax.f32 %v1818, %v1772
      %v1821 = vmax.f32 %v1819, %v1774
      %v1822 = vmax.f32 %v1820, %v1776
      %v1823 = vmax.f32 %v1821, %v1778
      %v1824 = vmax.f32 %v1822, %v1780
      %v1825 = vmax.f32 %v1823, %v1782
      %v1826 = vmax.f32 %v1824, %v1784
      %v1827 = vmax.f32 %v1825, %v1786
      %v1828 = vmax.f32 %v1826, %v1788
      %v1829 = vmax.f32 %v1827, %v1790
      %v1830 = vmax.f32 %v1828, %v1792
      %v1831 = vmax.f32 %v1829, %v1794
      %v1832 = vmax.f32 %v1830, %v1796
      %v1833 = vmax.f32 %v1831, %v1798
      %v1834 = vmax.f32 %v1832, %v1800
      %v1835 = vmax.f32 %v1833, %v1802
      %v1836 = vmax.f32 %v1834, %v1804
      %v1837 = vmax.f32 %v1835, %v1806
      %v1838 = vmax.f32 %v1836, %v1837
      %v1839 = vrot.slane %v1838, 4
      %v1840 = vmax.f32 %v1838, %v1839
      %v1841 = vrot.slane %v1840, 2
      %v1842 = vmax.f32 %v1840, %v1841
      %v1843 = vrot.slane %v1842, 1
      %v1844 = vmax.f32 %v1842, %v1843
      %v1845 = vmax.f32 %v1745, %v1749
      %v1846 = vmax.f32 %v1747, %v1751
      %v1847 = vmax.f32 %v1845, %v1753
      %v1848 = vmax.f32 %v1846, %v1755
      %v1849 = vmax.f32 %v1847, %v1757
      %v1850 = vmax.f32 %v1848, %v1759
      %v1851 = vmax.f32 %v1849, %v1761
      %v1852 = vmax.f32 %v1850, %v1763
      %v1853 = vmax.f32 %v1851, %v1765
      %v1854 = vmax.f32 %v1852, %v1767
      %v1855 = vmax.f32 %v1853, %v1769
      %v1856 = vmax.f32 %v1854, %v1771
      %v1857 = vmax.f32 %v1855, %v1773
      %v1858 = vmax.f32 %v1856, %v1775
      %v1859 = vmax.f32 %v1857, %v1777
      %v1860 = vmax.f32 %v1858, %v1779
      %v1861 = vmax.f32 %v1859, %v1781
      %v1862 = vmax.f32 %v1860, %v1783
      %v1863 = vmax.f32 %v1861, %v1785
      %v1864 = vmax.f32 %v1862, %v1787
      %v1865 = vmax.f32 %v1863, %v1789
      %v1866 = vmax.f32 %v1864, %v1791
      %v1867 = vmax.f32 %v1865, %v1793
      %v1868 = vmax.f32 %v1866, %v1795
      %v1869 = vmax.f32 %v1867, %v1797
      %v1870 = vmax.f32 %v1868, %v1799
      %v1871 = vmax.f32 %v1869, %v1801
      %v1872 = vmax.f32 %v1870, %v1803
      %v1873 = vmax.f32 %v1871, %v1805
      %v1874 = vmax.f32 %v1872, %v1807
      %v1875 = vmax.f32 %v1873, %v1874
      %v1876 = vrot.slane %v1875, 4
      %v1877 = vmax.f32 %v1875, %v1876
      %v1878 = vrot.slane %v1877, 2
      %v1879 = vmax.f32 %v1877, %v1878
      %v1880 = vrot.slane %v1879, 1
      %v1881 = vmax.f32 %v1879, %v1880
      %vm1882 = vcmp.eq.f32.partialorder %v1744, %v1844
      %vm1883 = vcmp.eq.f32.partialorder %v1745, %v1881
      %vm1884 = vcmp.eq.f32.partialorder %v1746, %v1844
      %vm1885 = vcmp.eq.f32.partialorder %v1747, %v1881
      %vm1886 = vcmp.eq.f32.partialorder %v1748, %v1844
      %vm1887 = vcmp.eq.f32.partialorder %v1749, %v1881
      %vm1888 = vcmp.eq.f32.partialorder %v1750, %v1844
      %vm1889 = vcmp.eq.f32.partialorder %v1751, %v1881
      %vm1890 = vcmp.eq.f32.partialorder %v1752, %v1844
      %vm1891 = vcmp.eq.f32.partialorder %v1753, %v1881
      %vm1892 = vcmp.eq.f32.partialorder %v1754, %v1844
      %vm1893 = vcmp.eq.f32.partialorder %v1755, %v1881
      %vm1894 = vcmp.eq.f32.partialorder %v1756, %v1844
      %vm1895 = vcmp.eq.f32.partialorder %v1757, %v1881
      %vm1896 = vcmp.eq.f32.partialorder %v1758, %v1844
      %vm1897 = vcmp.eq.f32.partialorder %v1759, %v1881
      %vm1898 = vcmp.eq.f32.partialorder %v1760, %v1844
      %vm1899 = vcmp.eq.f32.partialorder %v1761, %v1881
      %vm1900 = vcmp.eq.f32.partialorder %v1762, %v1844
      %vm1901 = vcmp.eq.f32.partialorder %v1763, %v1881
      %vm1902 = vcmp.eq.f32.partialorder %v1764, %v1844
      %vm1903 = vcmp.eq.f32.partialorder %v1765, %v1881
      %vm1904 = vcmp.eq.f32.partialorder %v1766, %v1844
      %vm1905 = vcmp.eq.f32.partialorder %v1767, %v1881
      %vm1906 = vcmp.eq.f32.partialorder %v1768, %v1844
      %vm1907 = vcmp.eq.f32.partialorder %v1769, %v1881
      %vm1908 = vcmp.eq.f32.partialorder %v1770, %v1844
      %vm1909 = vcmp.eq.f32.partialorder %v1771, %v1881
      %vm1910 = vcmp.eq.f32.partialorder %v1772, %v1844
      %vm1911 = vcmp.eq.f32.partialorder %v1773, %v1881
      %vm1912 = vcmp.eq.f32.partialorder %v1774, %v1844
      %vm1913 = vcmp.eq.f32.partialorder %v1775, %v1881
      %vm1914 = vcmp.eq.f32.partialorder %v1776, %v1844
      %vm1915 = vcmp.eq.f32.partialorder %v1777, %v1881
      %vm1916 = vcmp.eq.f32.partialorder %v1778, %v1844
      %vm1917 = vcmp.eq.f32.partialorder %v1779, %v1881
      %vm1918 = vcmp.eq.f32.partialorder %v1780, %v1844
      %vm1919 = vcmp.eq.f32.partialorder %v1781, %v1881
      %vm1920 = vcmp.eq.f32.partialorder %v1782, %v1844
      %vm1921 = vcmp.eq.f32.partialorder %v1783, %v1881
      %vm1922 = vcmp.eq.f32.partialorder %v1784, %v1844
      %vm1923 = vcmp.eq.f32.partialorder %v1785, %v1881
      %vm1924 = vcmp.eq.f32.partialorder %v1786, %v1844
      %vm1925 = vcmp.eq.f32.partialorder %v1787, %v1881
      %vm1926 = vcmp.eq.f32.partialorder %v1788, %v1844
      %vm1927 = vcmp.eq.f32.partialorder %v1789, %v1881
      %vm1928 = vcmp.eq.f32.partialorder %v1790, %v1844
      %vm1929 = vcmp.eq.f32.partialorder %v1791, %v1881
      %vm1930 = vcmp.eq.f32.partialorder %v1792, %v1844
      %vm1931 = vcmp.eq.f32.partialorder %v1793, %v1881
      %vm1932 = vcmp.eq.f32.partialorder %v1794, %v1844
      %vm1933 = vcmp.eq.f32.partialorder %v1795, %v1881
      %vm1934 = vcmp.eq.f32.partialorder %v1796, %v1844
      %vm1935 = vcmp.eq.f32.partialorder %v1797, %v1881
      %vm1936 = vcmp.eq.f32.partialorder %v1798, %v1844
      %vm1937 = vcmp.eq.f32.partialorder %v1799, %v1881
      %vm1938 = vcmp.eq.f32.partialorder %v1800, %v1844
      %vm1939 = vcmp.eq.f32.partialorder %v1801, %v1881
      %vm1940 = vcmp.eq.f32.partialorder %v1802, %v1844
      %vm1941 = vcmp.eq.f32.partialorder %v1803, %v1881
      %vm1942 = vcmp.eq.f32.partialorder %v1804, %v1844
      %vm1943 = vcmp.eq.f32.partialorder %v1805, %v1881
      %vm1944 = vcmp.eq.f32.partialorder %v1806, %v1844
      %vm1945 = vcmp.eq.f32.partialorder %v1807, %v1881
      %v1946 = vsel %vm1882, %v624, 256
      %v1947 = vsel %vm1883, %v624, 256
      %v1948 = vsel %vm1884, %v625, 256
      %v1949 = vsel %vm1885, %v625, 256
      %v1950 = vsel %vm1886, %v626, 256
      %v1951 = vsel %vm1887, %v626, 256
      %v1952 = vsel %vm1888, %v627, 256
      %v1953 = vsel %vm1889, %v627, 256
      %v1954 = vsel %vm1890, %v628, 256
      %v1955 = vsel %vm1891, %v628, 256
      %v1956 = vsel %vm1892, %v629, 256
      %v1957 = vsel %vm1893, %v629, 256
      %v1958 = vsel %vm1894, %v630, 256
      %v1959 = vsel %vm1895, %v630, 256
      %v1960 = vsel %vm1896, %v631, 256
      %v1961 = vsel %vm1897, %v631, 256
      %v1962 = vsel %vm1898, %v632, 256
      %v1963 = vsel %vm1899, %v632, 256
      %v1964 = vsel %vm1900, %v633, 256
      %v1965 = vsel %vm1901, %v633, 256
      %v1966 = vsel %vm1902, %v634, 256
      %v1967 = vsel %vm1903, %v634, 256
      %v1968 = vsel %vm1904, %v635, 256
      %v1969 = vsel %vm1905, %v635, 256
      %v1970 = vsel %vm1906, %v636, 256
      %v1971 = vsel %vm1907, %v636, 256
      %v1972 = vsel %vm1908, %v637, 256
      %v1973 = vsel %vm1909, %v637, 256
      %v1974 = vsel %vm1910, %v638, 256
      %v1975 = vsel %vm1911, %v638, 256
      %v1976 = vsel %vm1912, %v639, 256
      %v1977 = vsel %vm1913, %v639, 256
      %v1978 = vsel %vm1914, %v640, 256
      %v1979 = vsel %vm1915, %v640, 256
      %v1980 = vsel %vm1916, %v641, 256
      %v1981 = vsel %vm1917, %v641, 256
      %v1982 = vsel %vm1918, %v642, 256
      %v1983 = vsel %vm1919, %v642, 256
      %v1984 = vsel %vm1920, %v643, 256
      %v1985 = vsel %vm1921, %v643, 256
      %v1986 = vsel %vm1922, %v644, 256
      %v1987 = vsel %vm1923, %v644, 256
      %v1988 = vsel %vm1924, %v645, 256
      %v1989 = vsel %vm1925, %v645, 256
      %v1990 = vsel %vm1926, %v646, 256
      %v1991 = vsel %vm1927, %v646, 256
      %v1992 = vsel %vm1928, %v647, 256
      %v1993 = vsel %vm1929, %v647, 256
      %v1994 = vsel %vm1930, %v648, 256
      %v1995 = vsel %vm1931, %v648, 256
      %v1996 = vsel %vm1932, %v649, 256
      %v1997 = vsel %vm1933, %v649, 256
      %v1998 = vsel %vm1934, %v650, 256
      %v1999 = vsel %vm1935, %v650, 256
      %v2000 = vsel %vm1936, %v651, 256
      %v2001 = vsel %vm1937, %v651, 256
      %v2002 = vsel %vm1938, %v652, 256
      %v2003 = vsel %vm1939, %v652, 256
      %v2004 = vsel %vm1940, %v653, 256
      %v2005 = vsel %vm1941, %v653, 256
      %v2006 = vsel %vm1942, %v654, 256
      %v2007 = vsel %vm1943, %v654, 256
      %v2008 = vsel %vm1944, %v655, 256
      %v2009 = vsel %vm1945, %v655, 256
      %vm2010 = vcmp.lt.s32.totalorder %v1946, %v1950
      %v2011 = vsel %vm2010, %v1946, %v1950
      %vm2012 = vcmp.lt.s32.totalorder %v1948, %v1952
      %v2013 = vsel %vm2012, %v1948, %v1952
      %vm2014 = vcmp.lt.s32.totalorder %v2011, %v1954
      %v2015 = vsel %vm2014, %v2011, %v1954
      %vm2016 = vcmp.lt.s32.totalorder %v2013, %v1956
      %v2017 = vsel %vm2016, %v2013, %v1956
      %vm2018 = vcmp.lt.s32.totalorder %v2015, %v1958
      %v2019 = vsel %vm2018, %v2015, %v1958
      %vm2020 = vcmp.lt.s32.totalorder %v2017, %v1960
      %v2021 = vsel %vm2020, %v2017, %v1960
      %vm2022 = vcmp.lt.s32.totalorder %v2019, %v1962
      %v2023 = vsel %vm2022, %v2019, %v1962
      %vm2024 = vcmp.lt.s32.totalorder %v2021, %v1964
      %v2025 = vsel %vm2024, %v2021, %v1964
      %vm2026 = vcmp.lt.s32.totalorder %v2023, %v1966
      %v2027 = vsel %vm2026, %v2023, %v1966
      %vm2028 = vcmp.lt.s32.totalorder %v2025, %v1968
      %v2029 = vsel %vm2028, %v2025, %v1968
      %vm2030 = vcmp.lt.s32.totalorder %v2027, %v1970
      %v2031 = vsel %vm2030, %v2027, %v1970
      %vm2032 = vcmp.lt.s32.totalorder %v2029, %v1972
      %v2033 = vsel %vm2032, %v2029, %v1972
      %vm2034 = vcmp.lt.s32.totalorder %v2031, %v1974
      %v2035 = vsel %vm2034, %v2031, %v1974
      %vm2036 = vcmp.lt.s32.totalorder %v2033, %v1976
      %v2037 = vsel %vm2036, %v2033, %v1976
      %vm2038 = vcmp.lt.s32.totalorder %v2035, %v1978
      %v2039 = vsel %vm2038, %v2035, %v1978
      %vm2040 = vcmp.lt.s32.totalorder %v2037, %v1980
      %v2041 = vsel %vm2040, %v2037, %v1980
      %vm2042 = vcmp.lt.s32.totalorder %v2039, %v1982
      %v2043 = vsel %vm2042, %v2039, %v1982
      %vm2044 = vcmp.lt.s32.totalorder %v2041, %v1984
      %v2045 = vsel %vm2044, %v2041, %v1984
      %vm2046 = vcmp.lt.s32.totalorder %v2043, %v1986
      %v2047 = vsel %vm2046, %v2043, %v1986
      %vm2048 = vcmp.lt.s32.totalorder %v2045, %v1988
      %v2049 = vsel %vm2048, %v2045, %v1988
      %vm2050 = vcmp.lt.s32.totalorder %v2047, %v1990
      %v2051 = vsel %vm2050, %v2047, %v1990
      %vm2052 = vcmp.lt.s32.totalorder %v2049, %v1992
      %v2053 = vsel %vm2052, %v2049, %v1992
      %vm2054 = vcmp.lt.s32.totalorder %v2051, %v1994
      %v2055 = vsel %vm2054, %v2051, %v1994
      %vm2056 = vcmp.lt.s32.totalorder %v2053, %v1996
      %v2057 = vsel %vm2056, %v2053, %v1996
      %vm2058 = vcmp.lt.s32.totalorder %v2055, %v1998
      %v2059 = vsel %vm2058, %v2055, %v1998
      %vm2060 = vcmp.lt.s32.totalorder %v2057, %v2000
      %v2061 = vsel %vm2060, %v2057, %v2000
      %vm2062 = vcmp.lt.s32.totalorder %v2059, %v2002
      %v2063 = vsel %vm2062, %v2059, %v2002
      %vm2064 = vcmp.lt.s32.totalorder %v2061, %v2004
      %v2065 = vsel %vm2064, %v2061, %v2004
      %vm2066 = vcmp.lt.s32.totalorder %v2063, %v2006
      %v2067 = vsel %vm2066, %v2063, %v2006
      %vm2068 = vcmp.lt.s32.totalorder %v2065, %v2008
      %v2069 = vsel %vm2068, %v2065, %v2008
      %vm2070 = vcmp.lt.s32.totalorder %v2067, %v2069
      %v2071 = vsel %vm2070, %v2067, %v2069
      %v2072 = vrot.slane %v2071, 4
      %vm2073 = vcmp.lt.s32.totalorder %v2071, %v2072
      %v2074 = vsel %vm2073, %v2071, %v2072
      %v2075 = vrot.slane %v2074, 2
      %vm2076 = vcmp.lt.s32.totalorder %v2074, %v2075
      %v2077 = vsel %vm2076, %v2074, %v2075
      %v2078 = vrot.slane %v2077, 1
      %vm2079 = vcmp.lt.s32.totalorder %v2077, %v2078
      %v2080 = vsel %vm2079, %v2077, %v2078
      %vm2081 = vcmp.lt.s32.totalorder %v1947, %v1951
      %v2082 = vsel %vm2081, %v1947, %v1951
      %vm2083 = vcmp.lt.s32.totalorder %v1949, %v1953
      %v2084 = vsel %vm2083, %v1949, %v1953
      %vm2085 = vcmp.lt.s32.totalorder %v2082, %v1955
      %v2086 = vsel %vm2085, %v2082, %v1955
      %vm2087 = vcmp.lt.s32.totalorder %v2084, %v1957
      %v2088 = vsel %vm2087, %v2084, %v1957
      %vm2089 = vcmp.lt.s32.totalorder %v2086, %v1959
      %v2090 = vsel %vm2089, %v2086, %v1959
      %vm2091 = vcmp.lt.s32.totalorder %v2088, %v1961
      %v2092 = vsel %vm2091, %v2088, %v1961
      %vm2093 = vcmp.lt.s32.totalorder %v2090, %v1963
      %v2094 = vsel %vm2093, %v2090, %v1963
      %vm2095 = vcmp.lt.s32.totalorder %v2092, %v1965
      %v2096 = vsel %vm2095, %v2092, %v1965
      %vm2097 = vcmp.lt.s32.totalorder %v2094, %v1967
      %v2098 = vsel %vm2097, %v2094, %v1967
      %vm2099 = vcmp.lt.s32.totalorder %v2096, %v1969
      %v2100 = vsel %vm2099, %v2096, %v1969
      %vm2101 = vcmp.lt.s32.totalorder %v2098, %v1971
      %v2102 = vsel %vm2101, %v2098, %v1971
      %vm2103 = vcmp.lt.s32.totalorder %v2100, %v1973
      %v2104 = vsel %vm2103, %v2100, %v1973
      %vm2105 = vcmp.lt.s32.totalorder %v2102, %v1975
      %v2106 = vsel %vm2105, %v2102, %v1975
      %vm2107 = vcmp.lt.s32.totalorder %v2104, %v1977
      %v2108 = vsel %vm2107, %v2104, %v1977
      %vm2109 = vcmp.lt.s32.totalorder %v2106, %v1979
      %v2110 = vsel %vm2109, %v2106, %v1979
      %vm2111 = vcmp.lt.s32.totalorder %v2108, %v1981
      %v2112 = vsel %vm2111, %v2108, %v1981
      %vm2113 = vcmp.lt.s32.totalorder %v2110, %v1983
      %v2114 = vsel %vm2113, %v2110, %v1983
      %vm2115 = vcmp.lt.s32.totalorder %v2112, %v1985
      %v2116 = vsel %vm2115, %v2112, %v1985
      %vm2117 = vcmp.lt.s32.totalorder %v2114, %v1987
      %v2118 = vsel %vm2117, %v2114, %v1987
      %vm2119 = vcmp.lt.s32.totalorder %v2116, %v1989
      %v2120 = vsel %vm2119, %v2116, %v1989
      %vm2121 = vcmp.lt.s32.totalorder %v2118, %v1991
      %v2122 = vsel %vm2121, %v2118, %v1991
      %vm2123 = vcmp.lt.s32.totalorder %v2120, %v1993
      %v2124 = vsel %vm2123, %v2120, %v1993
      %vm2125 = vcmp.lt.s32.totalorder %v2122, %v1995
      %v2126 = vsel %vm2125, %v2122, %v1995
      %vm2127 = vcmp.lt.s32.totalorder %v2124, %v1997
      %v2128 = vsel %vm2127, %v2124, %v1997
      %vm2129 = vcmp.lt.s32.totalorder %v2126, %v1999
      %v2130 = vsel %vm2129, %v2126, %v1999
      %vm2131 = vcmp.lt.s32.totalorder %v2128, %v2001
      %v2132 = vsel %vm2131, %v2128, %v2001
      %vm2133 = vcmp.lt.s32.totalorder %v2130, %v2003
      %v2134 = vsel %vm2133, %v2130, %v2003
      %vm2135 = vcmp.lt.s32.totalorder %v2132, %v2005
      %v2136 = vsel %vm2135, %v2132, %v2005
      %vm2137 = vcmp.lt.s32.totalorder %v2134, %v2007
      %v2138 = vsel %vm2137, %v2134, %v2007
      %vm2139 = vcmp.lt.s32.totalorder %v2136, %v2009
      %v2140 = vsel %vm2139, %v2136, %v2009
      %vm2141 = vcmp.lt.s32.totalorder %v2138, %v2140
      %v2142 = vsel %vm2141, %v2138, %v2140
      %v2143 = vrot.slane %v2142, 4
      %vm2144 = vcmp.lt.s32.totalorder %v2142, %v2143
      %v2145 = vsel %vm2144, %v2142, %v2143
      %v2146 = vrot.slane %v2145, 2
      %vm2147 = vcmp.lt.s32.totalorder %v2145, %v2146
      %v2148 = vsel %vm2147, %v2145, %v2146
      %v2149 = vrot.slane %v2148, 1
      %vm2150 = vcmp.lt.s32.totalorder %v2148, %v2149
      %v2151 = vsel %vm2150, %v2148, %v2149
      %vm2152 = vcmp.eq.s32.totalorder %v624, %v2080
      %vm2153 = vcmp.eq.s32.totalorder %v624, %v2151
      %vm2154 = vcmp.eq.s32.totalorder %v625, %v2080
      %vm2155 = vcmp.eq.s32.totalorder %v625, %v2151
      %vm2156 = vcmp.eq.s32.totalorder %v626, %v2080
      %vm2157 = vcmp.eq.s32.totalorder %v626, %v2151
      %vm2158 = vcmp.eq.s32.totalorder %v627, %v2080
      %vm2159 = vcmp.eq.s32.totalorder %v627, %v2151
      %vm2160 = vcmp.eq.s32.totalorder %v628, %v2080
      %vm2161 = vcmp.eq.s32.totalorder %v628, %v2151
      %vm2162 = vcmp.eq.s32.totalorder %v629, %v2080
      %vm2163 = vcmp.eq.s32.totalorder %v629, %v2151
      %vm2164 = vcmp.eq.s32.totalorder %v630, %v2080
      %vm2165 = vcmp.eq.s32.totalorder %v630, %v2151
      %vm2166 = vcmp.eq.s32.totalorder %v631, %v2080
      %vm2167 = vcmp.eq.s32.totalorder %v631, %v2151
      %vm2168 = vcmp.eq.s32.totalorder %v632, %v2080
      %vm2169 = vcmp.eq.s32.totalorder %v632, %v2151
      %vm2170 = vcmp.eq.s32.totalorder %v633, %v2080
      %vm2171 = vcmp.eq.s32.totalorder %v633, %v2151
      %vm2172 = vcmp.eq.s32.totalorder %v634, %v2080
      %vm2173 = vcmp.eq.s32.totalorder %v634, %v2151
      %vm2174 = vcmp.eq.s32.totalorder %v635, %v2080
      %vm2175 = vcmp.eq.s32.totalorder %v635, %v2151
      %vm2176 = vcmp.eq.s32.totalorder %v636, %v2080
      %vm2177 = vcmp.eq.s32.totalorder %v636, %v2151
      %vm2178 = vcmp.eq.s32.totalorder %v637, %v2080
      %vm2179 = vcmp.eq.s32.totalorder %v637, %v2151
      %vm2180 = vcmp.eq.s32.totalorder %v638, %v2080
      %vm2181 = vcmp.eq.s32.totalorder %v638, %v2151
      %vm2182 = vcmp.eq.s32.totalorder %v639, %v2080
      %vm2183 = vcmp.eq.s32.totalorder %v639, %v2151
      %vm2184 = vcmp.eq.s32.totalorder %v640, %v2080
      %vm2185 = vcmp.eq.s32.totalorder %v640, %v2151
      %vm2186 = vcmp.eq.s32.totalorder %v641, %v2080
      %vm2187 = vcmp.eq.s32.totalorder %v641, %v2151
      %vm2188 = vcmp.eq.s32.totalorder %v642, %v2080
      %vm2189 = vcmp.eq.s32.totalorder %v642, %v2151
      %vm2190 = vcmp.eq.s32.totalorder %v643, %v2080
      %vm2191 = vcmp.eq.s32.totalorder %v643, %v2151
      %vm2192 = vcmp.eq.s32.totalorder %v644, %v2080
      %vm2193 = vcmp.eq.s32.totalorder %v644, %v2151
      %vm2194 = vcmp.eq.s32.totalorder %v645, %v2080
      %vm2195 = vcmp.eq.s32.totalorder %v645, %v2151
      %vm2196 = vcmp.eq.s32.totalorder %v646, %v2080
      %vm2197 = vcmp.eq.s32.totalorder %v646, %v2151
      %vm2198 = vcmp.eq.s32.totalorder %v647, %v2080
      %vm2199 = vcmp.eq.s32.totalorder %v647, %v2151
      %vm2200 = vcmp.eq.s32.totalorder %v648, %v2080
      %vm2201 = vcmp.eq.s32.totalorder %v648, %v2151
      %vm2202 = vcmp.eq.s32.totalorder %v649, %v2080
      %vm2203 = vcmp.eq.s32.totalorder %v649, %v2151
      %vm2204 = vcmp.eq.s32.totalorder %v650, %v2080
      %vm2205 = vcmp.eq.s32.totalorder %v650, %v2151
      %vm2206 = vcmp.eq.s32.totalorder %v651, %v2080
      %vm2207 = vcmp.eq.s32.totalorder %v651, %v2151
      %vm2208 = vcmp.eq.s32.totalorder %v652, %v2080
      %vm2209 = vcmp.eq.s32.totalorder %v652, %v2151
      %vm2210 = vcmp.eq.s32.totalorder %v653, %v2080
      %vm2211 = vcmp.eq.s32.totalorder %v653, %v2151
      %vm2212 = vcmp.eq.s32.totalorder %v654, %v2080
      %vm2213 = vcmp.eq.s32.totalorder %v654, %v2151
      %vm2214 = vcmp.eq.s32.totalorder %v655, %v2080
      %vm2215 = vcmp.eq.s32.totalorder %v655, %v2151
      %v2216 = vsub.f32 %v1844, %v692
      %v2217 = vsub.f32 %v1881, %v729
      %v2218 = vmul.f32 %v2216, 1.442695
      %v2219 = vpow.pop %v2218
      %v2220 = vmul.f32 %v2217, 1.442695
      %v2221 = vpow.pop %v2220
      %v2222 = vadd.f32 %v1678, %v2219
      %v2223 = vadd.f32 %v1679, %v2221
      %v2224 = vadd.f32 %v1680, %v2219
      %v2225 = vadd.f32 %v1681, %v2221
      %v2226 = vadd.f32 %v1682, %v2219
      %v2227 = vadd.f32 %v1683, %v2221
      %v2228 = vadd.f32 %v1684, %v2219
      %v2229 = vadd.f32 %v1685, %v2221
      %v2230 = vadd.f32 %v1686, %v2219
      %v2231 = vadd.f32 %v1687, %v2221
      %v2232 = vadd.f32 %v1688, %v2219
      %v2233 = vadd.f32 %v1689, %v2221
      %v2234 = vadd.f32 %v1690, %v2219
      %v2235 = vadd.f32 %v1691, %v2221
      %v2236 = vadd.f32 %v1692, %v2219
      %v2237 = vadd.f32 %v1693, %v2221
      %v2238 = vadd.f32 %v1694, %v2219
      %v2239 = vadd.f32 %v1695, %v2221
      %v2240 = vadd.f32 %v1696, %v2219
      %v2241 = vadd.f32 %v1697, %v2221
      %v2242 = vadd.f32 %v1698, %v2219
      %v2243 = vadd.f32 %v1699, %v2221
      %v2244 = vadd.f32 %v1700, %v2219
      %v2245 = vadd.f32 %v1701, %v2221
      %v2246 = vadd.f32 %v1702, %v2219
      %v2247 = vadd.f32 %v1703, %v2221
      %v2248 = vadd.f32 %v1704, %v2219
      %v2249 = vadd.f32 %v1705, %v2221
      %v2250 = vadd.f32 %v1706, %v2219
      %v2251 = vadd.f32 %v1707, %v2221
      %v2252 = vadd.f32 %v1708, %v2219
      %v2253 = vadd.f32 %v1709, %v2221
      %v2254 = vadd.f32 %v1710, %v2219
      %v2255 = vadd.f32 %v1711, %v2221
      %v2256 = vadd.f32 %v1712, %v2219
      %v2257 = vadd.f32 %v1713, %v2221
      %v2258 = vadd.f32 %v1714, %v2219
      %v2259 = vadd.f32 %v1715, %v2221
      %v2260 = vadd.f32 %v1716, %v2219
      %v2261 = vadd.f32 %v1717, %v2221
      %v2262 = vadd.f32 %v1718, %v2219
      %v2263 = vadd.f32 %v1719, %v2221
      %v2264 = vadd.f32 %v1720, %v2219
      %v2265 = vadd.f32 %v1721, %v2221
      %v2266 = vadd.f32 %v1722, %v2219
      %v2267 = vadd.f32 %v1723, %v2221
      %v2268 = vadd.f32 %v1724, %v2219
      %v2269 = vadd.f32 %v1725, %v2221
      %v2270 = vadd.f32 %v1726, %v2219
      %v2271 = vadd.f32 %v1727, %v2221
      %v2272 = vadd.f32 %v1728, %v2219
      %v2273 = vadd.f32 %v1729, %v2221
      %v2274 = vadd.f32 %v1730, %v2219
      %v2275 = vadd.f32 %v1731, %v2221
      %v2276 = vadd.f32 %v1732, %v2219
      %v2277 = vadd.f32 %v1733, %v2221
      %v2278 = vadd.f32 %v1734, %v2219
      %v2279 = vadd.f32 %v1735, %v2221
      %v2280 = vadd.f32 %v1736, %v2219
      %v2281 = vadd.f32 %v1737, %v2221
      %v2282 = vadd.f32 %v1738, %v2219
      %v2283 = vadd.f32 %v1739, %v2221
      %v2284 = vadd.f32 %v1740, %v2219
      %v2285 = vadd.f32 %v1741, %v2221
      %v2286 = vsel %vm2152, %v2222, %v1678
      %v2287 = vsel %vm2153, %v2223, %v1679
      %v2288 = vsel %vm2154, %v2224, %v1680
      %v2289 = vsel %vm2155, %v2225, %v1681
      %v2290 = vsel %vm2156, %v2226, %v1682
      %v2291 = vsel %vm2157, %v2227, %v1683
      %v2292 = vsel %vm2158, %v2228, %v1684
      %v2293 = vsel %vm2159, %v2229, %v1685
      %v2294 = vsel %vm2160, %v2230, %v1686
      %v2295 = vsel %vm2161, %v2231, %v1687
      %v2296 = vsel %vm2162, %v2232, %v1688
      %v2297 = vsel %vm2163, %v2233, %v1689
      %v2298 = vsel %vm2164, %v2234, %v1690
      %v2299 = vsel %vm2165, %v2235, %v1691
      %v2300 = vsel %vm2166, %v2236, %v1692
      %v2301 = vsel %vm2167, %v2237, %v1693
      %v2302 = vsel %vm2168, %v2238, %v1694
      %v2303 = vsel %vm2169, %v2239, %v1695
      %v2304 = vsel %vm2170, %v2240, %v1696
      %v2305 = vsel %vm2171, %v2241, %v1697
      %v2306 = vsel %vm2172, %v2242, %v1698
      %v2307 = vsel %vm2173, %v2243, %v1699
      %v2308 = vsel %vm2174, %v2244, %v1700
      %v2309 = vsel %vm2175, %v2245, %v1701
      %v2310 = vsel %vm2176, %v2246, %v1702
      %v2311 = vsel %vm2177, %v2247, %v1703
      %v2312 = vsel %vm2178, %v2248, %v1704
      %v2313 = vsel %vm2179, %v2249, %v1705
      %v2314 = vsel %vm2180, %v2250, %v1706
      %v2315 = vsel %vm2181, %v2251, %v1707
      %v2316 = vsel %vm2182, %v2252, %v1708
      %v2317 = vsel %vm2183, %v2253, %v1709
      %v2318 = vsel %vm2184, %v2254, %v1710
      %v2319 = vsel %vm2185, %v2255, %v1711
      %v2320 = vsel %vm2186, %v2256, %v1712
      %v2321 = vsel %vm2187, %v2257, %v1713
      %v2322 = vsel %vm2188, %v2258, %v1714
      %v2323 = vsel %vm2189, %v2259, %v1715
      %v2324 = vsel %vm2190, %v2260, %v1716
      %v2325 = vsel %vm2191, %v2261, %v1717
      %v2326 = vsel %vm2192, %v2262, %v1718
      %v2327 = vsel %vm2193, %v2263, %v1719
      %v2328 = vsel %vm2194, %v2264, %v1720
      %v2329 = vsel %vm2195, %v2265, %v1721
      %v2330 = vsel %vm2196, %v2266, %v1722
      %v2331 = vsel %vm2197, %v2267, %v1723
      %v2332 = vsel %vm2198, %v2268, %v1724
      %v2333 = vsel %vm2199, %v2269, %v1725
      %v2334 = vsel %vm2200, %v2270, %v1726
      %v2335 = vsel %vm2201, %v2271, %v1727
      %v2336 = vsel %vm2202, %v2272, %v1728
      %v2337 = vsel %vm2203, %v2273, %v1729
      %v2338 = vsel %vm2204, %v2274, %v1730
      %v2339 = vsel %vm2205, %v2275, %v1731
      %v2340 = vsel %vm2206, %v2276, %v1732
      %v2341 = vsel %vm2207, %v2277, %v1733
      %v2342 = vsel %vm2208, %v2278, %v1734
      %v2343 = vsel %vm2209, %v2279, %v1735
      %v2344 = vsel %vm2210, %v2280, %v1736
      %v2345 = vsel %vm2211, %v2281, %v1737
      %v2346 = vsel %vm2212, %v2282, %v1738
      %v2347 = vsel %vm2213, %v2283, %v1739
      %v2348 = vsel %vm2214, %v2284, %v1740
      %v2349 = vsel %vm2215, %v2285, %v1741
      %v2350 = vadd.f32 %v1742, %v2219
      %v2351 = vadd.f32 %v1743, %v2221
      %v2352 = vsel %vm2152, -inf, %v1744
      %v2353 = vsel %vm2153, -inf, %v1745
      %v2354 = vsel %vm2154, -inf, %v1746
      %v2355 = vsel %vm2155, -inf, %v1747
      %v2356 = vsel %vm2156, -inf, %v1748
      %v2357 = vsel %vm2157, -inf, %v1749
      %v2358 = vsel %vm2158, -inf, %v1750
      %v2359 = vsel %vm2159, -inf, %v1751
      %v2360 = vsel %vm2160, -inf, %v1752
      %v2361 = vsel %vm2161, -inf, %v1753
      %v2362 = vsel %vm2162, -inf, %v1754
      %v2363 = vsel %vm2163, -inf, %v1755
      %v2364 = vsel %vm2164, -inf, %v1756
      %v2365 = vsel %vm2165, -inf, %v1757
      %v2366 = vsel %vm2166, -inf, %v1758
      %v2367 = vsel %vm2167, -inf, %v1759
      %v2368 = vsel %vm2168, -inf, %v1760
      %v2369 = vsel %vm2169, -inf, %v1761
      %v2370 = vsel %vm2170, -inf, %v1762
      %v2371 = vsel %vm2171, -inf, %v1763
      %v2372 = vsel %vm2172, -inf, %v1764
      %v2373 = vsel %vm2173, -inf, %v1765
      %v2374 = vsel %vm2174, -inf, %v1766
      %v2375 = vsel %vm2175, -inf, %v1767
      %v2376 = vsel %vm2176, -inf, %v1768
      %v2377 = vsel %vm2177, -inf, %v1769
      %v2378 = vsel %vm2178, -inf, %v1770
      %v2379 = vsel %vm2179, -inf, %v1771
      %v2380 = vsel %vm2180, -inf, %v1772
      %v2381 = vsel %vm2181, -inf, %v1773
      %v2382 = vsel %vm2182, -inf, %v1774
      %v2383 = vsel %vm2183, -inf, %v1775
      %v2384 = vsel %vm2184, -inf, %v1776
      %v2385 = vsel %vm2185, -inf, %v1777
      %v2386 = vsel %vm2186, -inf, %v1778
      %v2387 = vsel %vm2187, -inf, %v1779
      %v2388 = vsel %vm2188, -inf, %v1780
      %v2389 = vsel %vm2189, -inf, %v1781
      %v2390 = vsel %vm2190, -inf, %v1782
      %v2391 = vsel %vm2191, -inf, %v1783
      %v2392 = vsel %vm2192, -inf, %v1784
      %v2393 = vsel %vm2193, -inf, %v1785
      %v2394 = vsel %vm2194, -inf, %v1786
      %v2395 = vsel %vm2195, -inf, %v1787
      %v2396 = vsel %vm2196, -inf, %v1788
      %v2397 = vsel %vm2197, -inf, %v1789
      %v2398 = vsel %vm2198, -inf, %v1790
      %v2399 = vsel %vm2199, -inf, %v1791
      %v2400 = vsel %vm2200, -inf, %v1792
      %v2401 = vsel %vm2201, -inf, %v1793
      %v2402 = vsel %vm2202, -inf, %v1794
      %v2403 = vsel %vm2203, -inf, %v1795
      %v2404 = vsel %vm2204, -inf, %v1796
      %v2405 = vsel %vm2205, -inf, %v1797
      %v2406 = vsel %vm2206, -inf, %v1798
      %v2407 = vsel %vm2207, -inf, %v1799
      %v2408 = vsel %vm2208, -inf, %v1800
      %v2409 = vsel %vm2209, -inf, %v1801
      %v2410 = vsel %vm2210, -inf, %v1802
      %v2411 = vsel %vm2211, -inf, %v1803
      %v2412 = vsel %vm2212, -inf, %v1804
      %v2413 = vsel %vm2213, -inf, %v1805
      %v2414 = vsel %vm2214, -inf, %v1806
      %v2415 = vsel %vm2215, -inf, %v1807
      %v2416 = vmax.f32 %v2352, %v2356
      %v2417 = vmax.f32 %v2354, %v2358
      %v2418 = vmax.f32 %v2416, %v2360
      %v2419 = vmax.f32 %v2417, %v2362
      %v2420 = vmax.f32 %v2418, %v2364
      %v2421 = vmax.f32 %v2419, %v2366
      %v2422 = vmax.f32 %v2420, %v2368
      %v2423 = vmax.f32 %v2421, %v2370
      %v2424 = vmax.f32 %v2422, %v2372
      %v2425 = vmax.f32 %v2423, %v2374
      %v2426 = vmax.f32 %v2424, %v2376
      %v2427 = vmax.f32 %v2425, %v2378
      %v2428 = vmax.f32 %v2426, %v2380
      %v2429 = vmax.f32 %v2427, %v2382
      %v2430 = vmax.f32 %v2428, %v2384
      %v2431 = vmax.f32 %v2429, %v2386
      %v2432 = vmax.f32 %v2430, %v2388
      %v2433 = vmax.f32 %v2431, %v2390
      %v2434 = vmax.f32 %v2432, %v2392
      %v2435 = vmax.f32 %v2433, %v2394
      %v2436 = vmax.f32 %v2434, %v2396
      %v2437 = vmax.f32 %v2435, %v2398
      %v2438 = vmax.f32 %v2436, %v2400
      %v2439 = vmax.f32 %v2437, %v2402
      %v2440 = vmax.f32 %v2438, %v2404
      %v2441 = vmax.f32 %v2439, %v2406
      %v2442 = vmax.f32 %v2440, %v2408
      %v2443 = vmax.f32 %v2441, %v2410
      %v2444 = vmax.f32 %v2442, %v2412
      %v2445 = vmax.f32 %v2443, %v2414
      %v2446 = vmax.f32 %v2444, %v2445
      %v2447 = vrot.slane %v2446, 4
      %v2448 = vmax.f32 %v2446, %v2447
      %v2449 = vrot.slane %v2448, 2
      %v2450 = vmax.f32 %v2448, %v2449
      %v2451 = vrot.slane %v2450, 1
      %v2452 = vmax.f32 %v2450, %v2451
      %v2453 = vmax.f32 %v2353, %v2357
      %v2454 = vmax.f32 %v2355, %v2359
      %v2455 = vmax.f32 %v2453, %v2361
      %v2456 = vmax.f32 %v2454, %v2363
      %v2457 = vmax.f32 %v2455, %v2365
      %v2458 = vmax.f32 %v2456, %v2367
      %v2459 = vmax.f32 %v2457, %v2369
      %v2460 = vmax.f32 %v2458, %v2371
      %v2461 = vmax.f32 %v2459, %v2373
      %v2462 = vmax.f32 %v2460, %v2375
      %v2463 = vmax.f32 %v2461, %v2377
      %v2464 = vmax.f32 %v2462, %v2379
      %v2465 = vmax.f32 %v2463, %v2381
      %v2466 = vmax.f32 %v2464, %v2383
      %v2467 = vmax.f32 %v2465, %v2385
      %v2468 = vmax.f32 %v2466, %v2387
      %v2469 = vmax.f32 %v2467, %v2389
      %v2470 = vmax.f32 %v2468, %v2391
      %v2471 = vmax.f32 %v2469, %v2393
      %v2472 = vmax.f32 %v2470, %v2395
      %v2473 = vmax.f32 %v2471, %v2397
      %v2474 = vmax.f32 %v2472, %v2399
      %v2475 = vmax.f32 %v2473, %v2401
      %v2476 = vmax.f32 %v2474, %v2403
      %v2477 = vmax.f32 %v2475, %v2405
      %v2478 = vmax.f32 %v2476, %v2407
      %v2479 = vmax.f32 %v2477, %v2409
      %v2480 = vmax.f32 %v2478, %v2411
      %v2481 = vmax.f32 %v2479, %v2413
      %v2482 = vmax.f32 %v2480, %v2415
      %v2483 = vmax.f32 %v2481, %v2482
      %v2484 = vrot.slane %v2483, 4
      %v2485 = vmax.f32 %v2483, %v2484
      %v2486 = vrot.slane %v2485, 2
      %v2487 = vmax.f32 %v2485, %v2486
      %v2488 = vrot.slane %v2487, 1
      %v2489 = vmax.f32 %v2487, %v2488
      %vm2490 = vcmp.eq.f32.partialorder %v2352, %v2452
      %vm2491 = vcmp.eq.f32.partialorder %v2353, %v2489
      %vm2492 = vcmp.eq.f32.partialorder %v2354, %v2452
      %vm2493 = vcmp.eq.f32.partialorder %v2355, %v2489
      %vm2494 = vcmp.eq.f32.partialorder %v2356, %v2452
      %vm2495 = vcmp.eq.f32.partialorder %v2357, %v2489
      %vm2496 = vcmp.eq.f32.partialorder %v2358, %v2452
      %vm2497 = vcmp.eq.f32.partialorder %v2359, %v2489
      %vm2498 = vcmp.eq.f32.partialorder %v2360, %v2452
      %vm2499 = vcmp.eq.f32.partialorder %v2361, %v2489
      %vm2500 = vcmp.eq.f32.partialorder %v2362, %v2452
      %vm2501 = vcmp.eq.f32.partialorder %v2363, %v2489
      %vm2502 = vcmp.eq.f32.partialorder %v2364, %v2452
      %vm2503 = vcmp.eq.f32.partialorder %v2365, %v2489
      %vm2504 = vcmp.eq.f32.partialorder %v2366, %v2452
      %vm2505 = vcmp.eq.f32.partialorder %v2367, %v2489
      %vm2506 = vcmp.eq.f32.partialorder %v2368, %v2452
      %vm2507 = vcmp.eq.f32.partialorder %v2369, %v2489
      %vm2508 = vcmp.eq.f32.partialorder %v2370, %v2452
      %vm2509 = vcmp.eq.f32.partialorder %v2371, %v2489
      %vm2510 = vcmp.eq.f32.partialorder %v2372, %v2452
      %vm2511 = vcmp.eq.f32.partialorder %v2373, %v2489
      %vm2512 = vcmp.eq.f32.partialorder %v2374, %v2452
      %vm2513 = vcmp.eq.f32.partialorder %v2375, %v2489
      %vm2514 = vcmp.eq.f32.partialorder %v2376, %v2452
      %vm2515 = vcmp.eq.f32.partialorder %v2377, %v2489
      %vm2516 = vcmp.eq.f32.partialorder %v2378, %v2452
      %vm2517 = vcmp.eq.f32.partialorder %v2379, %v2489
      %vm2518 = vcmp.eq.f32.partialorder %v2380, %v2452
      %vm2519 = vcmp.eq.f32.partialorder %v2381, %v2489
      %vm2520 = vcmp.eq.f32.partialorder %v2382, %v2452
      %vm2521 = vcmp.eq.f32.partialorder %v2383, %v2489
      %vm2522 = vcmp.eq.f32.partialorder %v2384, %v2452
      %vm2523 = vcmp.eq.f32.partialorder %v2385, %v2489
      %vm2524 = vcmp.eq.f32.partialorder %v2386, %v2452
      %vm2525 = vcmp.eq.f32.partialorder %v2387, %v2489
      %vm2526 = vcmp.eq.f32.partialorder %v2388, %v2452
      %vm2527 = vcmp.eq.f32.partialorder %v2389, %v2489
      %vm2528 = vcmp.eq.f32.partialorder %v2390, %v2452
      %vm2529 = vcmp.eq.f32.partialorder %v2391, %v2489
      %vm2530 = vcmp.eq.f32.partialorder %v2392, %v2452
      %vm2531 = vcmp.eq.f32.partialorder %v2393, %v2489
      %vm2532 = vcmp.eq.f32.partialorder %v2394, %v2452
      %vm2533 = vcmp.eq.f32.partialorder %v2395, %v2489
      %vm2534 = vcmp.eq.f32.partialorder %v2396, %v2452
      %vm2535 = vcmp.eq.f32.partialorder %v2397, %v2489
      %vm2536 = vcmp.eq.f32.partialorder %v2398, %v2452
      %vm2537 = vcmp.eq.f32.partialorder %v2399, %v2489
      %vm2538 = vcmp.eq.f32.partialorder %v2400, %v2452
      %vm2539 = vcmp.eq.f32.partialorder %v2401, %v2489
      %vm2540 = vcmp.eq.f32.partialorder %v2402, %v2452
      %vm2541 = vcmp.eq.f32.partialorder %v2403, %v2489
      %vm2542 = vcmp.eq.f32.partialorder %v2404, %v2452
      %vm2543 = vcmp.eq.f32.partialorder %v2405, %v2489
      %vm2544 = vcmp.eq.f32.partialorder %v2406, %v2452
      %vm2545 = vcmp.eq.f32.partialorder %v2407, %v2489
      %vm2546 = vcmp.eq.f32.partialorder %v2408, %v2452
      %vm2547 = vcmp.eq.f32.partialorder %v2409, %v2489
      %vm2548 = vcmp.eq.f32.partialorder %v2410, %v2452
      %vm2549 = vcmp.eq.f32.partialorder %v2411, %v2489
      %vm2550 = vcmp.eq.f32.partialorder %v2412, %v2452
      %vm2551 = vcmp.eq.f32.partialorder %v2413, %v2489
      %vm2552 = vcmp.eq.f32.partialorder %v2414, %v2452
      %vm2553 = vcmp.eq.f32.partialorder %v2415, %v2489
      %v2554 = vsel %vm2490, %v624, 256
      %v2555 = vsel %vm2491, %v624, 256
      %v2556 = vsel %vm2492, %v625, 256
      %v2557 = vsel %vm2493, %v625, 256
      %v2558 = vsel %vm2494, %v626, 256
      %v2559 = vsel %vm2495, %v626, 256
      %v2560 = vsel %vm2496, %v627, 256
      %v2561 = vsel %vm2497, %v627, 256
      %v2562 = vsel %vm2498, %v628, 256
      %v2563 = vsel %vm2499, %v628, 256
      %v2564 = vsel %vm2500, %v629, 256
      %v2565 = vsel %vm2501, %v629, 256
      %v2566 = vsel %vm2502, %v630, 256
      %v2567 = vsel %vm2503, %v630, 256
      %v2568 = vsel %vm2504, %v631, 256
      %v2569 = vsel %vm2505, %v631, 256
      %v2570 = vsel %vm2506, %v632, 256
      %v2571 = vsel %vm2507, %v632, 256
      %v2572 = vsel %vm2508, %v633, 256
      %v2573 = vsel %vm2509, %v633, 256
      %v2574 = vsel %vm2510, %v634, 256
      %v2575 = vsel %vm2511, %v634, 256
      %v2576 = vsel %vm2512, %v635, 256
      %v2577 = vsel %vm2513, %v635, 256
      %v2578 = vsel %vm2514, %v636, 256
      %v2579 = vsel %vm2515, %v636, 256
      %v2580 = vsel %vm2516, %v637, 256
      %v2581 = vsel %vm2517, %v637, 256
      %v2582 = vsel %vm2518, %v638, 256
      %v2583 = vsel %vm2519, %v638, 256
      %v2584 = vsel %vm2520, %v639, 256
      %v2585 = vsel %vm2521, %v639, 256
      %v2586 = vsel %vm2522, %v640, 256
      %v2587 = vsel %vm2523, %v640, 256
      %v2588 = vsel %vm2524, %v641, 256
      %v2589 = vsel %vm2525, %v641, 256
      %v2590 = vsel %vm2526, %v642, 256
      %v2591 = vsel %vm2527, %v642, 256
      %v2592 = vsel %vm2528, %v643, 256
      %v2593 = vsel %vm2529, %v643, 256
      %v2594 = vsel %vm2530, %v644, 256
      %v2595 = vsel %vm2531, %v644, 256
      %v2596 = vsel %vm2532, %v645, 256
      %v2597 = vsel %vm2533, %v645, 256
      %v2598 = vsel %vm2534, %v646, 256
      %v2599 = vsel %vm2535, %v646, 256
      %v2600 = vsel %vm2536, %v647, 256
      %v2601 = vsel %vm2537, %v647, 256
      %v2602 = vsel %vm2538, %v648, 256
      %v2603 = vsel %vm2539, %v648, 256
      %v2604 = vsel %vm2540, %v649, 256
      %v2605 = vsel %vm2541, %v649, 256
      %v2606 = vsel %vm2542, %v650, 256
      %v2607 = vsel %vm2543, %v650, 256
      %v2608 = vsel %vm2544, %v651, 256
      %v2609 = vsel %vm2545, %v651, 256
      %v2610 = vsel %vm2546, %v652, 256
      %v2611 = vsel %vm2547, %v652, 256
      %v2612 = vsel %vm2548, %v653, 256
      %v2613 = vsel %vm2549, %v653, 256
      %v2614 = vsel %vm2550, %v654, 256
      %v2615 = vsel %vm2551, %v654, 256
      %v2616 = vsel %vm2552, %v655, 256
      %v2617 = vsel %vm2553, %v655, 256
      %vm2618 = vcmp.lt.s32.totalorder %v2554, %v2558
      %v2619 = vsel %vm2618, %v2554, %v2558
      %vm2620 = vcmp.lt.s32.totalorder %v2556, %v2560
      %v2621 = vsel %vm2620, %v2556, %v2560
      %vm2622 = vcmp.lt.s32.totalorder %v2619, %v2562
      %v2623 = vsel %vm2622, %v2619, %v2562
      %vm2624 = vcmp.lt.s32.totalorder %v2621, %v2564
      %v2625 = vsel %vm2624, %v2621, %v2564
      %vm2626 = vcmp.lt.s32.totalorder %v2623, %v2566
      %v2627 = vsel %vm2626, %v2623, %v2566
      %vm2628 = vcmp.lt.s32.totalorder %v2625, %v2568
      %v2629 = vsel %vm2628, %v2625, %v2568
      %vm2630 = vcmp.lt.s32.totalorder %v2627, %v2570
      %v2631 = vsel %vm2630, %v2627, %v2570
      %vm2632 = vcmp.lt.s32.totalorder %v2629, %v2572
      %v2633 = vsel %vm2632, %v2629, %v2572
      %vm2634 = vcmp.lt.s32.totalorder %v2631, %v2574
      %v2635 = vsel %vm2634, %v2631, %v2574
      %vm2636 = vcmp.lt.s32.totalorder %v2633, %v2576
      %v2637 = vsel %vm2636, %v2633, %v2576
      %vm2638 = vcmp.lt.s32.totalorder %v2635, %v2578
      %v2639 = vsel %vm2638, %v2635, %v2578
      %vm2640 = vcmp.lt.s32.totalorder %v2637, %v2580
      %v2641 = vsel %vm2640, %v2637, %v2580
      %vm2642 = vcmp.lt.s32.totalorder %v2639, %v2582
      %v2643 = vsel %vm2642, %v2639, %v2582
      %vm2644 = vcmp.lt.s32.totalorder %v2641, %v2584
      %v2645 = vsel %vm2644, %v2641, %v2584
      %vm2646 = vcmp.lt.s32.totalorder %v2643, %v2586
      %v2647 = vsel %vm2646, %v2643, %v2586
      %vm2648 = vcmp.lt.s32.totalorder %v2645, %v2588
      %v2649 = vsel %vm2648, %v2645, %v2588
      %vm2650 = vcmp.lt.s32.totalorder %v2647, %v2590
      %v2651 = vsel %vm2650, %v2647, %v2590
      %vm2652 = vcmp.lt.s32.totalorder %v2649, %v2592
      %v2653 = vsel %vm2652, %v2649, %v2592
      %vm2654 = vcmp.lt.s32.totalorder %v2651, %v2594
      %v2655 = vsel %vm2654, %v2651, %v2594
      %vm2656 = vcmp.lt.s32.totalorder %v2653, %v2596
      %v2657 = vsel %vm2656, %v2653, %v2596
      %vm2658 = vcmp.lt.s32.totalorder %v2655, %v2598
      %v2659 = vsel %vm2658, %v2655, %v2598
      %vm2660 = vcmp.lt.s32.totalorder %v2657, %v2600
      %v2661 = vsel %vm2660, %v2657, %v2600
      %vm2662 = vcmp.lt.s32.totalorder %v2659, %v2602
      %v2663 = vsel %vm2662, %v2659, %v2602
      %vm2664 = vcmp.lt.s32.totalorder %v2661, %v2604
      %v2665 = vsel %vm2664, %v2661, %v2604
      %vm2666 = vcmp.lt.s32.totalorder %v2663, %v2606
      %v2667 = vsel %vm2666, %v2663, %v2606
      %vm2668 = vcmp.lt.s32.totalorder %v2665, %v2608
      %v2669 = vsel %vm2668, %v2665, %v2608
      %vm2670 = vcmp.lt.s32.totalorder %v2667, %v2610
      %v2671 = vsel %vm2670, %v2667, %v2610
      %vm2672 = vcmp.lt.s32.totalorder %v2669, %v2612
      %v2673 = vsel %vm2672, %v2669, %v2612
      %vm2674 = vcmp.lt.s32.totalorder %v2671, %v2614
      %v2675 = vsel %vm2674, %v2671, %v2614
      %vm2676 = vcmp.lt.s32.totalorder %v2673, %v2616
      %v2677 = vsel %vm2676, %v2673, %v2616
      %vm2678 = vcmp.lt.s32.totalorder %v2675, %v2677
      %v2679 = vsel %vm2678, %v2675, %v2677
      %v2680 = vrot.slane %v2679, 4
      %vm2681 = vcmp.lt.s32.totalorder %v2679, %v2680
      %v2682 = vsel %vm2681, %v2679, %v2680
      %v2683 = vrot.slane %v2682, 2
      %vm2684 = vcmp.lt.s32.totalorder %v2682, %v2683
      %v2685 = vsel %vm2684, %v2682, %v2683
      %v2686 = vrot.slane %v2685, 1
      %vm2687 = vcmp.lt.s32.totalorder %v2685, %v2686
      %v2688 = vsel %vm2687, %v2685, %v2686
      %vm2689 = vcmp.lt.s32.totalorder %v2555, %v2559
      %v2690 = vsel %vm2689, %v2555, %v2559
      %vm2691 = vcmp.lt.s32.totalorder %v2557, %v2561
      %v2692 = vsel %vm2691, %v2557, %v2561
      %vm2693 = vcmp.lt.s32.totalorder %v2690, %v2563
      %v2694 = vsel %vm2693, %v2690, %v2563
      %vm2695 = vcmp.lt.s32.totalorder %v2692, %v2565
      %v2696 = vsel %vm2695, %v2692, %v2565
      %vm2697 = vcmp.lt.s32.totalorder %v2694, %v2567
      %v2698 = vsel %vm2697, %v2694, %v2567
      %vm2699 = vcmp.lt.s32.totalorder %v2696, %v2569
      %v2700 = vsel %vm2699, %v2696, %v2569
      %vm2701 = vcmp.lt.s32.totalorder %v2698, %v2571
      %v2702 = vsel %vm2701, %v2698, %v2571
      %vm2703 = vcmp.lt.s32.totalorder %v2700, %v2573
      %v2704 = vsel %vm2703, %v2700, %v2573
      %vm2705 = vcmp.lt.s32.totalorder %v2702, %v2575
      %v2706 = vsel %vm2705, %v2702, %v2575
      %vm2707 = vcmp.lt.s32.totalorder %v2704, %v2577
      %v2708 = vsel %vm2707, %v2704, %v2577
      %vm2709 = vcmp.lt.s32.totalorder %v2706, %v2579
      %v2710 = vsel %vm2709, %v2706, %v2579
      %vm2711 = vcmp.lt.s32.totalorder %v2708, %v2581
      %v2712 = vsel %vm2711, %v2708, %v2581
      %vm2713 = vcmp.lt.s32.totalorder %v2710, %v2583
      %v2714 = vsel %vm2713, %v2710, %v2583
      %vm2715 = vcmp.lt.s32.totalorder %v2712, %v2585
      %v2716 = vsel %vm2715, %v2712, %v2585
      %vm2717 = vcmp.lt.s32.totalorder %v2714, %v2587
      %v2718 = vsel %vm2717, %v2714, %v2587
      %vm2719 = vcmp.lt.s32.totalorder %v2716, %v2589
      %v2720 = vsel %vm2719, %v2716, %v2589
      %vm2721 = vcmp.lt.s32.totalorder %v2718, %v2591
      %v2722 = vsel %vm2721, %v2718, %v2591
      %vm2723 = vcmp.lt.s32.totalorder %v2720, %v2593
      %v2724 = vsel %vm2723, %v2720, %v2593
      %vm2725 = vcmp.lt.s32.totalorder %v2722, %v2595
      %v2726 = vsel %vm2725, %v2722, %v2595
      %vm2727 = vcmp.lt.s32.totalorder %v2724, %v2597
      %v2728 = vsel %vm2727, %v2724, %v2597
      %vm2729 = vcmp.lt.s32.totalorder %v2726, %v2599
      %v2730 = vsel %vm2729, %v2726, %v2599
      %vm2731 = vcmp.lt.s32.totalorder %v2728, %v2601
      %v2732 = vsel %vm2731, %v2728, %v2601
      %vm2733 = vcmp.lt.s32.totalorder %v2730, %v2603
      %v2734 = vsel %vm2733, %v2730, %v2603
      %vm2735 = vcmp.lt.s32.totalorder %v2732, %v2605
      %v2736 = vsel %vm2735, %v2732, %v2605
      %vm2737 = vcmp.lt.s32.totalorder %v2734, %v2607
      %v2738 = vsel %vm2737, %v2734, %v2607
      %vm2739 = vcmp.lt.s32.totalorder %v2736, %v2609
      %v2740 = vsel %vm2739, %v2736, %v2609
      %vm2741 = vcmp.lt.s32.totalorder %v2738, %v2611
      %v2742 = vsel %vm2741, %v2738, %v2611
      %vm2743 = vcmp.lt.s32.totalorder %v2740, %v2613
      %v2744 = vsel %vm2743, %v2740, %v2613
      %vm2745 = vcmp.lt.s32.totalorder %v2742, %v2615
      %v2746 = vsel %vm2745, %v2742, %v2615
      %vm2747 = vcmp.lt.s32.totalorder %v2744, %v2617
      %v2748 = vsel %vm2747, %v2744, %v2617
      %vm2749 = vcmp.lt.s32.totalorder %v2746, %v2748
      %v2750 = vsel %vm2749, %v2746, %v2748
      %v2751 = vrot.slane %v2750, 4
      %vm2752 = vcmp.lt.s32.totalorder %v2750, %v2751
      %v2753 = vsel %vm2752, %v2750, %v2751
      %v2754 = vrot.slane %v2753, 2
      %vm2755 = vcmp.lt.s32.totalorder %v2753, %v2754
      %v2756 = vsel %vm2755, %v2753, %v2754
      %v2757 = vrot.slane %v2756, 1
      %vm2758 = vcmp.lt.s32.totalorder %v2756, %v2757
      %v2759 = vsel %vm2758, %v2756, %v2757
      %vm2760 = vcmp.eq.s32.totalorder %v624, %v2688
      %vm2761 = vcmp.eq.s32.totalorder %v624, %v2759
      %vm2762 = vcmp.eq.s32.totalorder %v625, %v2688
      %vm2763 = vcmp.eq.s32.totalorder %v625, %v2759
      %vm2764 = vcmp.eq.s32.totalorder %v626, %v2688
      %vm2765 = vcmp.eq.s32.totalorder %v626, %v2759
      %vm2766 = vcmp.eq.s32.totalorder %v627, %v2688
      %vm2767 = vcmp.eq.s32.totalorder %v627, %v2759
      %vm2768 = vcmp.eq.s32.totalorder %v628, %v2688
      %vm2769 = vcmp.eq.s32.totalorder %v628, %v2759
      %vm2770 = vcmp.eq.s32.totalorder %v629, %v2688
      %vm2771 = vcmp.eq.s32.totalorder %v629, %v2759
      %vm2772 = vcmp.eq.s32.totalorder %v630, %v2688
      %vm2773 = vcmp.eq.s32.totalorder %v630, %v2759
      %vm2774 = vcmp.eq.s32.totalorder %v631, %v2688
      %vm2775 = vcmp.eq.s32.totalorder %v631, %v2759
      %vm2776 = vcmp.eq.s32.totalorder %v632, %v2688
      %vm2777 = vcmp.eq.s32.totalorder %v632, %v2759
      %vm2778 = vcmp.eq.s32.totalorder %v633, %v2688
      %vm2779 = vcmp.eq.s32.totalorder %v633, %v2759
      %vm2780 = vcmp.eq.s32.totalorder %v634, %v2688
      %vm2781 = vcmp.eq.s32.totalorder %v634, %v2759
      %vm2782 = vcmp.eq.s32.totalorder %v635, %v2688
      %vm2783 = vcmp.eq.s32.totalorder %v635, %v2759
      %vm2784 = vcmp.eq.s32.totalorder %v636, %v2688
      %vm2785 = vcmp.eq.s32.totalorder %v636, %v2759
      %vm2786 = vcmp.eq.s32.totalorder %v637, %v2688
      %vm2787 = vcmp.eq.s32.totalorder %v637, %v2759
      %vm2788 = vcmp.eq.s32.totalorder %v638, %v2688
      %vm2789 = vcmp.eq.s32.totalorder %v638, %v2759
      %vm2790 = vcmp.eq.s32.totalorder %v639, %v2688
      %vm2791 = vcmp.eq.s32.totalorder %v639, %v2759
      %vm2792 = vcmp.eq.s32.totalorder %v640, %v2688
      %vm2793 = vcmp.eq.s32.totalorder %v640, %v2759
      %vm2794 = vcmp.eq.s32.totalorder %v641, %v2688
      %vm2795 = vcmp.eq.s32.totalorder %v641, %v2759
      %vm2796 = vcmp.eq.s32.totalorder %v642, %v2688
      %vm2797 = vcmp.eq.s32.totalorder %v642, %v2759
      %vm2798 = vcmp.eq.s32.totalorder %v643, %v2688
      %vm2799 = vcmp.eq.s32.totalorder %v643, %v2759
      %vm2800 = vcmp.eq.s32.totalorder %v644, %v2688
      %vm2801 = vcmp.eq.s32.totalorder %v644, %v2759
      %vm2802 = vcmp.eq.s32.totalorder %v645, %v2688
      %vm2803 = vcmp.eq.s32.totalorder %v645, %v2759
      %vm2804 = vcmp.eq.s32.totalorder %v646, %v2688
      %vm2805 = vcmp.eq.s32.totalorder %v646, %v2759
      %vm2806 = vcmp.eq.s32.totalorder %v647, %v2688
      %vm2807 = vcmp.eq.s32.totalorder %v647, %v2759
      %vm2808 = vcmp.eq.s32.totalorder %v648, %v2688
      %vm2809 = vcmp.eq.s32.totalorder %v648, %v2759
      %vm2810 = vcmp.eq.s32.totalorder %v649, %v2688
      %vm2811 = vcmp.eq.s32.totalorder %v649, %v2759
      %vm2812 = vcmp.eq.s32.totalorder %v650, %v2688
      %vm2813 = vcmp.eq.s32.totalorder %v650, %v2759
      %vm2814 = vcmp.eq.s32.totalorder %v651, %v2688
      %vm2815 = vcmp.eq.s32.totalorder %v651, %v2759
      %vm2816 = vcmp.eq.s32.totalorder %v652, %v2688
      %vm2817 = vcmp.eq.s32.totalorder %v652, %v2759
      %vm2818 = vcmp.eq.s32.totalorder %v653, %v2688
      %vm2819 = vcmp.eq.s32.totalorder %v653, %v2759
      %vm2820 = vcmp.eq.s32.totalorder %v654, %v2688
      %vm2821 = vcmp.eq.s32.totalorder %v654, %v2759
      %vm2822 = vcmp.eq.s32.totalorder %v655, %v2688
      %vm2823 = vcmp.eq.s32.totalorder %v655, %v2759
      %v2824 = vsub.f32 %v2452, %v692
      %v2825 = vsub.f32 %v2489, %v729
      %v2826 = vmul.f32 %v2824, 1.442695
      %v2827 = vpow.pop %v2826
      %v2828 = vmul.f32 %v2825, 1.442695
      %v2829 = vpow.pop %v2828
      %v2830 = vadd.f32 %v2286, %v2827
      %v2831 = vadd.f32 %v2287, %v2829
      %v2832 = vadd.f32 %v2288, %v2827
      %v2833 = vadd.f32 %v2289, %v2829
      %v2834 = vadd.f32 %v2290, %v2827
      %v2835 = vadd.f32 %v2291, %v2829
      %v2836 = vadd.f32 %v2292, %v2827
      %v2837 = vadd.f32 %v2293, %v2829
      %v2838 = vadd.f32 %v2294, %v2827
      %v2839 = vadd.f32 %v2295, %v2829
      %v2840 = vadd.f32 %v2296, %v2827
      %v2841 = vadd.f32 %v2297, %v2829
      %v2842 = vadd.f32 %v2298, %v2827
      %v2843 = vadd.f32 %v2299, %v2829
      %v2844 = vadd.f32 %v2300, %v2827
      %v2845 = vadd.f32 %v2301, %v2829
      %v2846 = vadd.f32 %v2302, %v2827
      %v2847 = vadd.f32 %v2303, %v2829
      %v2848 = vadd.f32 %v2304, %v2827
      %v2849 = vadd.f32 %v2305, %v2829
      %v2850 = vadd.f32 %v2306, %v2827
      %v2851 = vadd.f32 %v2307, %v2829
      %v2852 = vadd.f32 %v2308, %v2827
      %v2853 = vadd.f32 %v2309, %v2829
      %v2854 = vadd.f32 %v2310, %v2827
      %v2855 = vadd.f32 %v2311, %v2829
      %v2856 = vadd.f32 %v2312, %v2827
      %v2857 = vadd.f32 %v2313, %v2829
      %v2858 = vadd.f32 %v2314, %v2827
      %v2859 = vadd.f32 %v2315, %v2829
      %v2860 = vadd.f32 %v2316, %v2827
      %v2861 = vadd.f32 %v2317, %v2829
      %v2862 = vadd.f32 %v2318, %v2827
      %v2863 = vadd.f32 %v2319, %v2829
      %v2864 = vadd.f32 %v2320, %v2827
      %v2865 = vadd.f32 %v2321, %v2829
      %v2866 = vadd.f32 %v2322, %v2827
      %v2867 = vadd.f32 %v2323, %v2829
      %v2868 = vadd.f32 %v2324, %v2827
      %v2869 = vadd.f32 %v2325, %v2829
      %v2870 = vadd.f32 %v2326, %v2827
      %v2871 = vadd.f32 %v2327, %v2829
      %v2872 = vadd.f32 %v2328, %v2827
      %v2873 = vadd.f32 %v2329, %v2829
      %v2874 = vadd.f32 %v2330, %v2827
      %v2875 = vadd.f32 %v2331, %v2829
      %v2876 = vadd.f32 %v2332, %v2827
      %v2877 = vadd.f32 %v2333, %v2829
      %v2878 = vadd.f32 %v2334, %v2827
      %v2879 = vadd.f32 %v2335, %v2829
      %v2880 = vadd.f32 %v2336, %v2827
      %v2881 = vadd.f32 %v2337, %v2829
      %v2882 = vadd.f32 %v2338, %v2827
      %v2883 = vadd.f32 %v2339, %v2829
      %v2884 = vadd.f32 %v2340, %v2827
      %v2885 = vadd.f32 %v2341, %v2829
      %v2886 = vadd.f32 %v2342, %v2827
      %v2887 = vadd.f32 %v2343, %v2829
      %v2888 = vadd.f32 %v2344, %v2827
      %v2889 = vadd.f32 %v2345, %v2829
      %v2890 = vadd.f32 %v2346, %v2827
      %v2891 = vadd.f32 %v2347, %v2829
      %v2892 = vadd.f32 %v2348, %v2827
      %v2893 = vadd.f32 %v2349, %v2829
      %v2894 = vsel %vm2760, %v2830, %v2286
      %v2895 = vsel %vm2761, %v2831, %v2287
      %v2896 = vsel %vm2762, %v2832, %v2288
      %v2897 = vsel %vm2763, %v2833, %v2289
      %v2898 = vsel %vm2764, %v2834, %v2290
      %v2899 = vsel %vm2765, %v2835, %v2291
      %v2900 = vsel %vm2766, %v2836, %v2292
      %v2901 = vsel %vm2767, %v2837, %v2293
      %v2902 = vsel %vm2768, %v2838, %v2294
      %v2903 = vsel %vm2769, %v2839, %v2295
      %v2904 = vsel %vm2770, %v2840, %v2296
      %v2905 = vsel %vm2771, %v2841, %v2297
      %v2906 = vsel %vm2772, %v2842, %v2298
      %v2907 = vsel %vm2773, %v2843, %v2299
      %v2908 = vsel %vm2774, %v2844, %v2300
      %v2909 = vsel %vm2775, %v2845, %v2301
      %v2910 = vsel %vm2776, %v2846, %v2302
      %v2911 = vsel %vm2777, %v2847, %v2303
      %v2912 = vsel %vm2778, %v2848, %v2304
      %v2913 = vsel %vm2779, %v2849, %v2305
      %v2914 = vsel %vm2780, %v2850, %v2306
      %v2915 = vsel %vm2781, %v2851, %v2307
      %v2916 = vsel %vm2782, %v2852, %v2308
      %v2917 = vsel %vm2783, %v2853, %v2309
      %v2918 = vsel %vm2784, %v2854, %v2310
      %v2919 = vsel %vm2785, %v2855, %v2311
      %v2920 = vsel %vm2786, %v2856, %v2312
      %v2921 = vsel %vm2787, %v2857, %v2313
      %v2922 = vsel %vm2788, %v2858, %v2314
      %v2923 = vsel %vm2789, %v2859, %v2315
      %v2924 = vsel %vm2790, %v2860, %v2316
      %v2925 = vsel %vm2791, %v2861, %v2317
      %v2926 = vsel %vm2792, %v2862, %v2318
      %v2927 = vsel %vm2793, %v2863, %v2319
      %v2928 = vsel %vm2794, %v2864, %v2320
      %v2929 = vsel %vm2795, %v2865, %v2321
      %v2930 = vsel %vm2796, %v2866, %v2322
      %v2931 = vsel %vm2797, %v2867, %v2323
      %v2932 = vsel %vm2798, %v2868, %v2324
      %v2933 = vsel %vm2799, %v2869, %v2325
      %v2934 = vsel %vm2800, %v2870, %v2326
      %v2935 = vsel %vm2801, %v2871, %v2327
      %v2936 = vsel %vm2802, %v2872, %v2328
      %v2937 = vsel %vm2803, %v2873, %v2329
      %v2938 = vsel %vm2804, %v2874, %v2330
      %v2939 = vsel %vm2805, %v2875, %v2331
      %v2940 = vsel %vm2806, %v2876, %v2332
      %v2941 = vsel %vm2807, %v2877, %v2333
      %v2942 = vsel %vm2808, %v2878, %v2334
      %v2943 = vsel %vm2809, %v2879, %v2335
      %v2944 = vsel %vm2810, %v2880, %v2336
      %v2945 = vsel %vm2811, %v2881, %v2337
      %v2946 = vsel %vm2812, %v2882, %v2338
      %v2947 = vsel %vm2813, %v2883, %v2339
      %v2948 = vsel %vm2814, %v2884, %v2340
      %v2949 = vsel %vm2815, %v2885, %v2341
      %v2950 = vsel %vm2816, %v2886, %v2342
      %v2951 = vsel %vm2817, %v2887, %v2343
      %v2952 = vsel %vm2818, %v2888, %v2344
      %v2953 = vsel %vm2819, %v2889, %v2345
      %v2954 = vsel %vm2820, %v2890, %v2346
      %v2955 = vsel %vm2821, %v2891, %v2347
      %v2956 = vsel %vm2822, %v2892, %v2348
      %v2957 = vsel %vm2823, %v2893, %v2349
      %v2958 = vadd.f32 %v2350, %v2827
      %v2959 = vadd.f32 %v2351, %v2829
      %v2960 = vrcp.pop %v2958
      %v2961 = vrcp.pop %v2959
      %v2962 = vmul.f32 %v2958, %v2960
      %v2963 = vmul.f32 %v2959, %v2961
      %v2964 = vsub.f32 2.0, %v2962
      %v2965 = vsub.f32 2.0, %v2963
      %v2966 = vmul.f32 %v2960, %v2964
      %v2967 = vmul.f32 %v2961, %v2965
      %v2968 = vmul.f32 %v2894, %v2966
      %v2969 = vmul.f32 %v2895, %v2967
      %v2970 = vmul.f32 %v2896, %v2966
      %v2971 = vmul.f32 %v2897, %v2967
      %v2972 = vmul.f32 %v2898, %v2966
      %v2973 = vmul.f32 %v2899, %v2967
      %v2974 = vmul.f32 %v2900, %v2966
      %v2975 = vmul.f32 %v2901, %v2967
      %v2976 = vmul.f32 %v2902, %v2966
      %v2977 = vmul.f32 %v2903, %v2967
      %v2978 = vmul.f32 %v2904, %v2966
      %v2979 = vmul.f32 %v2905, %v2967
      %v2980 = vmul.f32 %v2906, %v2966
      %v2981 = vmul.f32 %v2907, %v2967
      %v2982 = vmul.f32 %v2908, %v2966
      %v2983 = vmul.f32 %v2909, %v2967
      %v2984 = vmul.f32 %v2910, %v2966
      %v2985 = vmul.f32 %v2911, %v2967
      %v2986 = vmul.f32 %v2912, %v2966
      %v2987 = vmul.f32 %v2913, %v2967
      %v2988 = vmul.f32 %v2914, %v2966
      %v2989 = vmul.f32 %v2915, %v2967
      %v2990 = vmul.f32 %v2916, %v2966
      %v2991 = vmul.f32 %v2917, %v2967
      %v2992 = vmul.f32 %v2918, %v2966
      %v2993 = vmul.f32 %v2919, %v2967
      %v2994 = vmul.f32 %v2920, %v2966
      %v2995 = vmul.f32 %v2921, %v2967
      %v2996 = vmul.f32 %v2922, %v2966
      %v2997 = vmul.f32 %v2923, %v2967
      %v2998 = vmul.f32 %v2924, %v2966
      %v2999 = vmul.f32 %v2925, %v2967
      %v3000 = vmul.f32 %v2926, %v2966
      %v3001 = vmul.f32 %v2927, %v2967
      %v3002 = vmul.f32 %v2928, %v2966
      %v3003 = vmul.f32 %v2929, %v2967
      %v3004 = vmul.f32 %v2930, %v2966
      %v3005 = vmul.f32 %v2931, %v2967
      %v3006 = vmul.f32 %v2932, %v2966
      %v3007 = vmul.f32 %v2933, %v2967
      %v3008 = vmul.f32 %v2934, %v2966
      %v3009 = vmul.f32 %v2935, %v2967
      %v3010 = vmul.f32 %v2936, %v2966
      %v3011 = vmul.f32 %v2937, %v2967
      %v3012 = vmul.f32 %v2938, %v2966
      %v3013 = vmul.f32 %v2939, %v2967
      %v3014 = vmul.f32 %v2940, %v2966
      %v3015 = vmul.f32 %v2941, %v2967
      %v3016 = vmul.f32 %v2942, %v2966
      %v3017 = vmul.f32 %v2943, %v2967
      %v3018 = vmul.f32 %v2944, %v2966
      %v3019 = vmul.f32 %v2945, %v2967
      %v3020 = vmul.f32 %v2946, %v2966
      %v3021 = vmul.f32 %v2947, %v2967
      %v3022 = vmul.f32 %v2948, %v2966
      %v3023 = vmul.f32 %v2949, %v2967
      %v3024 = vmul.f32 %v2950, %v2966
      %v3025 = vmul.f32 %v2951, %v2967
      %v3026 = vmul.f32 %v2952, %v2966
      %v3027 = vmul.f32 %v2953, %v2967
      %v3028 = vmul.f32 %v2954, %v2966
      %v3029 = vmul.f32 %v2955, %v2967
      %v3030 = vmul.f32 %v2956, %v2966
      %v3031 = vmul.f32 %v2957, %v2967
      %v3032 = vsub.f32 %v2968, 1.0
      %v3033 = vsub.f32 %v2969, 1.0
      %v3034 = vsub.f32 %v2970, 1.0
      %v3035 = vsub.f32 %v2971, 1.0
      %v3036 = vsub.f32 %v2972, 1.0
      %v3037 = vsub.f32 %v2973, 1.0
      %v3038 = vsub.f32 %v2974, 1.0
      %v3039 = vsub.f32 %v2975, 1.0
      %v3040 = vsub.f32 %v2976, 1.0
      %v3041 = vsub.f32 %v2977, 1.0
      %v3042 = vsub.f32 %v2978, 1.0
      %v3043 = vsub.f32 %v2979, 1.0
      %v3044 = vsub.f32 %v2980, 1.0
      %v3045 = vsub.f32 %v2981, 1.0
      %v3046 = vsub.f32 %v2982, 1.0
      %v3047 = vsub.f32 %v2983, 1.0
      %v3048 = vsub.f32 %v2984, 1.0
      %v3049 = vsub.f32 %v2985, 1.0
      %v3050 = vsub.f32 %v2986, 1.0
      %v3051 = vsub.f32 %v2987, 1.0
      %v3052 = vsub.f32 %v2988, 1.0
      %v3053 = vsub.f32 %v2989, 1.0
      %v3054 = vsub.f32 %v2990, 1.0
      %v3055 = vsub.f32 %v2991, 1.0
      %v3056 = vsub.f32 %v2992, 1.0
      %v3057 = vsub.f32 %v2993, 1.0
      %v3058 = vsub.f32 %v2994, 1.0
      %v3059 = vsub.f32 %v2995, 1.0
      %v3060 = vsub.f32 %v2996, 1.0
      %v3061 = vsub.f32 %v2997, 1.0
      %v3062 = vsub.f32 %v2998, 1.0
      %v3063 = vsub.f32 %v2999, 1.0
      %v3064 = vsub.f32 %v3000, 1.0
      %v3065 = vsub.f32 %v3001, 1.0
      %v3066 = vsub.f32 %v3002, 1.0
      %v3067 = vsub.f32 %v3003, 1.0
      %v3068 = vsub.f32 %v3004, 1.0
      %v3069 = vsub.f32 %v3005, 1.0
      %v3070 = vsub.f32 %v3006, 1.0
      %v3071 = vsub.f32 %v3007, 1.0
      %v3072 = vsub.f32 %v3008, 1.0
      %v3073 = vsub.f32 %v3009, 1.0
      %v3074 = vsub.f32 %v3010, 1.0
      %v3075 = vsub.f32 %v3011, 1.0
      %v3076 = vsub.f32 %v3012, 1.0
      %v3077 = vsub.f32 %v3013, 1.0
      %v3078 = vsub.f32 %v3014, 1.0
      %v3079 = vsub.f32 %v3015, 1.0
      %v3080 = vsub.f32 %v3016, 1.0
      %v3081 = vsub.f32 %v3017, 1.0
      %v3082 = vsub.f32 %v3018, 1.0
      %v3083 = vsub.f32 %v3019, 1.0
      %v3084 = vsub.f32 %v3020, 1.0
      %v3085 = vsub.f32 %v3021, 1.0
      %v3086 = vsub.f32 %v3022, 1.0
      %v3087 = vsub.f32 %v3023, 1.0
      %v3088 = vsub.f32 %v3024, 1.0
      %v3089 = vsub.f32 %v3025, 1.0
      %v3090 = vsub.f32 %v3026, 1.0
      %v3091 = vsub.f32 %v3027, 1.0
      %v3092 = vsub.f32 %v3028, 1.0
      %v3093 = vsub.f32 %v3029, 1.0
      %v3094 = vsub.f32 %v3030, 1.0
      %v3095 = vsub.f32 %v3031, 1.0
      %v3096 = vsel %vm1000, %v3032, %v2968
      %v3097 = vsel %vm1001, %v3033, %v2969
      %v3098 = vsel %vm1002, %v3034, %v2970
      %v3099 = vsel %vm1003, %v3035, %v2971
      %v3100 = vsel %vm1004, %v3036, %v2972
      %v3101 = vsel %vm1005, %v3037, %v2973
      %v3102 = vsel %vm1006, %v3038, %v2974
      %v3103 = vsel %vm1007, %v3039, %v2975
      %v3104 = vsel %vm1008, %v3040, %v2976
      %v3105 = vsel %vm1009, %v3041, %v2977
      %v3106 = vsel %vm1010, %v3042, %v2978
      %v3107 = vsel %vm1011, %v3043, %v2979
      %v3108 = vsel %vm1012, %v3044, %v2980
      %v3109 = vsel %vm1013, %v3045, %v2981
      %v3110 = vsel %vm1014, %v3046, %v2982
      %v3111 = vsel %vm1015, %v3047, %v2983
      %v3112 = vsel %vm1016, %v3048, %v2984
      %v3113 = vsel %vm1017, %v3049, %v2985
      %v3114 = vsel %vm1018, %v3050, %v2986
      %v3115 = vsel %vm1019, %v3051, %v2987
      %v3116 = vsel %vm1020, %v3052, %v2988
      %v3117 = vsel %vm1021, %v3053, %v2989
      %v3118 = vsel %vm1022, %v3054, %v2990
      %v3119 = vsel %vm1023, %v3055, %v2991
      %v3120 = vsel %vm1024, %v3056, %v2992
      %v3121 = vsel %vm1025, %v3057, %v2993
      %v3122 = vsel %vm1026, %v3058, %v2994
      %v3123 = vsel %vm1027, %v3059, %v2995
      %v3124 = vsel %vm1028, %v3060, %v2996
      %v3125 = vsel %vm1029, %v3061, %v2997
      %v3126 = vsel %vm1030, %v3062, %v2998
      %v3127 = vsel %vm1031, %v3063, %v2999
      %v3128 = vsel %vm1032, %v3064, %v3000
      %v3129 = vsel %vm1033, %v3065, %v3001
      %v3130 = vsel %vm1034, %v3066, %v3002
      %v3131 = vsel %vm1035, %v3067, %v3003
      %v3132 = vsel %vm1036, %v3068, %v3004
      %v3133 = vsel %vm1037, %v3069, %v3005
      %v3134 = vsel %vm1038, %v3070, %v3006
      %v3135 = vsel %vm1039, %v3071, %v3007
      %v3136 = vsel %vm1040, %v3072, %v3008
      %v3137 = vsel %vm1041, %v3073, %v3009
      %v3138 = vsel %vm1042, %v3074, %v3010
      %v3139 = vsel %vm1043, %v3075, %v3011
      %v3140 = vsel %vm1044, %v3076, %v3012
      %v3141 = vsel %vm1045, %v3077, %v3013
      %v3142 = vsel %vm1046, %v3078, %v3014
      %v3143 = vsel %vm1047, %v3079, %v3015
      %v3144 = vsel %vm1048, %v3080, %v3016
      %v3145 = vsel %vm1049, %v3081, %v3017
      %v3146 = vsel %vm1050, %v3082, %v3018
      %v3147 = vsel %vm1051, %v3083, %v3019
      %v3148 = vsel %vm1052, %v3084, %v3020
      %v3149 = vsel %vm1053, %v3085, %v3021
      %v3150 = vsel %vm1054, %v3086, %v3022
      %v3151 = vsel %vm1055, %v3087, %v3023
      %v3152 = vsel %vm1056, %v3088, %v3024
      %v3153 = vsel %vm1057, %v3089, %v3025
      %v3154 = vsel %vm1058, %v3090, %v3026
      %v3155 = vsel %vm1059, %v3091, %v3027
      %v3156 = vsel %vm1060, %v3092, %v3028
      %v3157 = vsel %vm1061, %v3093, %v3029
      %v3158 = vsel %vm1062, %v3094, %v3030
      %v3159 = vsel %vm1063, %v3095, %v3031
      %v3161 = vcombine.high %v187, %v187
      %3163 = vmatprep.subr.mxu0 %v3097
      %3164 = vmatpush1.msra.mxu0 %v3096
      %3165 = vmatprep.subr.mxu0 %v3099
      %3166 = vmatpush1.msra.mxu0 %v3098
      %3167 = vmatprep.subr.mxu0 %v3101
      %3168 = vmatpush1.msra.mxu0 %v3100
      %3169 = vmatprep.subr.mxu0 %v3103
      %3170 = vmatpush1.msra.mxu0 %v3102
      %3171 = vmatprep.subr.mxu0 %v3105
      %3172 = vmatpush1.msra.mxu0 %v3104
      %3173 = vmatprep.subr.mxu0 %v3107
      %3174 = vmatpush1.msra.mxu0 %v3106
      %3175 = vmatprep.subr.mxu0 %v3109
      %3176 = vmatpush1.msra.mxu0 %v3108
      %3177 = vmatprep.subr.mxu0 %v3111
      %3178 = vmatpush1.msra.mxu0 %v3110
      %3179 = vmatprep.subr.mxu0 %v3113
      %3180 = vmatpush1.msra.mxu0 %v3112
      %3181 = vmatprep.subr.mxu0 %v3115
      %3182 = vmatpush1.msra.mxu0 %v3114
      %3183 = vmatprep.subr.mxu0 %v3117
      %3184 = vmatpush1.msra.mxu0 %v3116
      %3185 = vmatprep.subr.mxu0 %v3119
      %3186 = vmatpush1.msra.mxu0 %v3118
      %3187 = vmatprep.subr.mxu0 %v3121
      %3188 = vmatpush1.msra.mxu0 %v3120
      %3189 = vmatprep.subr.mxu0 %v3123
      %3190 = vmatpush1.msra.mxu0 %v3122
      %3191 = vmatprep.subr.mxu0 %v3125
      %3192 = vmatpush1.msra.mxu0 %v3124
      %3193 = vmatprep.subr.mxu0 %v3127
      %3194 = vmatpush1.msra.mxu0 %v3126
      %3195 = vmatprep.subr.mxu0 %v3129
      %3196 = vmatpush1.msra.mxu0 %v3128
      %3197 = vmatprep.subr.mxu0 %v3131
      %3198 = vmatpush1.msra.mxu0 %v3130
      %3199 = vmatprep.subr.mxu0 %v3133
      %3200 = vmatpush1.msra.mxu0 %v3132
      %3201 = vmatprep.subr.mxu0 %v3135
      %3202 = vmatpush1.msra.mxu0 %v3134
      %3203 = vmatprep.subr.mxu0 %v3137
      %3204 = vmatpush1.msra.mxu0 %v3136
      %3205 = vmatprep.subr.mxu0 %v3139
      %3206 = vmatpush1.msra.mxu0 %v3138
      %3207 = vmatprep.subr.mxu0 %v3141
      %3208 = vmatpush1.msra.mxu0 %v3140
      %3209 = vmatprep.subr.mxu0 %v3143
      %3210 = vmatpush1.msra.mxu0 %v3142
      %3211 = vmatprep.subr.mxu0 %v3145
      %3212 = vmatpush1.msra.mxu0 %v3144
      %3213 = vmatprep.subr.mxu0 %v3147
      %3214 = vmatpush1.msra.mxu0 %v3146
      %3215 = vmatprep.subr.mxu0 %v3149
      %3216 = vmatpush1.msra.mxu0 %v3148
      %3217 = vmatprep.subr.mxu0 %v3151
      %3218 = vmatpush1.msra.mxu0 %v3150
      %3219 = vmatprep.subr.mxu0 %v3153
      %3220 = vmatpush1.msra.mxu0 %v3152
      %3221 = vmatprep.subr.mxu0 %v3155
      %3222 = vmatpush1.msra.mxu0 %v3154
      %3223 = vmatprep.subr.mxu0 %v3157
      %3224 = vmatpush1.msra.mxu0 %v3156
      %3225 = vmatprep.subr.mxu0 %v3159
      %3226 = vmatpush1.msra.mxu0 %v3158
      %3227 = vmatprep.mubr.f32.mxu0 %v3161
      %3228 = vmatmul.mubr.f32.gmra.mrb[0].mxu0 %v187
      %v3229 = vpop.f32.mrb[0].mxu0
      %v3230 = vadd.f32 0.0, %v3229
      %v3231 = vpop.f32.mrb[0].mxu0
      %v3232 = vadd.f32 0.0, %v3231
      %3233 = vdwg.mxu0
      %v3236 = vcombine.low %v3230, %v3232
      %3238 = vst [vmem:[%s185] sm:$0xff] %v3236
      %s3239 = smul.u32 2, %s18
      %p3240 = scmp.lt.s32.totalorder %s17, 1
      %s3241 = scalar_select %p3240, %s17, 1
      %p3242 = scmp.lt.s32.totalorder %s3239, 1
      %s3243 = scalar_select %p3242, %s3239, 1
      %s3244 = smul.addr %s3241, 2
      %s3245 = sadd.s32 %s3243, %s3244
      %s3246 = smul.addr %s3245, 4
      %s3247 = scalar_lea.vmem %s2, %s3246
      // Predicated region
      $region29: #{closed_call.13} parent=27 // pred_check
        %p3248 = pneg %p97
      $region30: #{closed_call.13} parent=27 // pred_check_branch
        %3250 = sbr.rel (%p3248) target = $region32
      $region31: #{closed_call.13} parent=27 // pred_region
        %s3251 = smul.u32 2, %s18
      $region32: #{closed_call.13} parent=27 // pred_fallthru
        _
    $region28: #{closed_call.13} parent=5 // pred_fallthru
      _
    %p3252 = scmp.le.s32.totalorder 2, %s8
    // Predicated region
    $region33: #{closed_call.13} parent=5 // pred_check
      %p3253 = pneg %p3252
    $region34: #{closed_call.13} parent=5 // pred_check_branch
      %3255 = sbr.rel (%p3253) target = $region36
    $region35: #{closed_call.13} parent=5 // pred_region
      %s3256 = ssub.s32 %s8, 2
      // Predicated region
      $region37: #{closed_call.13} parent=35 // pred_check
        %p3257 = pneg %p103
      $region38: #{closed_call.13} parent=35 // pred_check_branch
        %3259 = sbr.rel (%p3257) target = $region40
      $region39: #{closed_call.13} parent=35 // pred_region
        %s3260 = smul.u32 2, %s20
        %p3261 = scmp.lt.s32.totalorder %s19, 1
        %s3262 = scalar_select %p3261, %s19, 1
        %p3263 = scmp.lt.s32.totalorder %s3260, 1
        %s3264 = scalar_select %p3263, %s3260, 1
        %s3265 = smul.addr %s3262, 2
        %s3266 = sadd.s32 %s3264, %s3265
        %s3267 = smul.addr %s3266, 4
        %s3268 = scalar_lea.vmem %s2, %s3267
      $region40: #{closed_call.13} parent=35 // pred_fallthru
        _
    $region36: #{closed_call.13} parent=5 // pred_fallthru
      _
  $region6: #{closed_call.13} parent=0 // loop_footer
    %s12 = sadd.s32 1, %s8
  $region7: #{closed_call.13} parent=0 // loop_footer_branch
    %7 = sbr.rel target = $region3
  $region8: #{closed_call.13} parent=0 // loop_exit
    _

</llo_original>
